<compile_context>
chip_gen: v6e
topology: v6e:2x2x1
jax: 0.10.0
libtpu: 0.0.40
codegen_flags: <defaults>
</compile_context>

<pallas_src>
import functools

import jax
import jax.numpy as jnp
from jax.experimental import pallas as pl
from jax.experimental.pallas import tpu as pltpu


def _round_up(x, m):
    return (x + m - 1) // m * m


# -----------------------------------------------------------------------------
# Kernel A: fused linear transform + per-node attention terms.
#   xw_flat   = sum_g x[g] @ W[g]                      (x streamed once over node tiles)
#   a_src[:,h]= xw_flat @ blockdiag(att_src)[:,h]
#   a_dst[:,h]= xw_flat @ blockdiag(att_dst)[:,h]
#   xw[h]     = xw_flat[:, h*C:(h+1)*C]                (per-head layout for kernel B /
#                                                       next layer, no transpose epilogue)
# -----------------------------------------------------------------------------
def make_linear_attn_kernel(G, H, C):
    def kernel(x_ref, w_ref, asrc_bd_ref, adst_bd_ref,
               xw_ref, asrc_ref, adst_ref):
        acc = jnp.zeros((x_ref.shape[1], w_ref.shape[2]), jnp.float32)
        for g in range(G):          # static unroll; G is 1 (layer 1) or H (layer 2)
            acc += jnp.dot(x_ref[g], w_ref[g], preferred_element_type=jnp.float32)

        # Per-node attention terms (hoisted out of the attention kernel).
        asrc_ref[...] = jnp.dot(acc, asrc_bd_ref[...],
                                preferred_element_type=jnp.float32)   # [T, H]
        adst_ref[...] = jnp.dot(acc, adst_bd_ref[...],
                                preferred_element_type=jnp.float32)   # [T, H]

        for h in range(H):          # static head split into per-head blocks
            xw_ref[h] = acc[:, h * C:(h + 1) * C]
    return kernel


def linear_and_attn_terms(x_g, w_g, att_src_bd, att_dst_bd, *, heads, out_ch, tile_n):
    """x_g: [G, Np, Fin], w_g: [G, Fin, H*C] -> (xw [H,Np,C], a_src [Np,H], a_dst [Np,H])."""
    G, Np, Fin = x_g.shape
    HC = w_g.shape[2]
    H, C = heads, out_ch
    kernel = make_linear_attn_kernel(G, H, C)
    return pl.pallas_call(
        kernel,
        out_shape=(jax.ShapeDtypeStruct((H, Np, C), jnp.float32),
                   jax.ShapeDtypeStruct((Np, H), jnp.float32),
                   jax.ShapeDtypeStruct((Np, H), jnp.float32)),
        grid=(Np // tile_n,),
        in_specs=[
            pl.BlockSpec((G, tile_n, Fin), lambda i: (0, i, 0)),   # x: streamed once
            pl.BlockSpec((G, Fin, HC), lambda i: (0, 0, 0)),       # weights: resident
            pl.BlockSpec((HC, H), lambda i: (0, 0)),               # att_src (block-diag)
            pl.BlockSpec((HC, H), lambda i: (0, 0)),               # att_dst (block-diag)
        ],
        out_specs=(pl.BlockSpec((H, tile_n, C), lambda i: (0, i, 0)),
                   pl.BlockSpec((tile_n, H), lambda i: (i, 0)),
                   pl.BlockSpec((tile_n, H), lambda i: (i, 0))),
        compiler_params=pltpu.CompilerParams(
            dimension_semantics=("parallel",)),
    )(x_g, w_g, att_src_bd, att_dst_bd)


# -----------------------------------------------------------------------------
# Kernel B: masked dense attention softmax + aggregation for one GATConv layer.
#   grid = (num_dst_tiles, heads); dst tiles parallel, head axis is the reduction
#   axis for the head-mean layer (resident output accumulator).
# -----------------------------------------------------------------------------
def make_gat_attn_kernel(H, concat, apply_relu, negative_slope=0.2):
    def kernel(xw_ref, asrc_ref, adst_ref, bias_ref, adj_ref, out_ref, lse_ref):
        h = pl.program_id(1)

        xw_src = xw_ref[h]                       # [Np, C]  resident xw, fetched once
        a_src_row = asrc_ref[0]                  # [1, Np]  precomputed in kernel A
        a_dst_col = adst_ref[0]                  # [T, 1]
        adj = adj_ref[...]                       # [T, Np]  int8, adj[i, j]=1 for edge j->i

        e = a_dst_col + a_src_row                                   # [T, Np]
        e = jnp.where(e > 0, e, negative_slope * e)                 # LeakyReLU(0.2)
        e = jnp.where(adj != 0, e, jnp.float32(-1e30))              # mask non-edges

        m = jnp.max(e, axis=-1, keepdims=True)                      # [T, 1]
        p = jnp.exp(e - m)                                          # [T, Np]
        denom = jnp.sum(p, axis=-1, keepdims=True)                  # [T, 1]

        # Single softmax-stat store per step: log-sum-exp per (head, dst node).
        lse_ref[0] = m + jnp.log(denom)

        agg = jnp.dot(p, xw_src, preferred_element_type=jnp.float32)  # [T, C]
        agg = agg / denom            # exact divide (fidelity w/ alpha reconstruction)

        if concat:
            res = agg + bias_ref[0]
            if apply_relu:
                res = jnp.maximum(res, 0.0)
            out_ref[0] = res
        else:
            # Head-mean: accumulate into the resident output block (inner "arbitrary" axis).
            @pl.when(h == 0)
            def _():
                out_ref[...] = jnp.zeros_like(out_ref)

            out_ref[...] += agg

            @pl.when(h == H - 1)
            def _():
                res = out_ref[...] * (1.0 / H) + bias_ref[0]
                if apply_relu:
                    res = jnp.maximum(res, 0.0)
                out_ref[...] = res
    return kernel


def gat_attention(xw, a_src_hn, a_dst_hn, bias, adj, *, concat, apply_relu, tile_dst):
    """xw: [H, Np, C]; a_*: [H, Np]; adj: [Np, Np] int8 -> (out, lse [H, Np])."""
    H, Np, C = xw.shape
    grid = (Np // tile_dst, H)

    a_src3 = a_src_hn.reshape(H, 1, Np).astype(jnp.float32)
    a_dst3 = a_dst_hn.reshape(H, Np, 1).astype(jnp.float32)

    if concat:
        bias3 = bias.reshape(H, 1, C).astype(jnp.float32)
        bias_spec = pl.BlockSpec((1, 1, C), lambda i, h: (h, 0, 0))
        out_shape = jax.ShapeDtypeStruct((H, Np, C), jnp.float32)
        out_spec = pl.BlockSpec((1, tile_dst, C), lambda i, h: (h, i, 0))
        dim_sem = ("parallel", "parallel")
    else:
        bias3 = bias.reshape(1, 1, C).astype(jnp.float32)
        bias_spec = pl.BlockSpec((1, 1, C), lambda i, h: (0, 0, 0))
        out_shape = jax.ShapeDtypeStruct((Np, C), jnp.float32)
        out_spec = pl.BlockSpec((tile_dst, C), lambda i, h: (i, 0))
        dim_sem = ("parallel", "arbitrary")     # head axis is a reduction (mean)

    kernel = make_gat_attn_kernel(H, concat, apply_relu)

    out, lse = pl.pallas_call(
        kernel,
        out_shape=(out_shape, jax.ShapeDtypeStruct((H, Np, 1), jnp.float32)),
        grid=grid,
        in_specs=[
            # Full xw with a constant index map: DMA'd once for the whole kernel
            # (not tiles*H times); per-head slab sliced in-kernel via xw_ref[h].
            pl.BlockSpec((H, Np, C), lambda i, h: (0, 0, 0)),
            pl.BlockSpec((1, 1, Np), lambda i, h: (h, 0, 0)),         # a_src row (tiny)
            pl.BlockSpec((1, tile_dst, 1), lambda i, h: (h, i, 0)),   # a_dst column (tiny)
            bias_spec,
            pl.BlockSpec((tile_dst, Np), lambda i, h: (i, 0)),        # adj int8, const over h
        ],
        out_specs=(out_spec,
                   pl.BlockSpec((1, tile_dst, 1), lambda i, h: (h, i, 0))),
        compiler_params=pltpu.CompilerParams(
            dimension_semantics=dim_sem,
            vmem_limit_bytes=48 * 1024 * 1024,   # headroom under v7x's 64 MiB per-TC
        ),
    )(xw, a_src3, a_dst3, bias3, adj)
    return out, lse[..., 0]


@functools.partial(jax.jit, static_argnames=("heads", "hidden_channels", "out_channels"))
def graph_transformer_teacher(x, edge_index, params, *, heads, hidden_channels, out_channels):
    N = x.shape[0]
    H = heads

    # PyG GATConv: remove self loops (inputs here have none) then add one per node.
    loops = jnp.arange(N, dtype=edge_index.dtype)
    src = jnp.concatenate([edge_index[0], loops])
    dst = jnp.concatenate([edge_index[1], loops])

    # Pad nodes to a lane-width multiple so adj / logits run at full lane width.
    Np = _round_up(max(N, 8), 128)
    tile = min(256, Np)

    # Dense int8 adjacency mask adj[dst, src] = 1 (includes self loops).
    # NOTE: duplicate edges collapse into a single softmax term (differs from PyG only
    # for multigraphs).
    adj = jnp.zeros((Np, Np), jnp.int8).at[dst, src].set(1)
    x_p = jnp.zeros((Np, x.shape[1]), jnp.float32).at[:N].set(x.astype(jnp.float32))

    def block_diag_att(att):     # [H, C] -> [H*C, H] block-diagonal matrix
        Hh, C = att.shape
        eye = jnp.eye(Hh, dtype=jnp.float32)
        return (att.astype(jnp.float32)[:, :, None] * eye[:, None, :]).reshape(Hh * C, Hh)

    def layer(x_g, w_g, att_s, att_d, b, out_ch, concat, apply_relu):
        att_s_bd = block_diag_att(att_s)
        att_d_bd = block_diag_att(att_d)
        xw, a_src_nh, a_dst_nh = linear_and_attn_terms(
            x_g, w_g, att_s_bd, att_d_bd, heads=H, out_ch=out_ch, tile_n=tile)
        a_src_hn = a_src_nh.T                    # [H, Np] (tiny transpose in XLA)
        a_dst_hn = a_dst_nh.T
        out, lse = gat_attention(xw, a_src_hn, a_dst_hn, b, adj,
                                 concat=concat, apply_relu=apply_relu, tile_dst=tile)
        # Per-edge attention coefficients (PyG edge order) from per-node terms + LSE.
        # TODO(synk): this E'-sized gather stays in XLA (data-dependent gather over the
        # edge list has no clean static-BlockSpec form).
        e = a_src_hn[:, src] + a_dst_hn[:, dst]                     # [H, E']
        e = jnp.where(e > 0, e, 0.2 * e)
        attn = jnp.exp(e - lse[:, dst]).T                           # [E', H]
        return out, attn

    # Layer 1: in -> hidden, concat heads, ReLU fused into the attention kernel.
    Fin = x.shape[1]
    w1 = params["w1"].astype(jnp.float32).reshape(1, Fin, H * hidden_channels)
    x1_g = x_p.reshape(1, Np, Fin)
    h1, attn1 = layer(x1_g, w1, params["att_src1"], params["att_dst1"],
                      params["bias1"], hidden_channels, True, True)
    # h1 stays in [H, Np, C1] layout and is consumed directly by layer 2's linear
    # (contraction over the head axis) -- no transpose/reshape HBM pass between layers.

    # Layer 2: hidden*heads -> out, head-mean, no ReLU.
    w2 = params["w2"].astype(jnp.float32).reshape(H, hidden_channels, H * out_channels)
    h2, attn2 = layer(h1, w2, params["att_src2"], params["att_dst2"],
                      params["bias2"], out_channels, False, False)

    return h2[:N], attn1, attn2


def init_params(key, in_channels, hidden_channels, out_channels, heads):
    ks = jax.random.split(key, 6)

    def glorot(k, shape):
        fan_in, fan_out = shape[-2], shape[-1]
        lim = (6.0 / (fan_in + fan_out)) ** 0.5
        return jax.random.uniform(k, shape, jnp.float32, -lim, lim)

    return {
        "w1": glorot(ks[0], (in_channels, heads * hidden_channels)),
        "att_src1": glorot(ks[1], (heads, hidden_channels)),
        "att_dst1": glorot(ks[2], (heads, hidden_channels)),
        "bias1": jnp.zeros((heads * hidden_channels,), jnp.float32),
        "w2": glorot(ks[3], (hidden_channels * heads, heads * out_channels)),
        "att_src2": glorot(ks[4], (heads, out_channels)),
        "att_dst2": glorot(ks[5], (heads, out_channels)),
        "bias2": jnp.zeros((out_channels,), jnp.float32),
    }


def reference_forward(x, edge_index, params, *, heads, hidden_channels, out_channels):
    """Pure-JAX reference with PyG GATConv semantics (verification only)."""
    N = x.shape[0]
    loops = jnp.arange(N, dtype=edge_index.dtype)
    src = jnp.concatenate([edge_index[0], loops])
    dst = jnp.concatenate([edge_index[1], loops])

    def gat(x_in, w, att_s, att_d, b, C, concat):
        H = heads
        xw = (x_in @ w).reshape(N, H, C)
        a_s = jnp.einsum("nhc,hc->nh", xw, att_s)
        a_d = jnp.einsum("nhc,hc->nh", xw, att_d)
        e = a_s[src] + a_d[dst]
        e = jnp.where(e > 0, e, 0.2 * e)
        e_max = jax.ops.segment_max(e, dst, num_segments=N)
        p = jnp.exp(e - e_max[dst])
        denom = jax.ops.segment_sum(p, dst, num_segments=N)
        alpha = p / denom[dst]
        agg = jax.ops.segment_sum(alpha[:, :, None] * xw[src], dst, num_segments=N)
        out = agg.reshape(N, H * C) + b if concat else agg.mean(axis=1) + b
        return out, alpha

    h1, a1 = gat(x, params["w1"], params["att_src1"], params["att_dst1"],
                 params["bias1"], hidden_channels, True)
    h1 = jax.nn.relu(h1)
    h2, a2 = gat(h1, params["w2"], params["att_src2"], params["att_dst2"],
                 params["bias2"], out_channels, False)
    return h2, a1, a2


if __name__ == "__main__":
    N = 16               # nodes
    IN_CH = 8
    HIDDEN = 8
    OUT_CH = 8
    HEADS = 4

    key = jax.random.PRNGKey(0)
    kx, kp = jax.random.split(key)
    x = jax.random.normal(kx, (N, IN_CH), jnp.float32)

    # Deterministic bidirectional ring graph (no self loops, no duplicate edges).
    idx = jnp.arange(N, dtype=jnp.int32)
    src = jnp.concatenate([idx, (idx + 1) % N])
    dst = jnp.concatenate([(idx + 1) % N, idx])
    edge_index = jnp.stack([src, dst])          # [2, 2N], (source, target)

    params = init_params(kp, IN_CH, HIDDEN, OUT_CH, HEADS)

    out, attn1, attn2 = graph_transformer_teacher(
        x, edge_index, params,
        heads=HEADS, hidden_channels=HIDDEN, out_channels=OUT_CH)
    jax.block_until_ready((out, attn1, attn2))

    E_sl = edge_index.shape[1] + N
    assert out.shape == (N, OUT_CH)
    assert attn1.shape == (E_sl, HEADS)
    assert attn2.shape == (E_sl, HEADS)
    assert bool(jnp.all(jnp.isfinite(out)))

    # Attention over incoming edges (incl. self loop) must sum to 1 per node/head.
    dst_all = jnp.concatenate([dst, idx])
    s1 = jax.ops.segment_sum(attn1, dst_all, num_segments=N)
    s2 = jax.ops.segment_sum(attn2, dst_all, num_segments=N)
    assert bool(jnp.allclose(s1, 1.0, atol=1e-4))
    assert bool(jnp.allclose(s2, 1.0, atol=1e-4))

    # Numerical parity with a pure-JAX GATConv reference.
    ref_out, ref_a1, ref_a2 = reference_forward(
        x, edge_index, params,
        heads=HEADS, hidden_channels=HIDDEN, out_channels=OUT_CH)
    assert bool(jnp.allclose(out, ref_out, atol=1e-3, rtol=1e-3))
    assert bool(jnp.allclose(attn1, ref_a1, atol=1e-3, rtol=1e-3))
    assert bool(jnp.allclose(attn2, ref_a2, atol=1e-3, rtol=1e-3))

    print("KERNEL_OK")
</pallas_src>

<mosaic_0001>
module attributes {stable_mosaic.version = 11 : i64} {
  func.func @kernel(%arg0: i32, %arg1: memref<1x128x8xf32, #tpu.memory_space<vmem>>, %arg2: memref<1x8x32xf32, #tpu.memory_space<vmem>>, %arg3: memref<32x4xf32, #tpu.memory_space<vmem>>, %arg4: memref<32x4xf32, #tpu.memory_space<vmem>>, %arg5: memref<4x128x8xf32, #tpu.memory_space<vmem>>, %arg6: memref<128x4xf32, #tpu.memory_space<vmem>>, %arg7: memref<128x4xf32, #tpu.memory_space<vmem>>) attributes {dimension_semantics = [#tpu.dimension_semantics<parallel>], iteration_bounds = array<i64: 1>, scalar_prefetch = 0 : i64, scratch_operands = 0 : i64, tpu.core_type = #tpu.core_type<tc>, window_params = [{transform_indices = @transform_0, window_bounds = array<i64: 1, 128, 8>}, {pipeline_mode = #tpu.pipeline_mode<synchronous>, transform_indices = @transform_1, window_bounds = array<i64: 1, 8, 32>}, {pipeline_mode = #tpu.pipeline_mode<synchronous>, transform_indices = @transform_2, window_bounds = array<i64: 32, 4>}, {pipeline_mode = #tpu.pipeline_mode<synchronous>, transform_indices = @transform_3, window_bounds = array<i64: 32, 4>}, {transform_indices = @transform_4, window_bounds = array<i64: 4, 128, 8>}, {transform_indices = @transform_5, window_bounds = array<i64: 128, 4>}, {transform_indices = @transform_6, window_bounds = array<i64: 128, 4>}]} {
    %cst = arith.constant 0.000000e+00 : f32
    %0 = vector.broadcast %cst : f32 to vector<128x32xf32>
    %c0 = arith.constant 0 : index
    %c0_0 = arith.constant 0 : index
    %c0_1 = arith.constant 0 : index
    %1 = vector.load %arg1[%c0, %c0_0, %c0_1] : memref<1x128x8xf32, #tpu.memory_space<vmem>>, vector<1x128x8xf32>
    %2 = vector.shape_cast %1 : vector<1x128x8xf32> to vector<128x8xf32>
    %c0_2 = arith.constant 0 : index
    %c0_3 = arith.constant 0 : index
    %c0_4 = arith.constant 0 : index
    %3 = vector.load %arg2[%c0_2, %c0_3, %c0_4] : memref<1x8x32xf32, #tpu.memory_space<vmem>>, vector<1x8x32xf32>
    %4 = vector.shape_cast %3 : vector<1x8x32xf32> to vector<8x32xf32>
    %cst_5 = arith.constant dense<0.000000e+00> : vector<128x32xf32>
    %5 = tpu.matmul %2, %4, %cst_5 {dimension_numbers = #tpu.dot_dimension_numbers<[1], [0], [0], [1], [0, 0, 1, 1], [], []>} : vector<128x8xf32>, vector<8x32xf32>, vector<128x32xf32> -> vector<128x32xf32>
    %6 = arith.addf %0, %5 : vector<128x32xf32>
    %c0_6 = arith.constant 0 : index
    %c0_7 = arith.constant 0 : index
    %7 = vector.load %arg3[%c0_6, %c0_7] : memref<32x4xf32, #tpu.memory_space<vmem>>, vector<32x4xf32>
    %cst_8 = arith.constant dense<0.000000e+00> : vector<128x4xf32>
    %8 = tpu.matmul %6, %7, %cst_8 {dimension_numbers = #tpu.dot_dimension_numbers<[1], [0], [0], [1], [0, 0, 1, 1], [], []>} : vector<128x32xf32>, vector<32x4xf32>, vector<128x4xf32> -> vector<128x4xf32>
    %c0_9 = arith.constant 0 : index
    %c0_10 = arith.constant 0 : index
    %9 = vector.load %arg6[%c0_9, %c0_10] : memref<128x4xf32, #tpu.memory_space<vmem>>, vector<128x4xf32>
    tpu.vector_store %arg6[%c0_9, %c0_10], %8 {strides = array<i32>} : memref<128x4xf32, #tpu.memory_space<vmem>>, vector<128x4xf32>,
    %c0_11 = arith.constant 0 : index
    %c0_12 = arith.constant 0 : index
    %10 = vector.load %arg4[%c0_11, %c0_12] : memref<32x4xf32, #tpu.memory_space<vmem>>, vector<32x4xf32>
    %cst_13 = arith.constant dense<0.000000e+00> : vector<128x4xf32>
    %11 = tpu.matmul %6, %10, %cst_13 {dimension_numbers = #tpu.dot_dimension_numbers<[1], [0], [0], [1], [0, 0, 1, 1], [], []>} : vector<128x32xf32>, vector<32x4xf32>, vector<128x4xf32> -> vector<128x4xf32>
    %c0_14 = arith.constant 0 : index
    %c0_15 = arith.constant 0 : index
    %12 = vector.load %arg7[%c0_14, %c0_15] : memref<128x4xf32, #tpu.memory_space<vmem>>, vector<128x4xf32>
    tpu.vector_store %arg7[%c0_14, %c0_15], %11 {strides = array<i32>} : memref<128x4xf32, #tpu.memory_space<vmem>>, vector<128x4xf32>,
    %13 = vector.extract_strided_slice %6 {offsets = [0, 0], sizes = [128, 8], strides = [1, 1]} : vector<128x32xf32> to vector<128x8xf32>
    %c0_16 = arith.constant 0 : index
    %c0_17 = arith.constant 0 : index
    %c0_18 = arith.constant 0 : index
    %14 = vector.load %arg5[%c0_16, %c0_17, %c0_18] : memref<4x128x8xf32, #tpu.memory_space<vmem>>, vector<1x128x8xf32>
    %15 = vector.shape_cast %14 : vector<1x128x8xf32> to vector<128x8xf32>
    %16 = vector.shape_cast %13 : vector<128x8xf32> to vector<1x128x8xf32>
    tpu.vector_store %arg5[%c0_16, %c0_17, %c0_18], %16 {strides = array<i32>} : memref<4x128x8xf32, #tpu.memory_space<vmem>>, vector<1x128x8xf32>,
    %17 = vector.extract_strided_slice %6 {offsets = [0, 8], sizes = [128, 8], strides = [1, 1]} : vector<128x32xf32> to vector<128x8xf32>
    %c1 = arith.constant 1 : index
    %c0_19 = arith.constant 0 : index
    %c0_20 = arith.constant 0 : index
    %18 = vector.load %arg5[%c1, %c0_19, %c0_20] : memref<4x128x8xf32, #tpu.memory_space<vmem>>, vector<1x128x8xf32>
    %19 = vector.shape_cast %18 : vector<1x128x8xf32> to vector<128x8xf32>
    %20 = vector.shape_cast %17 : vector<128x8xf32> to vector<1x128x8xf32>
    tpu.vector_store %arg5[%c1, %c0_19, %c0_20], %20 {strides = array<i32>} : memref<4x128x8xf32, #tpu.memory_space<vmem>>, vector<1x128x8xf32>,
    %21 = vector.extract_strided_slice %6 {offsets = [0, 16], sizes = [128, 8], strides = [1, 1]} : vector<128x32xf32> to vector<128x8xf32>
    %c2 = arith.constant 2 : index
    %c0_21 = arith.constant 0 : index
    %c0_22 = arith.constant 0 : index
    %22 = vector.load %arg5[%c2, %c0_21, %c0_22] : memref<4x128x8xf32, #tpu.memory_space<vmem>>, vector<1x128x8xf32>
    %23 = vector.shape_cast %22 : vector<1x128x8xf32> to vector<128x8xf32>
    %24 = vector.shape_cast %21 : vector<128x8xf32> to vector<1x128x8xf32>
    tpu.vector_store %arg5[%c2, %c0_21, %c0_22], %24 {strides = array<i32>} : memref<4x128x8xf32, #tpu.memory_space<vmem>>, vector<1x128x8xf32>,
    %25 = vector.extract_strided_slice %6 {offsets = [0, 24], sizes = [128, 8], strides = [1, 1]} : vector<128x32xf32> to vector<128x8xf32>
    %c3 = arith.constant 3 : index
    %c0_23 = arith.constant 0 : index
    %c0_24 = arith.constant 0 : index
    %26 = vector.load %arg5[%c3, %c0_23, %c0_24] : memref<4x128x8xf32, #tpu.memory_space<vmem>>, vector<1x128x8xf32>
    %27 = vector.shape_cast %26 : vector<1x128x8xf32> to vector<128x8xf32>
    %28 = vector.shape_cast %25 : vector<128x8xf32> to vector<1x128x8xf32>
    tpu.vector_store %arg5[%c3, %c0_23, %c0_24], %28 {strides = array<i32>} : memref<4x128x8xf32, #tpu.memory_space<vmem>>, vector<1x128x8xf32>,
    return
  }
  func.func @transform_0(%arg0: i32) -> (i32, i32, i32) {
    %c0_i32 = arith.constant 0 : i32
    %c0_i32_0 = arith.constant 0 : i32
    %c0_i32_1 = arith.constant 0 : i32
    return %c0_i32, %arg0, %c0_i32_0 : i32, i32, i32
  }
  func.func @transform_1(%arg0: i32) -> (i32, i32, i32) {
    %c0_i32 = arith.constant 0 : i32
    %c0_i32_0 = arith.constant 0 : i32
    %c0_i32_1 = arith.constant 0 : i32
    %c0_i32_2 = arith.constant 0 : i32
    return %c0_i32, %c0_i32_0, %c0_i32_1 : i32, i32, i32
  }
  func.func @transform_2(%arg0: i32) -> (i32, i32) {
    %c0_i32 = arith.constant 0 : i32
    %c0_i32_0 = arith.constant 0 : i32
    %c0_i32_1 = arith.constant 0 : i32
    return %c0_i32, %c0_i32_0 : i32, i32
  }
  func.func @transform_3(%arg0: i32) -> (i32, i32) {
    %c0_i32 = arith.constant 0 : i32
    %c0_i32_0 = arith.constant 0 : i32
    %c0_i32_1 = arith.constant 0 : i32
    return %c0_i32, %c0_i32_0 : i32, i32
  }
  func.func @transform_4(%arg0: i32) -> (i32, i32, i32) {
    %c0_i32 = arith.constant 0 : i32
    %c0_i32_0 = arith.constant 0 : i32
    %c0_i32_1 = arith.constant 0 : i32
    return %c0_i32, %arg0, %c0_i32_0 : i32, i32, i32
  }
  func.func @transform_5(%arg0: i32) -> (i32, i32) {
    %c0_i32 = arith.constant 0 : i32
    %c0_i32_0 = arith.constant 0 : i32
    return %arg0, %c0_i32 : i32, i32
  }
  func.func @transform_6(%arg0: i32) -> (i32, i32) {
    %c0_i32 = arith.constant 0 : i32
    %c0_i32_0 = arith.constant 0 : i32
    return %arg0, %c0_i32 : i32, i32
  }
}

module attributes {stable_mosaic.version = 11 : i64} {
  func.func @kernel(%arg0: i32, %arg1: i32, %arg2: memref<4x128x8xf32, #tpu.memory_space<vmem>>, %arg3: memref<1x1x128xf32, #tpu.memory_space<vmem>>, %arg4: memref<1x128x1xf32, #tpu.memory_space<vmem>>, %arg5: memref<1x1x8xf32, #tpu.memory_space<vmem>>, %arg6: memref<128x128xi8, #tpu.memory_space<vmem>>, %arg7: memref<1x128x8xf32, #tpu.memory_space<vmem>>, %arg8: memref<1x128x1xf32, #tpu.memory_space<vmem>>) attributes {dimension_semantics = [#tpu.dimension_semantics<parallel>, #tpu.dimension_semantics<parallel>], iteration_bounds = array<i64: 1, 4>, scalar_prefetch = 0 : i64, scratch_operands = 0 : i64, tpu.core_type = #tpu.core_type<tc>, window_params = [{pipeline_mode = #tpu.pipeline_mode<synchronous>, transform_indices = @transform_0, window_bounds = array<i64: 4, 128, 8>}, {transform_indices = @transform_1, window_bounds = array<i64: 1, 1, 128>}, {transform_indices = @transform_2, window_bounds = array<i64: 1, 128, 1>}, {transform_indices = @transform_3, window_bounds = array<i64: 1, 1, 8>}, {transform_indices = @transform_4, window_bounds = array<i64: 128, 128>}, {transform_indices = @transform_5, window_bounds = array<i64: 1, 128, 8>}, {transform_indices = @transform_6, window_bounds = array<i64: 1, 128, 1>}]} {
    %0 = arith.index_cast %arg1 : i32 to index
    %c0 = arith.constant 0 : index
    %c0_0 = arith.constant 0 : index
    %1 = vector.load %arg2[%0, %c0, %c0_0] : memref<4x128x8xf32, #tpu.memory_space<vmem>>, vector<1x128x8xf32>
    %2 = vector.shape_cast %1 : vector<1x128x8xf32> to vector<128x8xf32>
    %c0_1 = arith.constant 0 : index
    %c0_2 = arith.constant 0 : index
    %c0_3 = arith.constant 0 : index
    %3 = vector.load %arg3[%c0_1, %c0_2, %c0_3] : memref<1x1x128xf32, #tpu.memory_space<vmem>>, vector<1x1x128xf32>
    %4 = vector.shape_cast %3 : vector<1x1x128xf32> to vector<1x128xf32>
    %c0_4 = arith.constant 0 : index
    %c0_5 = arith.constant 0 : index
    %c0_6 = arith.constant 0 : index
    %5 = vector.load %arg4[%c0_4, %c0_5, %c0_6] : memref<1x128x1xf32, #tpu.memory_space<vmem>>, vector<1x128x1xf32>
    %6 = vector.shape_cast %5 : vector<1x128x1xf32> to vector<128x1xf32>
    %c0_7 = arith.constant 0 : index
    %c0_8 = arith.constant 0 : index
    %7 = vector.load %arg6[%c0_7, %c0_8] : memref<128x128xi8, #tpu.memory_space<vmem>>, vector<128x128xi8>
    %8 = vector.broadcast %6 : vector<128x1xf32> to vector<128x128xf32>
    %9 = vector.broadcast %4 : vector<1x128xf32> to vector<128x128xf32>
    %10 = arith.addf %8, %9 : vector<128x128xf32>
    %cst = arith.constant 0.000000e+00 : f32
    %11 = vector.broadcast %cst : f32 to vector<128x128xf32>
    %12 = arith.cmpf ogt, %10, %11 : vector<128x128xf32>
    %cst_9 = arith.constant 2.000000e-01 : f32
    %13 = vector.broadcast %cst_9 : f32 to vector<128x128xf32>
    %14 = arith.mulf %13, %10 : vector<128x128xf32>
    %15 = arith.select %12, %10, %14 : vector<128x128xi1>, vector<128x128xf32>
    %c0_i8 = arith.constant 0 : i8
    %16 = vector.broadcast %c0_i8 : i8 to vector<128x128xi8>
    %17 = arith.cmpi ne, %7, %16 : vector<128x128xi8>
    %cst_10 = arith.constant -1.000000e+30 : f32
    %18 = vector.broadcast %cst_10 : f32 to vector<128x128xf32>
    %19 = arith.select %17, %15, %18 : vector<128x128xi1>, vector<128x128xf32>
    %cst_11 = arith.constant dense<0xFF800000> : vector<128xf32>
    %20 = vector.multi_reduction <maximumf>, %19, %cst_11 [1] : vector<128x128xf32> to vector<128xf32>
    %21 = vector.shape_cast %20 : vector<128xf32> to vector<128x1xf32>
    %22 = vector.broadcast %21 : vector<128x1xf32> to vector<128x128xf32>
    %23 = arith.subf %19, %22 : vector<128x128xf32>
    %24 = math.exp %23 : vector<128x128xf32>
    %cst_12 = arith.constant dense<0.000000e+00> : vector<128xf32>
    %25 = vector.multi_reduction <add>, %24, %cst_12 [1] : vector<128x128xf32> to vector<128xf32>
    %26 = vector.shape_cast %25 : vector<128xf32> to vector<128x1xf32>
    %27 = math.log %26 : vector<128x1xf32>
    %28 = arith.addf %21, %27 : vector<128x1xf32>
    %c0_13 = arith.constant 0 : index
    %c0_14 = arith.constant 0 : index
    %c0_15 = arith.constant 0 : index
    %29 = vector.load %arg8[%c0_13, %c0_14, %c0_15] : memref<1x128x1xf32, #tpu.memory_space<vmem>>, vector<1x128x1xf32>
    %30 = vector.shape_cast %29 : vector<1x128x1xf32> to vector<128x1xf32>
    %31 = vector.shape_cast %28 : vector<128x1xf32> to vector<1x128x1xf32>
    tpu.vector_store %arg8[%c0_13, %c0_14, %c0_15], %31 {strides = array<i32>} : memref<1x128x1xf32, #tpu.memory_space<vmem>>, vector<1x128x1xf32>,
    %cst_16 = arith.constant dense<0.000000e+00> : vector<128x8xf32>
    %32 = tpu.matmul %24, %2, %cst_16 {dimension_numbers = #tpu.dot_dimension_numbers<[1], [0], [0], [1], [0, 0, 1, 1], [], []>} : vector<128x128xf32>, vector<128x8xf32>, vector<128x8xf32> -> vector<128x8xf32>
    %33 = vector.broadcast %26 : vector<128x1xf32> to vector<128x8xf32>
    %34 = arith.divf %32, %33 : vector<128x8xf32>
    %c0_17 = arith.constant 0 : index
    %c0_18 = arith.constant 0 : index
    %c0_19 = arith.constant 0 : index
    %35 = vector.load %arg5[%c0_17, %c0_18, %c0_19] : memref<1x1x8xf32, #tpu.memory_space<vmem>>, vector<1x1x8xf32>
    %36 = vector.shape_cast %35 : vector<1x1x8xf32> to vector<1x8xf32>
    %37 = vector.broadcast %36 : vector<1x8xf32> to vector<128x8xf32>
    %38 = arith.addf %34, %37 : vector<128x8xf32>
    %cst_20 = arith.constant 0.000000e+00 : f32
    %39 = vector.broadcast %cst_20 : f32 to vector<128x8xf32>
    %40 = arith.maximumf %38, %39 : vector<128x8xf32>
    %c0_21 = arith.constant 0 : index
    %c0_22 = arith.constant 0 : index
    %c0_23 = arith.constant 0 : index
    %41 = vector.load %arg7[%c0_21, %c0_22, %c0_23] : memref<1x128x8xf32, #tpu.memory_space<vmem>>, vector<1x128x8xf32>
    %42 = vector.shape_cast %41 : vector<1x128x8xf32> to vector<128x8xf32>
    %43 = vector.shape_cast %40 : vector<128x8xf32> to vector<1x128x8xf32>
    tpu.vector_store %arg7[%c0_21, %c0_22, %c0_23], %43 {strides = array<i32>} : memref<1x128x8xf32, #tpu.memory_space<vmem>>, vector<1x128x8xf32>,
    return
  }
  func.func @transform_0(%arg0: i32, %arg1: i32) -> (i32, i32, i32) {
    %c0_i32 = arith.constant 0 : i32
    %c0_i32_0 = arith.constant 0 : i32
    %c0_i32_1 = arith.constant 0 : i32
    %c0_i32_2 = arith.constant 0 : i32
    return %c0_i32, %c0_i32_0, %c0_i32_1 : i32, i32, i32
  }
  func.func @transform_1(%arg0: i32, %arg1: i32) -> (i32, i32, i32) {
    %c0_i32 = arith.constant 0 : i32
    %c0_i32_0 = arith.constant 0 : i32
    %c0_i32_1 = arith.constant 0 : i32
    return %arg1, %c0_i32, %c0_i32_0 : i32, i32, i32
  }
  func.func @transform_2(%arg0: i32, %arg1: i32) -> (i32, i32, i32) {
    %c0_i32 = arith.constant 0 : i32
    %c0_i32_0 = arith.constant 0 : i32
    return %arg1, %arg0, %c0_i32 : i32, i32, i32
  }
  func.func @transform_3(%arg0: i32, %arg1: i32) -> (i32, i32, i32) {
    %c0_i32 = arith.constant 0 : i32
    %c0_i32_0 = arith.constant 0 : i32
    %c0_i32_1 = arith.constant 0 : i32
    return %arg1, %c0_i32, %c0_i32_0 : i32, i32, i32
  }
  func.func @transform_4(%arg0: i32, %arg1: i32) -> (i32, i32) {
    %c0_i32 = arith.constant 0 : i32
    %c0_i32_0 = arith.constant 0 : i32
    return %arg0, %c0_i32 : i32, i32
  }
  func.func @transform_5(%arg0: i32, %arg1: i32) -> (i32, i32, i32) {
    %c0_i32 = arith.constant 0 : i32
    %c0_i32_0 = arith.constant 0 : i32
    return %arg1, %arg0, %c0_i32 : i32, i32, i32
  }
  func.func @transform_6(%arg0: i32, %arg1: i32) -> (i32, i32, i32) {
    %c0_i32 = arith.constant 0 : i32
    %c0_i32_0 = arith.constant 0 : i32
    return %arg1, %arg0, %c0_i32 : i32, i32, i32
  }
}

module attributes {stable_mosaic.version = 11 : i64} {
  func.func @kernel(%arg0: i32, %arg1: memref<4x128x8xf32, #tpu.memory_space<vmem>>, %arg2: memref<4x8x32xf32, #tpu.memory_space<vmem>>, %arg3: memref<32x4xf32, #tpu.memory_space<vmem>>, %arg4: memref<32x4xf32, #tpu.memory_space<vmem>>, %arg5: memref<4x128x8xf32, #tpu.memory_space<vmem>>, %arg6: memref<128x4xf32, #tpu.memory_space<vmem>>, %arg7: memref<128x4xf32, #tpu.memory_space<vmem>>) attributes {dimension_semantics = [#tpu.dimension_semantics<parallel>], iteration_bounds = array<i64: 1>, scalar_prefetch = 0 : i64, scratch_operands = 0 : i64, tpu.core_type = #tpu.core_type<tc>, window_params = [{transform_indices = @transform_0, window_bounds = array<i64: 4, 128, 8>}, {pipeline_mode = #tpu.pipeline_mode<synchronous>, transform_indices = @transform_1, window_bounds = array<i64: 4, 8, 32>}, {pipeline_mode = #tpu.pipeline_mode<synchronous>, transform_indices = @transform_2, window_bounds = array<i64: 32, 4>}, {pipeline_mode = #tpu.pipeline_mode<synchronous>, transform_indices = @transform_3, window_bounds = array<i64: 32, 4>}, {transform_indices = @transform_4, window_bounds = array<i64: 4, 128, 8>}, {transform_indices = @transform_5, window_bounds = array<i64: 128, 4>}, {transform_indices = @transform_6, window_bounds = array<i64: 128, 4>}]} {
    %cst = arith.constant 0.000000e+00 : f32
    %0 = vector.broadcast %cst : f32 to vector<128x32xf32>
    %c0 = arith.constant 0 : index
    %c0_0 = arith.constant 0 : index
    %c0_1 = arith.constant 0 : index
    %1 = vector.load %arg1[%c0, %c0_0, %c0_1] : memref<4x128x8xf32, #tpu.memory_space<vmem>>, vector<1x128x8xf32>
    %2 = vector.shape_cast %1 : vector<1x128x8xf32> to vector<128x8xf32>
    %c0_2 = arith.constant 0 : index
    %c0_3 = arith.constant 0 : index
    %c0_4 = arith.constant 0 : index
    %3 = vector.load %arg2[%c0_2, %c0_3, %c0_4] : memref<4x8x32xf32, #tpu.memory_space<vmem>>, vector<1x8x32xf32>
    %4 = vector.shape_cast %3 : vector<1x8x32xf32> to vector<8x32xf32>
    %cst_5 = arith.constant dense<0.000000e+00> : vector<128x32xf32>
    %5 = tpu.matmul %2, %4, %cst_5 {dimension_numbers = #tpu.dot_dimension_numbers<[1], [0], [0], [1], [0, 0, 1, 1], [], []>} : vector<128x8xf32>, vector<8x32xf32>, vector<128x32xf32> -> vector<128x32xf32>
    %6 = arith.addf %0, %5 : vector<128x32xf32>
    %c1 = arith.constant 1 : index
    %c0_6 = arith.constant 0 : index
    %c0_7 = arith.constant 0 : index
    %7 = vector.load %arg1[%c1, %c0_6, %c0_7] : memref<4x128x8xf32, #tpu.memory_space<vmem>>, vector<1x128x8xf32>
    %8 = vector.shape_cast %7 : vector<1x128x8xf32> to vector<128x8xf32>
    %c1_8 = arith.constant 1 : index
    %c0_9 = arith.constant 0 : index
    %c0_10 = arith.constant 0 : index
    %9 = vector.load %arg2[%c1_8, %c0_9, %c0_10] : memref<4x8x32xf32, #tpu.memory_space<vmem>>, vector<1x8x32xf32>
    %10 = vector.shape_cast %9 : vector<1x8x32xf32> to vector<8x32xf32>
    %cst_11 = arith.constant dense<0.000000e+00> : vector<128x32xf32>
    %11 = tpu.matmul %8, %10, %cst_11 {dimension_numbers = #tpu.dot_dimension_numbers<[1], [0], [0], [1], [0, 0, 1, 1], [], []>} : vector<128x8xf32>, vector<8x32xf32>, vector<128x32xf32> -> vector<128x32xf32>
    %12 = arith.addf %6, %11 : vector<128x32xf32>
    %c2 = arith.constant 2 : index
    %c0_12 = arith.constant 0 : index
    %c0_13 = arith.constant 0 : index
    %13 = vector.load %arg1[%c2, %c0_12, %c0_13] : memref<4x128x8xf32, #tpu.memory_space<vmem>>, vector<1x128x8xf32>
    %14 = vector.shape_cast %13 : vector<1x128x8xf32> to vector<128x8xf32>
    %c2_14 = arith.constant 2 : index
    %c0_15 = arith.constant 0 : index
    %c0_16 = arith.constant 0 : index
    %15 = vector.load %arg2[%c2_14, %c0_15, %c0_16] : memref<4x8x32xf32, #tpu.memory_space<vmem>>, vector<1x8x32xf32>
    %16 = vector.shape_cast %15 : vector<1x8x32xf32> to vector<8x32xf32>
    %cst_17 = arith.constant dense<0.000000e+00> : vector<128x32xf32>
    %17 = tpu.matmul %14, %16, %cst_17 {dimension_numbers = #tpu.dot_dimension_numbers<[1], [0], [0], [1], [0, 0, 1, 1], [], []>} : vector<128x8xf32>, vector<8x32xf32>, vector<128x32xf32> -> vector<128x32xf32>
    %18 = arith.addf %12, %17 : vector<128x32xf32>
    %c3 = arith.constant 3 : index
    %c0_18 = arith.constant 0 : index
    %c0_19 = arith.constant 0 : index
    %19 = vector.load %arg1[%c3, %c0_18, %c0_19] : memref<4x128x8xf32, #tpu.memory_space<vmem>>, vector<1x128x8xf32>
    %20 = vector.shape_cast %19 : vector<1x128x8xf32> to vector<128x8xf32>
    %c3_20 = arith.constant 3 : index
    %c0_21 = arith.constant 0 : index
    %c0_22 = arith.constant 0 : index
    %21 = vector.load %arg2[%c3_20, %c0_21, %c0_22] : memref<4x8x32xf32, #tpu.memory_space<vmem>>, vector<1x8x32xf32>
    %22 = vector.shape_cast %21 : vector<1x8x32xf32> to vector<8x32xf32>
    %cst_23 = arith.constant dense<0.000000e+00> : vector<128x32xf32>
    %23 = tpu.matmul %20, %22, %cst_23 {dimension_numbers = #tpu.dot_dimension_numbers<[1], [0], [0], [1], [0, 0, 1, 1], [], []>} : vector<128x8xf32>, vector<8x32xf32>, vector<128x32xf32> -> vector<128x32xf32>
    %24 = arith.addf %18, %23 : vector<128x32xf32>
    %c0_24 = arith.constant 0 : index
    %c0_25 = arith.constant 0 : index
    %25 = vector.load %arg3[%c0_24, %c0_25] : memref<32x4xf32, #tpu.memory_space<vmem>>, vector<32x4xf32>
    %cst_26 = arith.constant dense<0.000000e+00> : vector<128x4xf32>
    %26 = tpu.matmul %24, %25, %cst_26 {dimension_numbers = #tpu.dot_dimension_numbers<[1], [0], [0], [1], [0, 0, 1, 1], [], []>} : vector<128x32xf32>, vector<32x4xf32>, vector<128x4xf32> -> vector<128x4xf32>
    %c0_27 = arith.constant 0 : index
    %c0_28 = arith.constant 0 : index
    %27 = vector.load %arg6[%c0_27, %c0_28] : memref<128x4xf32, #tpu.memory_space<vmem>>, vector<128x4xf32>
    tpu.vector_store %arg6[%c0_27, %c0_28], %26 {strides = array<i32>} : memref<128x4xf32, #tpu.memory_space<vmem>>, vector<128x4xf32>,
    %c0_29 = arith.constant 0 : index
    %c0_30 = arith.constant 0 : index
    %28 = vector.load %arg4[%c0_29, %c0_30] : memref<32x4xf32, #tpu.memory_space<vmem>>, vector<32x4xf32>
    %cst_31 = arith.constant dense<0.000000e+00> : vector<128x4xf32>
    %29 = tpu.matmul %24, %28, %cst_31 {dimension_numbers = #tpu.dot_dimension_numbers<[1], [0], [0], [1], [0, 0, 1, 1], [], []>} : vector<128x32xf32>, vector<32x4xf32>, vector<128x4xf32> -> vector<128x4xf32>
    %c0_32 = arith.constant 0 : index
    %c0_33 = arith.constant 0 : index
    %30 = vector.load %arg7[%c0_32, %c0_33] : memref<128x4xf32, #tpu.memory_space<vmem>>, vector<128x4xf32>
    tpu.vector_store %arg7[%c0_32, %c0_33], %29 {strides = array<i32>} : memref<128x4xf32, #tpu.memory_space<vmem>>, vector<128x4xf32>,
    %31 = vector.extract_strided_slice %24 {offsets = [0, 0], sizes = [128, 8], strides = [1, 1]} : vector<128x32xf32> to vector<128x8xf32>
    %c0_34 = arith.constant 0 : index
    %c0_35 = arith.constant 0 : index
    %c0_36 = arith.constant 0 : index
    %32 = vector.load %arg5[%c0_34, %c0_35, %c0_36] : memref<4x128x8xf32, #tpu.memory_space<vmem>>, vector<1x128x8xf32>
    %33 = vector.shape_cast %32 : vector<1x128x8xf32> to vector<128x8xf32>
    %34 = vector.shape_cast %31 : vector<128x8xf32> to vector<1x128x8xf32>
    tpu.vector_store %arg5[%c0_34, %c0_35, %c0_36], %34 {strides = array<i32>} : memref<4x128x8xf32, #tpu.memory_space<vmem>>, vector<1x128x8xf32>,
    %35 = vector.extract_strided_slice %24 {offsets = [0, 8], sizes = [128, 8], strides = [1, 1]} : vector<128x32xf32> to vector<128x8xf32>
    %c1_37 = arith.constant 1 : index
    %c0_38 = arith.constant 0 : index
    %c0_39 = arith.constant 0 : index
    %36 = vector.load %arg5[%c1_37, %c0_38, %c0_39] : memref<4x128x8xf32, #tpu.memory_space<vmem>>, vector<1x128x8xf32>
    %37 = vector.shape_cast %36 : vector<1x128x8xf32> to vector<128x8xf32>
    %38 = vector.shape_cast %35 : vector<128x8xf32> to vector<1x128x8xf32>
    tpu.vector_store %arg5[%c1_37, %c0_38, %c0_39], %38 {strides = array<i32>} : memref<4x128x8xf32, #tpu.memory_space<vmem>>, vector<1x128x8xf32>,
    %39 = vector.extract_strided_slice %24 {offsets = [0, 16], sizes = [128, 8], strides = [1, 1]} : vector<128x32xf32> to vector<128x8xf32>
    %c2_40 = arith.constant 2 : index
    %c0_41 = arith.constant 0 : index
    %c0_42 = arith.constant 0 : index
    %40 = vector.load %arg5[%c2_40, %c0_41, %c0_42] : memref<4x128x8xf32, #tpu.memory_space<vmem>>, vector<1x128x8xf32>
    %41 = vector.shape_cast %40 : vector<1x128x8xf32> to vector<128x8xf32>
    %42 = vector.shape_cast %39 : vector<128x8xf32> to vector<1x128x8xf32>
    tpu.vector_store %arg5[%c2_40, %c0_41, %c0_42], %42 {strides = array<i32>} : memref<4x128x8xf32, #tpu.memory_space<vmem>>, vector<1x128x8xf32>,
    %43 = vector.extract_strided_slice %24 {offsets = [0, 24], sizes = [128, 8], strides = [1, 1]} : vector<128x32xf32> to vector<128x8xf32>
    %c3_43 = arith.constant 3 : index
    %c0_44 = arith.constant 0 : index
    %c0_45 = arith.constant 0 : index
    %44 = vector.load %arg5[%c3_43, %c0_44, %c0_45] : memref<4x128x8xf32, #tpu.memory_space<vmem>>, vector<1x128x8xf32>
    %45 = vector.shape_cast %44 : vector<1x128x8xf32> to vector<128x8xf32>
    %46 = vector.shape_cast %43 : vector<128x8xf32> to vector<1x128x8xf32>
    tpu.vector_store %arg5[%c3_43, %c0_44, %c0_45], %46 {strides = array<i32>} : memref<4x128x8xf32, #tpu.memory_space<vmem>>, vector<1x128x8xf32>,
    return
  }
  func.func @transform_0(%arg0: i32) -> (i32, i32, i32) {
    %c0_i32 = arith.constant 0 : i32
    %c0_i32_0 = arith.constant 0 : i32
    %c0_i32_1 = arith.constant 0 : i32
    return %c0_i32, %arg0, %c0_i32_0 : i32, i32, i32
  }
  func.func @transform_1(%arg0: i32) -> (i32, i32, i32) {
    %c0_i32 = arith.constant 0 : i32
    %c0_i32_0 = arith.constant 0 : i32
    %c0_i32_1 = arith.constant 0 : i32
    %c0_i32_2 = arith.constant 0 : i32
    return %c0_i32, %c0_i32_0, %c0_i32_1 : i32, i32, i32
  }
  func.func @transform_2(%arg0: i32) -> (i32, i32) {
    %c0_i32 = arith.constant 0 : i32
    %c0_i32_0 = arith.constant 0 : i32
    %c0_i32_1 = arith.constant 0 : i32
    return %c0_i32, %c0_i32_0 : i32, i32
  }
  func.func @transform_3(%arg0: i32) -> (i32, i32) {
    %c0_i32 = arith.constant 0 : i32
    %c0_i32_0 = arith.constant 0 : i32
    %c0_i32_1 = arith.constant 0 : i32
    return %c0_i32, %c0_i32_0 : i32, i32
  }
  func.func @transform_4(%arg0: i32) -> (i32, i32, i32) {
    %c0_i32 = arith.constant 0 : i32
    %c0_i32_0 = arith.constant 0 : i32
    %c0_i32_1 = arith.constant 0 : i32
    return %c0_i32, %arg0, %c0_i32_0 : i32, i32, i32
  }
  func.func @transform_5(%arg0: i32) -> (i32, i32) {
    %c0_i32 = arith.constant 0 : i32
    %c0_i32_0 = arith.constant 0 : i32
    return %arg0, %c0_i32 : i32, i32
  }
  func.func @transform_6(%arg0: i32) -> (i32, i32) {
    %c0_i32 = arith.constant 0 : i32
    %c0_i32_0 = arith.constant 0 : i32
    return %arg0, %c0_i32 : i32, i32
  }
}

module attributes {stable_mosaic.version = 11 : i64} {
  func.func @kernel(%arg0: i32, %arg1: i32, %arg2: memref<4x128x8xf32, #tpu.memory_space<vmem>>, %arg3: memref<1x1x128xf32, #tpu.memory_space<vmem>>, %arg4: memref<1x128x1xf32, #tpu.memory_space<vmem>>, %arg5: memref<1x1x8xf32, #tpu.memory_space<vmem>>, %arg6: memref<128x128xi8, #tpu.memory_space<vmem>>, %arg7: memref<128x8xf32, #tpu.memory_space<vmem>>, %arg8: memref<1x128x1xf32, #tpu.memory_space<vmem>>) attributes {dimension_semantics = [#tpu.dimension_semantics<parallel>, #tpu.dimension_semantics<arbitrary>], iteration_bounds = array<i64: 1, 4>, scalar_prefetch = 0 : i64, scratch_operands = 0 : i64, tpu.core_type = #tpu.core_type<tc>, window_params = [{pipeline_mode = #tpu.pipeline_mode<synchronous>, transform_indices = @transform_0, window_bounds = array<i64: 4, 128, 8>}, {transform_indices = @transform_1, window_bounds = array<i64: 1, 1, 128>}, {transform_indices = @transform_2, window_bounds = array<i64: 1, 128, 1>}, {pipeline_mode = #tpu.pipeline_mode<synchronous>, transform_indices = @transform_3, window_bounds = array<i64: 1, 1, 8>}, {transform_indices = @transform_4, window_bounds = array<i64: 128, 128>}, {transform_indices = @transform_5, window_bounds = array<i64: 128, 8>}, {transform_indices = @transform_6, window_bounds = array<i64: 1, 128, 1>}]} {
    %0 = arith.index_cast %arg1 : i32 to index
    %c0 = arith.constant 0 : index
    %c0_0 = arith.constant 0 : index
    %1 = vector.load %arg2[%0, %c0, %c0_0] : memref<4x128x8xf32, #tpu.memory_space<vmem>>, vector<1x128x8xf32>
    %2 = vector.shape_cast %1 : vector<1x128x8xf32> to vector<128x8xf32>
    %c0_1 = arith.constant 0 : index
    %c0_2 = arith.constant 0 : index
    %c0_3 = arith.constant 0 : index
    %3 = vector.load %arg3[%c0_1, %c0_2, %c0_3] : memref<1x1x128xf32, #tpu.memory_space<vmem>>, vector<1x1x128xf32>
    %4 = vector.shape_cast %3 : vector<1x1x128xf32> to vector<1x128xf32>
    %c0_4 = arith.constant 0 : index
    %c0_5 = arith.constant 0 : index
    %c0_6 = arith.constant 0 : index
    %5 = vector.load %arg4[%c0_4, %c0_5, %c0_6] : memref<1x128x1xf32, #tpu.memory_space<vmem>>, vector<1x128x1xf32>
    %6 = vector.shape_cast %5 : vector<1x128x1xf32> to vector<128x1xf32>
    %c0_7 = arith.constant 0 : index
    %c0_8 = arith.constant 0 : index
    %7 = vector.load %arg6[%c0_7, %c0_8] : memref<128x128xi8, #tpu.memory_space<vmem>>, vector<128x128xi8>
    %8 = vector.broadcast %6 : vector<128x1xf32> to vector<128x128xf32>
    %9 = vector.broadcast %4 : vector<1x128xf32> to vector<128x128xf32>
    %10 = arith.addf %8, %9 : vector<128x128xf32>
    %cst = arith.constant 0.000000e+00 : f32
    %11 = vector.broadcast %cst : f32 to vector<128x128xf32>
    %12 = arith.cmpf ogt, %10, %11 : vector<128x128xf32>
    %cst_9 = arith.constant 2.000000e-01 : f32
    %13 = vector.broadcast %cst_9 : f32 to vector<128x128xf32>
    %14 = arith.mulf %13, %10 : vector<128x128xf32>
    %15 = arith.select %12, %10, %14 : vector<128x128xi1>, vector<128x128xf32>
    %c0_i8 = arith.constant 0 : i8
    %16 = vector.broadcast %c0_i8 : i8 to vector<128x128xi8>
    %17 = arith.cmpi ne, %7, %16 : vector<128x128xi8>
    %cst_10 = arith.constant -1.000000e+30 : f32
    %18 = vector.broadcast %cst_10 : f32 to vector<128x128xf32>
    %19 = arith.select %17, %15, %18 : vector<128x128xi1>, vector<128x128xf32>
    %cst_11 = arith.constant dense<0xFF800000> : vector<128xf32>
    %20 = vector.multi_reduction <maximumf>, %19, %cst_11 [1] : vector<128x128xf32> to vector<128xf32>
    %21 = vector.shape_cast %20 : vector<128xf32> to vector<128x1xf32>
    %22 = vector.broadcast %21 : vector<128x1xf32> to vector<128x128xf32>
    %23 = arith.subf %19, %22 : vector<128x128xf32>
    %24 = math.exp %23 : vector<128x128xf32>
    %cst_12 = arith.constant dense<0.000000e+00> : vector<128xf32>
    %25 = vector.multi_reduction <add>, %24, %cst_12 [1] : vector<128x128xf32> to vector<128xf32>
    %26 = vector.shape_cast %25 : vector<128xf32> to vector<128x1xf32>
    %27 = math.log %26 : vector<128x1xf32>
    %28 = arith.addf %21, %27 : vector<128x1xf32>
    %c0_13 = arith.constant 0 : index
    %c0_14 = arith.constant 0 : index
    %c0_15 = arith.constant 0 : index
    %29 = vector.load %arg8[%c0_13, %c0_14, %c0_15] : memref<1x128x1xf32, #tpu.memory_space<vmem>>, vector<1x128x1xf32>
    %30 = vector.shape_cast %29 : vector<1x128x1xf32> to vector<128x1xf32>
    %31 = vector.shape_cast %28 : vector<128x1xf32> to vector<1x128x1xf32>
    tpu.vector_store %arg8[%c0_13, %c0_14, %c0_15], %31 {strides = array<i32>} : memref<1x128x1xf32, #tpu.memory_space<vmem>>, vector<1x128x1xf32>,
    %cst_16 = arith.constant dense<0.000000e+00> : vector<128x8xf32>
    %32 = tpu.matmul %24, %2, %cst_16 {dimension_numbers = #tpu.dot_dimension_numbers<[1], [0], [0], [1], [0, 0, 1, 1], [], []>} : vector<128x128xf32>, vector<128x8xf32>, vector<128x8xf32> -> vector<128x8xf32>
    %33 = vector.broadcast %26 : vector<128x1xf32> to vector<128x8xf32>
    %34 = arith.divf %32, %33 : vector<128x8xf32>
    %c0_i32 = arith.constant 0 : i32
    %35 = arith.cmpi eq, %arg1, %c0_i32 : i32
    %36 = arith.extui %35 : i1 to i32
    %c0_i32_17 = arith.constant 0 : i32
    %37 = arith.cmpi ne, %36, %c0_i32_17 : i32
    scf.if %37 {
      %cst_23 = arith.constant 0.000000e+00 : f32
      %44 = vector.broadcast %cst_23 : f32 to vector<128x8xf32>
      %c0_24 = arith.constant 0 : index
      %c0_25 = arith.constant 0 : index
      %45 = vector.load %arg7[%c0_24, %c0_25] : memref<128x8xf32, #tpu.memory_space<vmem>>, vector<128x8xf32>
      tpu.vector_store %arg7[%c0_24, %c0_25], %44 {strides = array<i32>} : memref<128x8xf32, #tpu.memory_space<vmem>>, vector<128x8xf32>,
    } else {
    }
    %c0_18 = arith.constant 0 : index
    %c0_19 = arith.constant 0 : index
    %38 = vector.load %arg7[%c0_18, %c0_19] : memref<128x8xf32, #tpu.memory_space<vmem>>, vector<128x8xf32>
    %39 = arith.addf %38, %34 : vector<128x8xf32>
    %c0_20 = arith.constant 0 : index
    %c0_21 = arith.constant 0 : index
    %40 = vector.load %arg7[%c0_20, %c0_21] : memref<128x8xf32, #tpu.memory_space<vmem>>, vector<128x8xf32>
    tpu.vector_store %arg7[%c0_20, %c0_21], %39 {strides = array<i32>} : memref<128x8xf32, #tpu.memory_space<vmem>>, vector<128x8xf32>,
    %c3_i32 = arith.constant 3 : i32
    %41 = arith.cmpi eq, %arg1, %c3_i32 : i32
    %42 = arith.extui %41 : i1 to i32
    %c0_i32_22 = arith.constant 0 : i32
    %43 = arith.cmpi ne, %42, %c0_i32_22 : i32
    scf.if %43 {
      %c0_23 = arith.constant 0 : index
      %c0_24 = arith.constant 0 : index
      %44 = vector.load %arg7[%c0_23, %c0_24] : memref<128x8xf32, #tpu.memory_space<vmem>>, vector<128x8xf32>
      %cst_25 = arith.constant 2.500000e-01 : f32
      %45 = vector.broadcast %cst_25 : f32 to vector<128x8xf32>
      %46 = arith.mulf %44, %45 : vector<128x8xf32>
      %c0_26 = arith.constant 0 : index
      %c0_27 = arith.constant 0 : index
      %c0_28 = arith.constant 0 : index
      %47 = vector.load %arg5[%c0_26, %c0_27, %c0_28] : memref<1x1x8xf32, #tpu.memory_space<vmem>>, vector<1x1x8xf32>
      %48 = vector.shape_cast %47 : vector<1x1x8xf32> to vector<1x8xf32>
      %49 = vector.broadcast %48 : vector<1x8xf32> to vector<128x8xf32>
      %50 = arith.addf %46, %49 : vector<128x8xf32>
      %c0_29 = arith.constant 0 : index
      %c0_30 = arith.constant 0 : index
      %51 = vector.load %arg7[%c0_29, %c0_30] : memref<128x8xf32, #tpu.memory_space<vmem>>, vector<128x8xf32>
      tpu.vector_store %arg7[%c0_29, %c0_30], %50 {strides = array<i32>} : memref<128x8xf32, #tpu.memory_space<vmem>>, vector<128x8xf32>,
    } else {
    }
    return
  }
  func.func @transform_0(%arg0: i32, %arg1: i32) -> (i32, i32, i32) {
    %c0_i32 = arith.constant 0 : i32
    %c0_i32_0 = arith.constant 0 : i32
    %c0_i32_1 = arith.constant 0 : i32
    %c0_i32_2 = arith.constant 0 : i32
    return %c0_i32, %c0_i32_0, %c0_i32_1 : i32, i32, i32
  }
  func.func @transform_1(%arg0: i32, %arg1: i32) -> (i32, i32, i32) {
    %c0_i32 = arith.constant 0 : i32
    %c0_i32_0 = arith.constant 0 : i32
    %c0_i32_1 = arith.constant 0 : i32
    return %arg1, %c0_i32, %c0_i32_0 : i32, i32, i32
  }
  func.func @transform_2(%arg0: i32, %arg1: i32) -> (i32, i32, i32) {
    %c0_i32 = arith.constant 0 : i32
    %c0_i32_0 = arith.constant 0 : i32
    return %arg1, %arg0, %c0_i32 : i32, i32, i32
  }
  func.func @transform_3(%arg0: i32, %arg1: i32) -> (i32, i32, i32) {
    %c0_i32 = arith.constant 0 : i32
    %c0_i32_0 = arith.constant 0 : i32
    %c0_i32_1 = arith.constant 0 : i32
    %c0_i32_2 = arith.constant 0 : i32
    return %c0_i32, %c0_i32_0, %c0_i32_1 : i32, i32, i32
  }
  func.func @transform_4(%arg0: i32, %arg1: i32) -> (i32, i32) {
    %c0_i32 = arith.constant 0 : i32
    %c0_i32_0 = arith.constant 0 : i32
    return %arg0, %c0_i32 : i32, i32
  }
  func.func @transform_5(%arg0: i32, %arg1: i32) -> (i32, i32) {
    %c0_i32 = arith.constant 0 : i32
    %c0_i32_0 = arith.constant 0 : i32
    return %arg0, %c0_i32 : i32, i32
  }
  func.func @transform_6(%arg0: i32, %arg1: i32) -> (i32, i32, i32) {
    %c0_i32 = arith.constant 0 : i32
    %c0_i32_0 = arith.constant 0 : i32
    return %arg1, %arg0, %c0_i32 : i32, i32, i32
  }
}

</mosaic_0001>

<llo_original>
// kernel: graph_transformer_teacher.4
$region0: #{graph_transformer_teacher.4}
  #allocation0 [shape = 'u32[]', space=smem, size = 0x4, offset = 0x4, fixed_abs, tag = 'smem constant byte address 0x4 - core index']
  #allocation1 [shape = 'u32[144,128]{1,0:T(1,128)}', space=vmem, size = 0x12000, scoped, tag = 'internal scratch']
  %s0 = inlined_call_operand.vmem [shape: f32[1,128,8], index: 0, kind: input, shape index: {}]
  %s1 = inlined_call_operand.vmem [shape: f32[1,8,32], index: 1, kind: input, shape index: {}]
  %s2 = inlined_call_operand.vmem [shape: f32[32,4], index: 2, kind: input, shape index: {}]
  %s3 = inlined_call_operand.vmem [shape: f32[32,4], index: 3, kind: input, shape index: {}]
  %s4 = inlined_call_operand.vmem [shape: f32[4,128,8], index: 4, kind: output, shape index: {0}]
  %s5 = inlined_call_operand.vmem [shape: f32[128,4], index: 5, kind: output, shape index: {1}]
  %s6 = inlined_call_operand.vmem [shape: f32[128,4], index: 6, kind: output, shape index: {2}]
  %7 = xla_tuple %s4, %s5, %s6
  %s8 = sld [smem:[#allocation0]]
  $region42: #{graph_transformer_teacher.4} parent=0
    _
  %s10 = ssub.s32 1, %s8
  %s11 = scalar_select 0, %s10, %s8
  // Predicated region
  $region2: #{graph_transformer_teacher.4} parent=0 // pred_check
    _
  $region3: #{graph_transformer_teacher.4} parent=0 // pred_check_branch
    %13 = sbr.rel (0) target = $region5
  $region4: #{graph_transformer_teacher.4} parent=0 // pred_region
    _
  $region5: #{graph_transformer_teacher.4} parent=0 // pred_fallthru
    _
  // Predicated region
  $region6: #{graph_transformer_teacher.4} parent=0 // pred_check
    _
  $region7: #{graph_transformer_teacher.4} parent=0 // pred_check_branch
    %15 = sbr.rel (0) target = $region9
  $region8: #{graph_transformer_teacher.4} parent=0 // pred_region
    _
  $region9: #{graph_transformer_teacher.4} parent=0 // pred_fallthru
    _
  // Predicated region
  $region10: #{graph_transformer_teacher.4} parent=0 // pred_check
    _
  $region11: #{graph_transformer_teacher.4} parent=0 // pred_check_branch
    %17 = sbr.rel (0) target = $region13
  $region12: #{graph_transformer_teacher.4} parent=0 // pred_region
    _
  $region13: #{graph_transformer_teacher.4} parent=0 // pred_fallthru
    _
  // Predicated region
  $region14: #{graph_transformer_teacher.4} parent=0 // pred_check
    _
  $region15: #{graph_transformer_teacher.4} parent=0 // pred_check_branch
    %19 = sbr.rel (0) target = $region17
  $region16: #{graph_transformer_teacher.4} parent=0 // pred_region
    _
  $region17: #{graph_transformer_teacher.4} parent=0 // pred_fallthru
    _
  %v20 = vld [vmem:[%s0] sm:$0xff]
  %v21 = vld [vmem:[%s0 + $0x8] sm:$0xff]
  %v22 = vld [vmem:[%s0 + $0x10] sm:$0xff]
  %v23 = vld [vmem:[%s0 + $0x18] sm:$0xff]
  %v24 = vld [vmem:[%s0 + $0x20] sm:$0xff]
  %v25 = vld [vmem:[%s0 + $0x28] sm:$0xff]
  %v26 = vld [vmem:[%s0 + $0x30] sm:$0xff]
  %v27 = vld [vmem:[%s0 + $0x38] sm:$0xff]
  %v28 = vld [vmem:[%s0 + $0x40] sm:$0xff]
  %v29 = vld [vmem:[%s0 + $0x48] sm:$0xff]
  %v30 = vld [vmem:[%s0 + $0x50] sm:$0xff]
  %v31 = vld [vmem:[%s0 + $0x58] sm:$0xff]
  %v32 = vld [vmem:[%s0 + $0x60] sm:$0xff]
  %v33 = vld [vmem:[%s0 + $0x68] sm:$0xff]
  %v34 = vld [vmem:[%s0 + $0x70] sm:$0xff]
  %v35 = vld [vmem:[%s0 + $0x78] sm:$0xff]
  %v36 = vld [vmem:[%s1] sm:$0xff]
  %vm37 = vcmask 64512
  %v39 = vsel %vm37, %v20, 0
  %v42 = vsel %vm37, %v21, 0
  %v45 = vsel %vm37, %v22, 0
  %v48 = vsel %vm37, %v23, 0
  %v51 = vsel %vm37, %v24, 0
  %v54 = vsel %vm37, %v25, 0
  %v57 = vsel %vm37, %v26, 0
  %v60 = vsel %vm37, %v27, 0
  %v63 = vsel %vm37, %v28, 0
  %v66 = vsel %vm37, %v29, 0
  %v69 = vsel %vm37, %v30, 0
  %v72 = vsel %vm37, %v31, 0
  %v75 = vsel %vm37, %v32, 0
  %v78 = vsel %vm37, %v33, 0
  %v81 = vsel %vm37, %v34, 0
  %v84 = vsel %vm37, %v35, 0
  %86 = vmatprep.subr.mxu0 0.0
  %87 = vmatpush1.msra.mxu0 0.0
  %88 = vmatprep.subr.mxu0 0.0
  %89 = vmatpush1.msra.mxu0 0.0
  %90 = vmatprep.subr.mxu0 0.0
  %91 = vmatpush1.msra.mxu0 0.0
  %92 = vmatprep.subr.mxu0 0.0
  %93 = vmatpush1.msra.mxu0 0.0
  %94 = vmatprep.subr.mxu0 0.0
  %95 = vmatpush1.msra.mxu0 0.0
  %96 = vmatprep.subr.mxu0 0.0
  %97 = vmatpush1.msra.mxu0 0.0
  %98 = vmatprep.subr.mxu0 0.0
  %99 = vmatpush1.msra.mxu0 0.0
  %100 = vmatprep.subr.mxu0 0.0
  %101 = vmatpush1.msra.mxu0 0.0
  %102 = vmatprep.subr.mxu0 0.0
  %103 = vmatpush1.msra.mxu0 0.0
  %104 = vmatprep.subr.mxu0 0.0
  %105 = vmatpush1.msra.mxu0 0.0
  %106 = vmatprep.subr.mxu0 0.0
  %107 = vmatpush1.msra.mxu0 0.0
  %108 = vmatprep.subr.mxu0 0.0
  %109 = vmatpush1.msra.mxu0 0.0
  %110 = vmatprep.subr.mxu0 0.0
  %111 = vmatpush1.msra.mxu0 0.0
  %112 = vmatprep.subr.mxu0 0.0
  %113 = vmatpush1.msra.mxu0 0.0
  %114 = vmatprep.subr.mxu0 0.0
  %115 = vmatpush1.msra.mxu0 0.0
  %116 = vmatprep.subr.mxu0 0.0
  %117 = vmatpush1.msra.mxu0 %v36
  %118 = vmatprep.subr.mxu0 0.0
  %119 = vmatpush2.msra.mxu0 0.0
  %120 = vmatprep.subr.mxu0 0.0
  %121 = vmatpush2.msra.mxu0 0.0
  %122 = vmatprep.subr.mxu0 0.0
  %123 = vmatpush2.msra.mxu0 0.0
  %124 = vmatprep.subr.mxu0 0.0
  %125 = vmatpush2.msra.mxu0 0.0
  %126 = vmatprep.subr.mxu0 0.0
  %127 = vmatpush2.msra.mxu0 0.0
  %128 = vmatprep.subr.mxu0 0.0
  %129 = vmatpush2.msra.mxu0 0.0
  %130 = vmatprep.subr.mxu0 0.0
  %131 = vmatpush2.msra.mxu0 0.0
  %132 = vmatprep.subr.mxu0 0.0
  %133 = vmatpush2.msra.mxu0 0.0
  %134 = vmatprep.subr.mxu0 0.0
  %135 = vmatpush2.msra.mxu0 0.0
  %136 = vmatprep.subr.mxu0 0.0
  %137 = vmatpush2.msra.mxu0 0.0
  %138 = vmatprep.subr.mxu0 0.0
  %139 = vmatpush2.msra.mxu0 0.0
  %140 = vmatprep.subr.mxu0 0.0
  %141 = vmatpush2.msra.mxu0 0.0
  %142 = vmatprep.subr.mxu0 0.0
  %143 = vmatpush2.msra.mxu0 0.0
  %144 = vmatprep.subr.mxu0 0.0
  %145 = vmatpush2.msra.mxu0 0.0
  %146 = vmatprep.subr.mxu0 0.0
  %147 = vmatpush2.msra.mxu0 0.0
  %148 = vmatprep.subr.mxu0 0.0
  %149 = vmatpush2.msra.mxu0 0.0
  %150 = vmatprep.mubr.f32.mxu0 0.0
  %151 = vmatmul.mubr.f32.gmra.mxu0 %v39
  %v152 = vpop.f32.mrf.mxu0
  %v153 = vadd.f32 0.0, %v152
  %v154 = vpop.f32.mrf.mxu0
  %155 = vmatprep.mubr.f32.mxu0 0.0
  %156 = vmatmul.mubr.f32.gmra.mxu0 %v42
  %v157 = vpop.f32.mrf.mxu0
  %v158 = vadd.f32 0.0, %v157
  %v159 = vpop.f32.mrf.mxu0
  %160 = vmatprep.mubr.f32.mxu0 0.0
  %161 = vmatmul.mubr.f32.gmra.mxu0 %v45
  %v162 = vpop.f32.mrf.mxu0
  %v163 = vadd.f32 0.0, %v162
  %v164 = vpop.f32.mrf.mxu0
  %165 = vmatprep.mubr.f32.mxu0 0.0
  %166 = vmatmul.mubr.f32.gmra.mxu0 %v48
  %v167 = vpop.f32.mrf.mxu0
  %v168 = vadd.f32 0.0, %v167
  %v169 = vpop.f32.mrf.mxu0
  %170 = vmatprep.mubr.f32.mxu0 0.0
  %171 = vmatmul.mubr.f32.gmra.mxu0 %v51
  %v172 = vpop.f32.mrf.mxu0
  %v173 = vadd.f32 0.0, %v172
  %v174 = vpop.f32.mrf.mxu0
  %175 = vmatprep.mubr.f32.mxu0 0.0
  %176 = vmatmul.mubr.f32.gmra.mxu0 %v54
  %v177 = vpop.f32.mrf.mxu0
  %v178 = vadd.f32 0.0, %v177
  %v179 = vpop.f32.mrf.mxu0
  %180 = vmatprep.mubr.f32.mxu0 0.0
  %181 = vmatmul.mubr.f32.gmra.mxu0 %v57
  %v182 = vpop.f32.mrf.mxu0
  %v183 = vadd.f32 0.0, %v182
  %v184 = vpop.f32.mrf.mxu0
  %185 = vmatprep.mubr.f32.mxu0 0.0
  %186 = vmatmul.mubr.f32.gmra.mxu0 %v60
  %v187 = vpop.f32.mrf.mxu0
  %v188 = vadd.f32 0.0, %v187
  %v189 = vpop.f32.mrf.mxu0
  %190 = vmatprep.mubr.f32.mxu0 0.0
  %191 = vmatmul.mubr.f32.gmra.mxu0 %v63
  %v192 = vpop.f32.mrf.mxu0
  %v193 = vadd.f32 0.0, %v192
  %v194 = vpop.f32.mrf.mxu0
  %195 = vmatprep.mubr.f32.mxu0 0.0
  %196 = vmatmul.mubr.f32.gmra.mxu0 %v66
  %v197 = vpop.f32.mrf.mxu0
  %v198 = vadd.f32 0.0, %v197
  %v199 = vpop.f32.mrf.mxu0
  %200 = vmatprep.mubr.f32.mxu0 0.0
  %201 = vmatmul.mubr.f32.gmra.mxu0 %v69
  %v202 = vpop.f32.mrf.mxu0
  %v203 = vadd.f32 0.0, %v202
  %v204 = vpop.f32.mrf.mxu0
  %205 = vmatprep.mubr.f32.mxu0 0.0
  %206 = vmatmul.mubr.f32.gmra.mxu0 %v72
  %v207 = vpop.f32.mrf.mxu0
  %v208 = vadd.f32 0.0, %v207
  %v209 = vpop.f32.mrf.mxu0
  %210 = vmatprep.mubr.f32.mxu0 0.0
  %211 = vmatmul.mubr.f32.gmra.mxu0 %v75
  %v212 = vpop.f32.mrf.mxu0
  %v213 = vadd.f32 0.0, %v212
  %v214 = vpop.f32.mrf.mxu0
  %215 = vmatprep.mubr.f32.mxu0 0.0
  %216 = vmatmul.mubr.f32.gmra.mxu0 %v78
  %v217 = vpop.f32.mrf.mxu0
  %v218 = vadd.f32 0.0, %v217
  %v219 = vpop.f32.mrf.mxu0
  %220 = vmatprep.mubr.f32.mxu0 0.0
  %221 = vmatmul.mubr.f32.gmra.mxu0 %v81
  %v222 = vpop.f32.mrf.mxu0
  %v223 = vadd.f32 0.0, %v222
  %v224 = vpop.f32.mrf.mxu0
  %225 = vmatprep.mubr.f32.mxu0 0.0
  %226 = vmatmul.mubr.f32.gmra.mxu0 %v84
  %v227 = vpop.f32.mrf.mxu0
  %v228 = vadd.f32 0.0, %v227
  %v229 = vpop.f32.mrf.mxu0
  %230 = vdwg.mxu0
  %v231 = vld [vmem:[%s2] sm:$0xff]
  %v232 = vld [vmem:[%s2 + $0x8] sm:$0xff]
  %v233 = vld [vmem:[%s2 + $0x10] sm:$0xff]
  %v234 = vld [vmem:[%s2 + $0x18] sm:$0xff]
  %vm235 = vcmask 261120
  %v237 = vsel %vm235, %v153, 0
  %v240 = vsel %vm235, %v158, 0
  %v243 = vsel %vm235, %v163, 0
  %v246 = vsel %vm235, %v168, 0
  %v249 = vsel %vm235, %v173, 0
  %v252 = vsel %vm235, %v178, 0
  %v255 = vsel %vm235, %v183, 0
  %v258 = vsel %vm235, %v188, 0
  %v261 = vsel %vm235, %v193, 0
  %v264 = vsel %vm235, %v198, 0
  %v267 = vsel %vm235, %v203, 0
  %v270 = vsel %vm235, %v208, 0
  %v273 = vsel %vm235, %v213, 0
  %v276 = vsel %vm235, %v218, 0
  %v279 = vsel %vm235, %v223, 0
  %v282 = vsel %vm235, %v228, 0
  %284 = vmatprep.subr.mxu0 0.0
  %285 = vmatpush1.msra.mxu0 0.0
  %286 = vmatprep.subr.mxu0 0.0
  %287 = vmatpush1.msra.mxu0 0.0
  %288 = vmatprep.subr.mxu0 0.0
  %289 = vmatpush1.msra.mxu0 0.0
  %290 = vmatprep.subr.mxu0 0.0
  %291 = vmatpush1.msra.mxu0 0.0
  %292 = vmatprep.subr.mxu0 0.0
  %293 = vmatpush1.msra.mxu0 0.0
  %294 = vmatprep.subr.mxu0 0.0
  %295 = vmatpush1.msra.mxu0 0.0
  %296 = vmatprep.subr.mxu0 0.0
  %297 = vmatpush1.msra.mxu0 0.0
  %298 = vmatprep.subr.mxu0 0.0
  %299 = vmatpush1.msra.mxu0 0.0
  %300 = vmatprep.subr.mxu0 0.0
  %301 = vmatpush1.msra.mxu0 0.0
  %302 = vmatprep.subr.mxu0 0.0
  %303 = vmatpush1.msra.mxu0 0.0
  %304 = vmatprep.subr.mxu0 0.0
  %305 = vmatpush1.msra.mxu0 0.0
  %306 = vmatprep.subr.mxu0 0.0
  %307 = vmatpush1.msra.mxu0 0.0
  %308 = vmatprep.subr.mxu0 0.0
  %309 = vmatpush1.msra.mxu0 %v234
  %310 = vmatprep.subr.mxu0 0.0
  %311 = vmatpush1.msra.mxu0 %v233
  %312 = vmatprep.subr.mxu0 0.0
  %313 = vmatpush1.msra.mxu0 %v232
  %314 = vmatprep.subr.mxu0 0.0
  %315 = vmatpush1.msra.mxu0 %v231
  %316 = vmatprep.subr.mxu0 0.0
  %317 = vmatpush2.msra.mxu0 0.0
  %318 = vmatprep.subr.mxu0 0.0
  %319 = vmatpush2.msra.mxu0 0.0
  %320 = vmatprep.subr.mxu0 0.0
  %321 = vmatpush2.msra.mxu0 0.0
  %322 = vmatprep.subr.mxu0 0.0
  %323 = vmatpush2.msra.mxu0 0.0
  %324 = vmatprep.subr.mxu0 0.0
  %325 = vmatpush2.msra.mxu0 0.0
  %326 = vmatprep.subr.mxu0 0.0
  %327 = vmatpush2.msra.mxu0 0.0
  %328 = vmatprep.subr.mxu0 0.0
  %329 = vmatpush2.msra.mxu0 0.0
  %330 = vmatprep.subr.mxu0 0.0
  %331 = vmatpush2.msra.mxu0 0.0
  %332 = vmatprep.subr.mxu0 0.0
  %333 = vmatpush2.msra.mxu0 0.0
  %334 = vmatprep.subr.mxu0 0.0
  %335 = vmatpush2.msra.mxu0 0.0
  %336 = vmatprep.subr.mxu0 0.0
  %337 = vmatpush2.msra.mxu0 0.0
  %338 = vmatprep.subr.mxu0 0.0
  %339 = vmatpush2.msra.mxu0 0.0
  %340 = vmatprep.subr.mxu0 0.0
  %341 = vmatpush2.msra.mxu0 0.0
  %342 = vmatprep.subr.mxu0 0.0
  %343 = vmatpush2.msra.mxu0 0.0
  %344 = vmatprep.subr.mxu0 0.0
  %345 = vmatpush2.msra.mxu0 0.0
  %346 = vmatprep.subr.mxu0 0.0
  %347 = vmatpush2.msra.mxu0 0.0
  %348 = vmatprep.mubr.f32.mxu0 0.0
  %349 = vmatmul.mubr.f32.gmra.mxu0 %v237
  %v350 = vpop.f32.mrf.mxu0
  %v351 = vadd.f32 0.0, %v350
  %v352 = vpop.f32.mrf.mxu0
  %353 = vmatprep.mubr.f32.mxu0 0.0
  %354 = vmatmul.mubr.f32.gmra.mxu0 %v240
  %v355 = vpop.f32.mrf.mxu0
  %v356 = vadd.f32 0.0, %v355
  %v357 = vpop.f32.mrf.mxu0
  %358 = vmatprep.mubr.f32.mxu0 0.0
  %359 = vmatmul.mubr.f32.gmra.mxu0 %v243
  %v360 = vpop.f32.mrf.mxu0
  %v361 = vadd.f32 0.0, %v360
  %v362 = vpop.f32.mrf.mxu0
  %363 = vmatprep.mubr.f32.mxu0 0.0
  %364 = vmatmul.mubr.f32.gmra.mxu0 %v246
  %v365 = vpop.f32.mrf.mxu0
  %v366 = vadd.f32 0.0, %v365
  %v367 = vpop.f32.mrf.mxu0
  %368 = vmatprep.mubr.f32.mxu0 0.0
  %369 = vmatmul.mubr.f32.gmra.mxu0 %v249
  %v370 = vpop.f32.mrf.mxu0
  %v371 = vadd.f32 0.0, %v370
  %v372 = vpop.f32.mrf.mxu0
  %373 = vmatprep.mubr.f32.mxu0 0.0
  %374 = vmatmul.mubr.f32.gmra.mxu0 %v252
  %v375 = vpop.f32.mrf.mxu0
  %v376 = vadd.f32 0.0, %v375
  %v377 = vpop.f32.mrf.mxu0
  %378 = vmatprep.mubr.f32.mxu0 0.0
  %379 = vmatmul.mubr.f32.gmra.mxu0 %v255
  %v380 = vpop.f32.mrf.mxu0
  %v381 = vadd.f32 0.0, %v380
  %v382 = vpop.f32.mrf.mxu0
  %383 = vmatprep.mubr.f32.mxu0 0.0
  %384 = vmatmul.mubr.f32.gmra.mxu0 %v258
  %v385 = vpop.f32.mrf.mxu0
  %v386 = vadd.f32 0.0, %v385
  %v387 = vpop.f32.mrf.mxu0
  %388 = vmatprep.mubr.f32.mxu0 0.0
  %389 = vmatmul.mubr.f32.gmra.mxu0 %v261
  %v390 = vpop.f32.mrf.mxu0
  %v391 = vadd.f32 0.0, %v390
  %v392 = vpop.f32.mrf.mxu0
  %393 = vmatprep.mubr.f32.mxu0 0.0
  %394 = vmatmul.mubr.f32.gmra.mxu0 %v264
  %v395 = vpop.f32.mrf.mxu0
  %v396 = vadd.f32 0.0, %v395
  %v397 = vpop.f32.mrf.mxu0
  %398 = vmatprep.mubr.f32.mxu0 0.0
  %399 = vmatmul.mubr.f32.gmra.mxu0 %v267
  %v400 = vpop.f32.mrf.mxu0
  %v401 = vadd.f32 0.0, %v400
  %v402 = vpop.f32.mrf.mxu0
  %403 = vmatprep.mubr.f32.mxu0 0.0
  %404 = vmatmul.mubr.f32.gmra.mxu0 %v270
  %v405 = vpop.f32.mrf.mxu0
  %v406 = vadd.f32 0.0, %v405
  %v407 = vpop.f32.mrf.mxu0
  %408 = vmatprep.mubr.f32.mxu0 0.0
  %409 = vmatmul.mubr.f32.gmra.mxu0 %v273
  %v410 = vpop.f32.mrf.mxu0
  %v411 = vadd.f32 0.0, %v410
  %v412 = vpop.f32.mrf.mxu0
  %413 = vmatprep.mubr.f32.mxu0 0.0
  %414 = vmatmul.mubr.f32.gmra.mxu0 %v276
  %v415 = vpop.f32.mrf.mxu0
  %v416 = vadd.f32 0.0, %v415
  %v417 = vpop.f32.mrf.mxu0
  %418 = vmatprep.mubr.f32.mxu0 0.0
  %419 = vmatmul.mubr.f32.gmra.mxu0 %v279
  %v420 = vpop.f32.mrf.mxu0
  %v421 = vadd.f32 0.0, %v420
  %v422 = vpop.f32.mrf.mxu0
  %423 = vmatprep.mubr.f32.mxu0 0.0
  %424 = vmatmul.mubr.f32.gmra.mxu0 %v282
  %v425 = vpop.f32.mrf.mxu0
  %v426 = vadd.f32 0.0, %v425
  %v427 = vpop.f32.mrf.mxu0
  %428 = vdwg.mxu0
  %vm429 = vcmask 31744
  %430 = vst.msk [vmem:[%s5] sm:$0xff] %vm429, %v351
  %431 = vst.msk [vmem:[%s5 + $0x8] sm:$0xff] %vm429, %v356
  %432 = vst.msk [vmem:[%s5 + $0x10] sm:$0xff] %vm429, %v361
  %433 = vst.msk [vmem:[%s5 + $0x18] sm:$0xff] %vm429, %v366
  %434 = vst.msk [vmem:[%s5 + $0x20] sm:$0xff] %vm429, %v371
  %435 = vst.msk [vmem:[%s5 + $0x28] sm:$0xff] %vm429, %v376
  %436 = vst.msk [vmem:[%s5 + $0x30] sm:$0xff] %vm429, %v381
  %437 = vst.msk [vmem:[%s5 + $0x38] sm:$0xff] %vm429, %v386
  %438 = vst.msk [vmem:[%s5 + $0x40] sm:$0xff] %vm429, %v391
  %439 = vst.msk [vmem:[%s5 + $0x48] sm:$0xff] %vm429, %v396
  %440 = vst.msk [vmem:[%s5 + $0x50] sm:$0xff] %vm429, %v401
  %441 = vst.msk [vmem:[%s5 + $0x58] sm:$0xff] %vm429, %v406
  %442 = vst.msk [vmem:[%s5 + $0x60] sm:$0xff] %vm429, %v411
  %443 = vst.msk [vmem:[%s5 + $0x68] sm:$0xff] %vm429, %v416
  %444 = vst.msk [vmem:[%s5 + $0x70] sm:$0xff] %vm429, %v421
  %445 = vst.msk [vmem:[%s5 + $0x78] sm:$0xff] %vm429, %v426
  %v446 = vld [vmem:[%s3] sm:$0xff]
  %v447 = vld [vmem:[%s3 + $0x8] sm:$0xff]
  %v448 = vld [vmem:[%s3 + $0x10] sm:$0xff]
  %v449 = vld [vmem:[%s3 + $0x18] sm:$0xff]
  %450 = vmatprep.subr.mxu0 0.0
  %451 = vmatpush1.msra.mxu0 0.0
  %452 = vmatprep.subr.mxu0 0.0
  %453 = vmatpush1.msra.mxu0 0.0
  %454 = vmatprep.subr.mxu0 0.0
  %455 = vmatpush1.msra.mxu0 0.0
  %456 = vmatprep.subr.mxu0 0.0
  %457 = vmatpush1.msra.mxu0 0.0
  %458 = vmatprep.subr.mxu0 0.0
  %459 = vmatpush1.msra.mxu0 0.0
  %460 = vmatprep.subr.mxu0 0.0
  %461 = vmatpush1.msra.mxu0 0.0
  %462 = vmatprep.subr.mxu0 0.0
  %463 = vmatpush1.msra.mxu0 0.0
  %464 = vmatprep.subr.mxu0 0.0
  %465 = vmatpush1.msra.mxu0 0.0
  %466 = vmatprep.subr.mxu0 0.0
  %467 = vmatpush1.msra.mxu0 0.0
  %468 = vmatprep.subr.mxu0 0.0
  %469 = vmatpush1.msra.mxu0 0.0
  %470 = vmatprep.subr.mxu0 0.0
  %471 = vmatpush1.msra.mxu0 0.0
  %472 = vmatprep.subr.mxu0 0.0
  %473 = vmatpush1.msra.mxu0 0.0
  %474 = vmatprep.subr.mxu0 0.0
  %475 = vmatpush1.msra.mxu0 %v449
  %476 = vmatprep.subr.mxu0 0.0
  %477 = vmatpush1.msra.mxu0 %v448
  %478 = vmatprep.subr.mxu0 0.0
  %479 = vmatpush1.msra.mxu0 %v447
  %480 = vmatprep.subr.mxu0 0.0
  %481 = vmatpush1.msra.mxu0 %v446
  %482 = vmatprep.subr.mxu0 0.0
  %483 = vmatpush2.msra.mxu0 0.0
  %484 = vmatprep.subr.mxu0 0.0
  %485 = vmatpush2.msra.mxu0 0.0
  %486 = vmatprep.subr.mxu0 0.0
  %487 = vmatpush2.msra.mxu0 0.0
  %488 = vmatprep.subr.mxu0 0.0
  %489 = vmatpush2.msra.mxu0 0.0
  %490 = vmatprep.subr.mxu0 0.0
  %491 = vmatpush2.msra.mxu0 0.0
  %492 = vmatprep.subr.mxu0 0.0
  %493 = vmatpush2.msra.mxu0 0.0
  %494 = vmatprep.subr.mxu0 0.0
  %495 = vmatpush2.msra.mxu0 0.0
  %496 = vmatprep.subr.mxu0 0.0
  %497 = vmatpush2.msra.mxu0 0.0
  %498 = vmatprep.subr.mxu0 0.0
  %499 = vmatpush2.msra.mxu0 0.0
  %500 = vmatprep.subr.mxu0 0.0
  %501 = vmatpush2.msra.mxu0 0.0
  %502 = vmatprep.subr.mxu0 0.0
  %503 = vmatpush2.msra.mxu0 0.0
  %504 = vmatprep.subr.mxu0 0.0
  %505 = vmatpush2.msra.mxu0 0.0
  %506 = vmatprep.subr.mxu0 0.0
  %507 = vmatpush2.msra.mxu0 0.0
  %508 = vmatprep.subr.mxu0 0.0
  %509 = vmatpush2.msra.mxu0 0.0
  %510 = vmatprep.subr.mxu0 0.0
  %511 = vmatpush2.msra.mxu0 0.0
  %512 = vmatprep.subr.mxu0 0.0
  %513 = vmatpush2.msra.mxu0 0.0
  %514 = vmatprep.mubr.f32.mxu0 0.0
  %515 = vmatmul.mubr.f32.gmra.mxu0 %v237
  %v516 = vpop.f32.mrf.mxu0
  %v517 = vadd.f32 0.0, %v516
  %v518 = vpop.f32.mrf.mxu0
  %519 = vmatprep.mubr.f32.mxu0 0.0
  %520 = vmatmul.mubr.f32.gmra.mxu0 %v240
  %v521 = vpop.f32.mrf.mxu0
  %v522 = vadd.f32 0.0, %v521
  %v523 = vpop.f32.mrf.mxu0
  %524 = vmatprep.mubr.f32.mxu0 0.0
  %525 = vmatmul.mubr.f32.gmra.mxu0 %v243
  %v526 = vpop.f32.mrf.mxu0
  %v527 = vadd.f32 0.0, %v526
  %v528 = vpop.f32.mrf.mxu0
  %529 = vmatprep.mubr.f32.mxu0 0.0
  %530 = vmatmul.mubr.f32.gmra.mxu0 %v246
  %v531 = vpop.f32.mrf.mxu0
  %v532 = vadd.f32 0.0, %v531
  %v533 = vpop.f32.mrf.mxu0
  %534 = vmatprep.mubr.f32.mxu0 0.0
  %535 = vmatmul.mubr.f32.gmra.mxu0 %v249
  %v536 = vpop.f32.mrf.mxu0
  %v537 = vadd.f32 0.0, %v536
  %v538 = vpop.f32.mrf.mxu0
  %539 = vmatprep.mubr.f32.mxu0 0.0
  %540 = vmatmul.mubr.f32.gmra.mxu0 %v252
  %v541 = vpop.f32.mrf.mxu0
  %v542 = vadd.f32 0.0, %v541
  %v543 = vpop.f32.mrf.mxu0
  %544 = vmatprep.mubr.f32.mxu0 0.0
  %545 = vmatmul.mubr.f32.gmra.mxu0 %v255
  %v546 = vpop.f32.mrf.mxu0
  %v547 = vadd.f32 0.0, %v546
  %v548 = vpop.f32.mrf.mxu0
  %549 = vmatprep.mubr.f32.mxu0 0.0
  %550 = vmatmul.mubr.f32.gmra.mxu0 %v258
  %v551 = vpop.f32.mrf.mxu0
  %v552 = vadd.f32 0.0, %v551
  %v553 = vpop.f32.mrf.mxu0
  %554 = vmatprep.mubr.f32.mxu0 0.0
  %555 = vmatmul.mubr.f32.gmra.mxu0 %v261
  %v556 = vpop.f32.mrf.mxu0
  %v557 = vadd.f32 0.0, %v556
  %v558 = vpop.f32.mrf.mxu0
  %559 = vmatprep.mubr.f32.mxu0 0.0
  %560 = vmatmul.mubr.f32.gmra.mxu0 %v264
  %v561 = vpop.f32.mrf.mxu0
  %v562 = vadd.f32 0.0, %v561
  %v563 = vpop.f32.mrf.mxu0
  %564 = vmatprep.mubr.f32.mxu0 0.0
  %565 = vmatmul.mubr.f32.gmra.mxu0 %v267
  %v566 = vpop.f32.mrf.mxu0
  %v567 = vadd.f32 0.0, %v566
  %v568 = vpop.f32.mrf.mxu0
  %569 = vmatprep.mubr.f32.mxu0 0.0
  %570 = vmatmul.mubr.f32.gmra.mxu0 %v270
  %v571 = vpop.f32.mrf.mxu0
  %v572 = vadd.f32 0.0, %v571
  %v573 = vpop.f32.mrf.mxu0
  %574 = vmatprep.mubr.f32.mxu0 0.0
  %575 = vmatmul.mubr.f32.gmra.mxu0 %v273
  %v576 = vpop.f32.mrf.mxu0
  %v577 = vadd.f32 0.0, %v576
  %v578 = vpop.f32.mrf.mxu0
  %579 = vmatprep.mubr.f32.mxu0 0.0
  %580 = vmatmul.mubr.f32.gmra.mxu0 %v276
  %v581 = vpop.f32.mrf.mxu0
  %v582 = vadd.f32 0.0, %v581
  %v583 = vpop.f32.mrf.mxu0
  %584 = vmatprep.mubr.f32.mxu0 0.0
  %585 = vmatmul.mubr.f32.gmra.mxu0 %v279
  %v586 = vpop.f32.mrf.mxu0
  %v587 = vadd.f32 0.0, %v586
  %v588 = vpop.f32.mrf.mxu0
  %589 = vmatprep.mubr.f32.mxu0 0.0
  %590 = vmatmul.mubr.f32.gmra.mxu0 %v282
  %v591 = vpop.f32.mrf.mxu0
  %v592 = vadd.f32 0.0, %v591
  %v593 = vpop.f32.mrf.mxu0
  %594 = vdwg.mxu0
  %595 = vst.msk [vmem:[%s6] sm:$0xff] %vm429, %v517
  %596 = vst.msk [vmem:[%s6 + $0x8] sm:$0xff] %vm429, %v522
  %597 = vst.msk [vmem:[%s6 + $0x10] sm:$0xff] %vm429, %v527
  %598 = vst.msk [vmem:[%s6 + $0x18] sm:$0xff] %vm429, %v532
  %599 = vst.msk [vmem:[%s6 + $0x20] sm:$0xff] %vm429, %v537
  %600 = vst.msk [vmem:[%s6 + $0x28] sm:$0xff] %vm429, %v542
  %601 = vst.msk [vmem:[%s6 + $0x30] sm:$0xff] %vm429, %v547
  %602 = vst.msk [vmem:[%s6 + $0x38] sm:$0xff] %vm429, %v552
  %603 = vst.msk [vmem:[%s6 + $0x40] sm:$0xff] %vm429, %v557
  %604 = vst.msk [vmem:[%s6 + $0x48] sm:$0xff] %vm429, %v562
  %605 = vst.msk [vmem:[%s6 + $0x50] sm:$0xff] %vm429, %v567
  %606 = vst.msk [vmem:[%s6 + $0x58] sm:$0xff] %vm429, %v572
  %607 = vst.msk [vmem:[%s6 + $0x60] sm:$0xff] %vm429, %v577
  %608 = vst.msk [vmem:[%s6 + $0x68] sm:$0xff] %vm429, %v582
  %609 = vst.msk [vmem:[%s6 + $0x70] sm:$0xff] %vm429, %v587
  %610 = vst.msk [vmem:[%s6 + $0x78] sm:$0xff] %vm429, %v592
  %611 = vst.msk [vmem:[%s4] sm:$0xff] %vm37, %v153
  %612 = vst.msk [vmem:[%s4 + $0x8] sm:$0xff] %vm37, %v158
  %613 = vst.msk [vmem:[%s4 + $0x10] sm:$0xff] %vm37, %v163
  %614 = vst.msk [vmem:[%s4 + $0x18] sm:$0xff] %vm37, %v168
  %615 = vst.msk [vmem:[%s4 + $0x20] sm:$0xff] %vm37, %v173
  %616 = vst.msk [vmem:[%s4 + $0x28] sm:$0xff] %vm37, %v178
  %617 = vst.msk [vmem:[%s4 + $0x30] sm:$0xff] %vm37, %v183
  %618 = vst.msk [vmem:[%s4 + $0x38] sm:$0xff] %vm37, %v188
  %619 = vst.msk [vmem:[%s4 + $0x40] sm:$0xff] %vm37, %v193
  %620 = vst.msk [vmem:[%s4 + $0x48] sm:$0xff] %vm37, %v198
  %621 = vst.msk [vmem:[%s4 + $0x50] sm:$0xff] %vm37, %v203
  %622 = vst.msk [vmem:[%s4 + $0x58] sm:$0xff] %vm37, %v208
  %623 = vst.msk [vmem:[%s4 + $0x60] sm:$0xff] %vm37, %v213
  %624 = vst.msk [vmem:[%s4 + $0x68] sm:$0xff] %vm37, %v218
  %625 = vst.msk [vmem:[%s4 + $0x70] sm:$0xff] %vm37, %v223
  %626 = vst.msk [vmem:[%s4 + $0x78] sm:$0xff] %vm37, %v228
  %627 = vrot.lane.b32.xlu0 %v153, 120
  %v628 = vpop.permute.xlu0 %627
  %629 = vrot.lane.b32.xlu0 %v158, 120
  %v630 = vpop.permute.xlu0 %629
  %631 = vrot.lane.b32.xlu0 %v163, 120
  %v632 = vpop.permute.xlu0 %631
  %633 = vrot.lane.b32.xlu0 %v168, 120
  %v634 = vpop.permute.xlu0 %633
  %635 = vrot.lane.b32.xlu0 %v173, 120
  %v636 = vpop.permute.xlu0 %635
  %637 = vrot.lane.b32.xlu0 %v178, 120
  %v638 = vpop.permute.xlu0 %637
  %639 = vrot.lane.b32.xlu0 %v183, 120
  %v640 = vpop.permute.xlu0 %639
  %641 = vrot.lane.b32.xlu0 %v188, 120
  %v642 = vpop.permute.xlu0 %641
  %643 = vrot.lane.b32.xlu0 %v193, 120
  %v644 = vpop.permute.xlu0 %643
  %645 = vrot.lane.b32.xlu0 %v198, 120
  %v646 = vpop.permute.xlu0 %645
  %647 = vrot.lane.b32.xlu0 %v203, 120
  %v648 = vpop.permute.xlu0 %647
  %649 = vrot.lane.b32.xlu0 %v208, 120
  %v650 = vpop.permute.xlu0 %649
  %651 = vrot.lane.b32.xlu0 %v213, 120
  %v652 = vpop.permute.xlu0 %651
  %653 = vrot.lane.b32.xlu0 %v218, 120
  %v654 = vpop.permute.xlu0 %653
  %655 = vrot.lane.b32.xlu0 %v223, 120
  %v656 = vpop.permute.xlu0 %655
  %657 = vrot.lane.b32.xlu0 %v228, 120
  %v658 = vpop.permute.xlu0 %657
  %s675 = scalar_lea.vmem %s4, 128
  %676 = vst.msk [vmem:[%s675] sm:$0xff] %vm37, %v628
  %677 = vst.msk [vmem:[%s675 + $0x8] sm:$0xff] %vm37, %v630
  %678 = vst.msk [vmem:[%s675 + $0x10] sm:$0xff] %vm37, %v632
  %679 = vst.msk [vmem:[%s675 + $0x18] sm:$0xff] %vm37, %v634
  %680 = vst.msk [vmem:[%s675 + $0x20] sm:$0xff] %vm37, %v636
  %681 = vst.msk [vmem:[%s675 + $0x28] sm:$0xff] %vm37, %v638
  %682 = vst.msk [vmem:[%s675 + $0x30] sm:$0xff] %vm37, %v640
  %683 = vst.msk [vmem:[%s675 + $0x38] sm:$0xff] %vm37, %v642
  %684 = vst.msk [vmem:[%s675 + $0x40] sm:$0xff] %vm37, %v644
  %685 = vst.msk [vmem:[%s675 + $0x48] sm:$0xff] %vm37, %v646
  %686 = vst.msk [vmem:[%s675 + $0x50] sm:$0xff] %vm37, %v648
  %687 = vst.msk [vmem:[%s675 + $0x58] sm:$0xff] %vm37, %v650
  %688 = vst.msk [vmem:[%s675 + $0x60] sm:$0xff] %vm37, %v652
  %689 = vst.msk [vmem:[%s675 + $0x68] sm:$0xff] %vm37, %v654
  %690 = vst.msk [vmem:[%s675 + $0x70] sm:$0xff] %vm37, %v656
  %691 = vst.msk [vmem:[%s675 + $0x78] sm:$0xff] %vm37, %v658
  %692 = vrot.lane.b32.xlu0 %v153, 112
  %v693 = vpop.permute.xlu0 %692
  %694 = vrot.lane.b32.xlu0 %v158, 112
  %v695 = vpop.permute.xlu0 %694
  %696 = vrot.lane.b32.xlu0 %v163, 112
  %v697 = vpop.permute.xlu0 %696
  %698 = vrot.lane.b32.xlu0 %v168, 112
  %v699 = vpop.permute.xlu0 %698
  %700 = vrot.lane.b32.xlu0 %v173, 112
  %v701 = vpop.permute.xlu0 %700
  %702 = vrot.lane.b32.xlu0 %v178, 112
  %v703 = vpop.permute.xlu0 %702
  %704 = vrot.lane.b32.xlu0 %v183, 112
  %v705 = vpop.permute.xlu0 %704
  %706 = vrot.lane.b32.xlu0 %v188, 112
  %v707 = vpop.permute.xlu0 %706
  %708 = vrot.lane.b32.xlu0 %v193, 112
  %v709 = vpop.permute.xlu0 %708
  %710 = vrot.lane.b32.xlu0 %v198, 112
  %v711 = vpop.permute.xlu0 %710
  %712 = vrot.lane.b32.xlu0 %v203, 112
  %v713 = vpop.permute.xlu0 %712
  %714 = vrot.lane.b32.xlu0 %v208, 112
  %v715 = vpop.permute.xlu0 %714
  %716 = vrot.lane.b32.xlu0 %v213, 112
  %v717 = vpop.permute.xlu0 %716
  %718 = vrot.lane.b32.xlu0 %v218, 112
  %v719 = vpop.permute.xlu0 %718
  %720 = vrot.lane.b32.xlu0 %v223, 112
  %v721 = vpop.permute.xlu0 %720
  %722 = vrot.lane.b32.xlu0 %v228, 112
  %v723 = vpop.permute.xlu0 %722
  %s740 = scalar_lea.vmem %s4, 256
  %741 = vst.msk [vmem:[%s740] sm:$0xff] %vm37, %v693
  %742 = vst.msk [vmem:[%s740 + $0x8] sm:$0xff] %vm37, %v695
  %743 = vst.msk [vmem:[%s740 + $0x10] sm:$0xff] %vm37, %v697
  %744 = vst.msk [vmem:[%s740 + $0x18] sm:$0xff] %vm37, %v699
  %745 = vst.msk [vmem:[%s740 + $0x20] sm:$0xff] %vm37, %v701
  %746 = vst.msk [vmem:[%s740 + $0x28] sm:$0xff] %vm37, %v703
  %747 = vst.msk [vmem:[%s740 + $0x30] sm:$0xff] %vm37, %v705
  %748 = vst.msk [vmem:[%s740 + $0x38] sm:$0xff] %vm37, %v707
  %749 = vst.msk [vmem:[%s740 + $0x40] sm:$0xff] %vm37, %v709
  %750 = vst.msk [vmem:[%s740 + $0x48] sm:$0xff] %vm37, %v711
  %751 = vst.msk [vmem:[%s740 + $0x50] sm:$0xff] %vm37, %v713
  %752 = vst.msk [vmem:[%s740 + $0x58] sm:$0xff] %vm37, %v715
  %753 = vst.msk [vmem:[%s740 + $0x60] sm:$0xff] %vm37, %v717
  %754 = vst.msk [vmem:[%s740 + $0x68] sm:$0xff] %vm37, %v719
  %755 = vst.msk [vmem:[%s740 + $0x70] sm:$0xff] %vm37, %v721
  %756 = vst.msk [vmem:[%s740 + $0x78] sm:$0xff] %vm37, %v723
  %757 = vrot.lane.b32.xlu0 %v153, 104
  %v758 = vpop.permute.xlu0 %757
  %759 = vrot.lane.b32.xlu0 %v158, 104
  %v760 = vpop.permute.xlu0 %759
  %761 = vrot.lane.b32.xlu0 %v163, 104
  %v762 = vpop.permute.xlu0 %761
  %763 = vrot.lane.b32.xlu0 %v168, 104
  %v764 = vpop.permute.xlu0 %763
  %765 = vrot.lane.b32.xlu0 %v173, 104
  %v766 = vpop.permute.xlu0 %765
  %767 = vrot.lane.b32.xlu0 %v178, 104
  %v768 = vpop.permute.xlu0 %767
  %769 = vrot.lane.b32.xlu0 %v183, 104
  %v770 = vpop.permute.xlu0 %769
  %771 = vrot.lane.b32.xlu0 %v188, 104
  %v772 = vpop.permute.xlu0 %771
  %773 = vrot.lane.b32.xlu0 %v193, 104
  %v774 = vpop.permute.xlu0 %773
  %775 = vrot.lane.b32.xlu0 %v198, 104
  %v776 = vpop.permute.xlu0 %775
  %777 = vrot.lane.b32.xlu0 %v203, 104
  %v778 = vpop.permute.xlu0 %777
  %779 = vrot.lane.b32.xlu0 %v208, 104
  %v780 = vpop.permute.xlu0 %779
  %781 = vrot.lane.b32.xlu0 %v213, 104
  %v782 = vpop.permute.xlu0 %781
  %783 = vrot.lane.b32.xlu0 %v218, 104
  %v784 = vpop.permute.xlu0 %783
  %785 = vrot.lane.b32.xlu0 %v223, 104
  %v786 = vpop.permute.xlu0 %785
  %787 = vrot.lane.b32.xlu0 %v228, 104
  %v788 = vpop.permute.xlu0 %787
  %s805 = scalar_lea.vmem %s4, 384
  %806 = vst.msk [vmem:[%s805] sm:$0xff] %vm37, %v758
  %807 = vst.msk [vmem:[%s805 + $0x8] sm:$0xff] %vm37, %v760
  %808 = vst.msk [vmem:[%s805 + $0x10] sm:$0xff] %vm37, %v762
  %809 = vst.msk [vmem:[%s805 + $0x18] sm:$0xff] %vm37, %v764
  %810 = vst.msk [vmem:[%s805 + $0x20] sm:$0xff] %vm37, %v766
  %811 = vst.msk [vmem:[%s805 + $0x28] sm:$0xff] %vm37, %v768
  %812 = vst.msk [vmem:[%s805 + $0x30] sm:$0xff] %vm37, %v770
  %813 = vst.msk [vmem:[%s805 + $0x38] sm:$0xff] %vm37, %v772
  %814 = vst.msk [vmem:[%s805 + $0x40] sm:$0xff] %vm37, %v774
  %815 = vst.msk [vmem:[%s805 + $0x48] sm:$0xff] %vm37, %v776
  %816 = vst.msk [vmem:[%s805 + $0x50] sm:$0xff] %vm37, %v778
  %817 = vst.msk [vmem:[%s805 + $0x58] sm:$0xff] %vm37, %v780
  %818 = vst.msk [vmem:[%s805 + $0x60] sm:$0xff] %vm37, %v782
  %819 = vst.msk [vmem:[%s805 + $0x68] sm:$0xff] %vm37, %v784
  %820 = vst.msk [vmem:[%s805 + $0x70] sm:$0xff] %vm37, %v786
  %821 = vst.msk [vmem:[%s805 + $0x78] sm:$0xff] %vm37, %v788
  // Predicated region
  $region18: #{graph_transformer_teacher.4} parent=0 // pred_check
    _
  $region19: #{graph_transformer_teacher.4} parent=0 // pred_check_branch
    %823 = sbr.rel (0) target = $region21
  $region20: #{graph_transformer_teacher.4} parent=0 // pred_region
    _
  $region21: #{graph_transformer_teacher.4} parent=0 // pred_fallthru
    _
  // Predicated region
  $region22: #{graph_transformer_teacher.4} parent=0 // pred_check
    _
  $region23: #{graph_transformer_teacher.4} parent=0 // pred_check_branch
    %825 = sbr.rel (0) target = $region25
  $region24: #{graph_transformer_teacher.4} parent=0 // pred_region
    _
  $region25: #{graph_transformer_teacher.4} parent=0 // pred_fallthru
    _
  // Predicated region
  $region26: #{graph_transformer_teacher.4} parent=0 // pred_check
    _
  $region27: #{graph_transformer_teacher.4} parent=0 // pred_check_branch
    %827 = sbr.rel (0) target = $region29
  $region28: #{graph_transformer_teacher.4} parent=0 // pred_region
    _
  $region29: #{graph_transformer_teacher.4} parent=0 // pred_fallthru
    _
  // Predicated region
  $region30: #{graph_transformer_teacher.4} parent=0 // pred_check
    _
  $region31: #{graph_transformer_teacher.4} parent=0 // pred_check_branch
    %829 = sbr.rel (0) target = $region33
  $region32: #{graph_transformer_teacher.4} parent=0 // pred_region
    _
  $region33: #{graph_transformer_teacher.4} parent=0 // pred_fallthru
    _
  // Predicated region
  $region34: #{graph_transformer_teacher.4} parent=0 // pred_check
    _
  $region35: #{graph_transformer_teacher.4} parent=0 // pred_check_branch
    %831 = sbr.rel (0) target = $region37
  $region36: #{graph_transformer_teacher.4} parent=0 // pred_region
    _
  $region37: #{graph_transformer_teacher.4} parent=0 // pred_fallthru
    _
  // Predicated region
  $region38: #{graph_transformer_teacher.4} parent=0 // pred_check
    _
  $region39: #{graph_transformer_teacher.4} parent=0 // pred_check_branch
    %833 = sbr.rel (0) target = $region41
  $region40: #{graph_transformer_teacher.4} parent=0 // pred_region
    _
  $region41: #{graph_transformer_teacher.4} parent=0 // pred_fallthru
    _

// kernel: graph_transformer_teacher.5
$region0: #{graph_transformer_teacher.5}
  #allocation0 [shape = 'u32[]', space=smem, size = 0x4, offset = 0x4, fixed_abs, tag = 'smem constant byte address 0x4 - core index']
  #allocation1 [shape = 'u32[144,128]{1,0:T(1,128)}', space=vmem, size = 0x12000, scoped, tag = 'internal scratch']
  %s0 = inlined_call_operand.vmem [shape: f32[4,128,8], index: 0, kind: input, shape index: {}]
  %s1 = inlined_call_operand.vmem [shape: f32[4,1,128], index: 1, kind: input, shape index: {}]
  %s2 = inlined_call_operand.vmem [shape: f32[4,128,1], index: 2, kind: input, shape index: {}]
  %s3 = inlined_call_operand.vmem [shape: f32[4,1,8], index: 3, kind: input, shape index: {}]
  %s4 = inlined_call_operand.vmem [shape: s8[128,128], index: 4, kind: input, shape index: {}]
  %s5 = inlined_call_operand.vmem [shape: f32[4,128,8], index: 5, kind: output, shape index: {0}]
  %s6 = inlined_call_operand.vmem [shape: f32[4,128,1], index: 6, kind: output, shape index: {1}]
  %7 = xla_tuple %s5, %s6
  %s8 = sld [smem:[#allocation0]]
  $region61: #{graph_transformer_teacher.5} parent=0
    _
  %s10 = ssub.s32 1, %s8
  %s11 = scalar_select 0, %s10, %s8
  loop: start=0, step=1, limit=6
  $region2: #{graph_transformer_teacher.5} parent=0 // loop_pre_header
    _
  $region3: #{graph_transformer_teacher.5} parent=0 // loop_header
    %s13 = sphi 0, %s17
    %p14 = scmp.ge.s32.totalorder %s13, 6
    %s20 = sphi 0, %s32
    %s21 = sphi 0, %s28
    %s22 = sphi 0, %s20
    %s23 = sphi 0, %s21
    %s24 = sphi 0, %s22
    %s25 = sphi 0, %s23
    %s33 = sphi 0, %s33
    %s35 = sphi 0, %s33
    %s36 = sphi 0, %s35
    %s50 = sphi 0, %s36
    %s56 = sphi 0, %s58
    %s59 = sphi 0, %s56
    %s60 = sphi 0, %s59
    %s76 = sphi 0, %s60
    %s84 = sphi 0, %s86
    %s87 = sphi 0, %s84
    %s88 = sphi 0, %s87
    %s104 = sphi 0, %s88
    %s110 = sphi 0, %s112
    %s113 = sphi 0, %s110
    %s114 = sphi 0, %s113
    %s130 = sphi 0, %s114
    %s136 = sphi 0, %s138
    %s139 = sphi 0, %s136
    %s140 = sphi 0, %s139
    %s156 = sphi 0, %s140
    %s164 = sphi 0, %s166
    %s167 = sphi 0, %s164
    %s168 = sphi 0, %s167
    %s184 = sphi 0, %s168
    %s192 = sphi 0, %s194
    %s195 = sphi 0, %s192
    %s196 = sphi 0, %s195
    %s212 = sphi 0, %s196
  $region4: #{graph_transformer_teacher.5} parent=0 // loop_header_branch
    %16 = sbr.rel (%p14) target = $region8
  $region5: #{graph_transformer_teacher.5} parent=0 // loop_body
    %s18 = ssub.s32 %s13, 1
    %s19 = ssub.s32 %s13, 2
    %s26 = sadd.s32 1, %s21
    %p27 = scmp.ge.s32.totalorder %s26, 4
    %s28 = scalar_select %p27, 0, %s26
    %s29 = sadd.s32 1, %s20
    %s30 = scalar_select %p27, %s29, %s20
    %p31 = scmp.ge.s32.totalorder %s30, 1
    %s32 = scalar_select %p31, 0, %s30
    %s34 = sadd.s32 %s33, 1
    %p37 = scmp.eq.s32.totalorder %s13, 3
    %p38 = scmp.ne.s32.totalorder %s33, %s35
    %p39 = scmp.eq.s32.totalorder %s13, 0
    %p40 = por %p38, %p39
    %p41 = scmp.ne.s32.totalorder %s33, %s35
    %p42 = scmp.eq.s32.totalorder %s18, 3
    %p43 = por %p41, %p42
    %p44 = scmp.ne.s32.totalorder %s35, %s36
    %p45 = scmp.eq.s32.totalorder %s18, 0
    %p46 = por %p44, %p45
    %p47 = scmp.ne.s32.totalorder %s35, %s36
    %p48 = scmp.eq.s32.totalorder %s19, 3
    %p49 = por %p47, %p48
    %p51 = scmp.ne.s32.totalorder %s36, %s50
    %p52 = scmp.eq.s32.totalorder %s19, 0
    %p53 = por %p51, %p52
    %s54 = ssub.s32 %s21, %s28
    %p55 = scmp.eq.s32.totalorder %s54, 0
    %s57 = sadd.s32 %s56, 1
    %s58 = scalar_select %p55, %s56, %s57
    %p61 = pneg %p55
    %p62 = scmp.eq.s32.totalorder %s13, 3
    %p63 = por %p61, %p62
    %p64 = scmp.ne.s32.totalorder %s56, %s59
    %p65 = scmp.eq.s32.totalorder %s13, 0
    %p66 = por %p64, %p65
    %p67 = scmp.ne.s32.totalorder %s56, %s59
    %p68 = scmp.eq.s32.totalorder %s18, 3
    %p69 = por %p67, %p68
    %p70 = scmp.ne.s32.totalorder %s59, %s60
    %p71 = scmp.eq.s32.totalorder %s18, 0
    %p72 = por %p70, %p71
    %p73 = scmp.ne.s32.totalorder %s59, %s60
    %p74 = scmp.eq.s32.totalorder %s19, 3
    %p75 = por %p73, %p74
    %p77 = scmp.ne.s32.totalorder %s60, %s76
    %p78 = scmp.eq.s32.totalorder %s19, 0
    %p79 = por %p77, %p78
    %s80 = ssub.s32 %s21, %s28
    %s81 = ssub.s32 %s20, %s32
    %s82 = sor.u32 %s80, %s81
    %p83 = scmp.eq.s32.totalorder %s82, 0
    %s85 = sadd.s32 %s84, 1
    %s86 = scalar_select %p83, %s84, %s85
    %p89 = pneg %p83
    %p90 = scmp.eq.s32.totalorder %s13, 3
    %p91 = por %p89, %p90
    %p92 = scmp.ne.s32.totalorder %s84, %s87
    %p93 = scmp.eq.s32.totalorder %s13, 0
    %p94 = por %p92, %p93
    %p95 = scmp.ne.s32.totalorder %s84, %s87
    %p96 = scmp.eq.s32.totalorder %s18, 3
    %p97 = por %p95, %p96
    %p98 = scmp.ne.s32.totalorder %s87, %s88
    %p99 = scmp.eq.s32.totalorder %s18, 0
    %p100 = por %p98, %p99
    %p101 = scmp.ne.s32.totalorder %s87, %s88
    %p102 = scmp.eq.s32.totalorder %s19, 3
    %p103 = por %p101, %p102
    %p105 = scmp.ne.s32.totalorder %s88, %s104
    %p106 = scmp.eq.s32.totalorder %s19, 0
    %p107 = por %p105, %p106
    %s108 = ssub.s32 %s21, %s28
    %p109 = scmp.eq.s32.totalorder %s108, 0
    %s111 = sadd.s32 %s110, 1
    %s112 = scalar_select %p109, %s110, %s111
    %p115 = pneg %p109
    %p116 = scmp.eq.s32.totalorder %s13, 3
    %p117 = por %p115, %p116
    %p118 = scmp.ne.s32.totalorder %s110, %s113
    %p119 = scmp.eq.s32.totalorder %s13, 0
    %p120 = por %p118, %p119
    %p121 = scmp.ne.s32.totalorder %s110, %s113
    %p122 = scmp.eq.s32.totalorder %s18, 3
    %p123 = por %p121, %p122
    %p124 = scmp.ne.s32.totalorder %s113, %s114
    %p125 = scmp.eq.s32.totalorder %s18, 0
    %p126 = por %p124, %p125
    %p127 = scmp.ne.s32.totalorder %s113, %s114
    %p128 = scmp.eq.s32.totalorder %s19, 3
    %p129 = por %p127, %p128
    %p131 = scmp.ne.s32.totalorder %s114, %s130
    %p132 = scmp.eq.s32.totalorder %s19, 0
    %p133 = por %p131, %p132
    %s134 = ssub.s32 %s20, %s32
    %p135 = scmp.eq.s32.totalorder %s134, 0
    %s137 = sadd.s32 %s136, 1
    %s138 = scalar_select %p135, %s136, %s137
    %p141 = pneg %p135
    %p142 = scmp.eq.s32.totalorder %s13, 3
    %p143 = por %p141, %p142
    %p144 = scmp.ne.s32.totalorder %s136, %s139
    %p145 = scmp.eq.s32.totalorder %s13, 0
    %p146 = por %p144, %p145
    %p147 = scmp.ne.s32.totalorder %s136, %s139
    %p148 = scmp.eq.s32.totalorder %s18, 3
    %p149 = por %p147, %p148
    %p150 = scmp.ne.s32.totalorder %s139, %s140
    %p151 = scmp.eq.s32.totalorder %s18, 0
    %p152 = por %p150, %p151
    %p153 = scmp.ne.s32.totalorder %s139, %s140
    %p154 = scmp.eq.s32.totalorder %s19, 3
    %p155 = por %p153, %p154
    %p157 = scmp.ne.s32.totalorder %s140, %s156
    %p158 = scmp.eq.s32.totalorder %s19, 0
    %p159 = por %p157, %p158
    %s160 = ssub.s32 %s21, %s28
    %s161 = ssub.s32 %s20, %s32
    %s162 = sor.u32 %s160, %s161
    %p163 = scmp.eq.s32.totalorder %s162, 0
    %s165 = sadd.s32 %s164, 1
    %s166 = scalar_select %p163, %s164, %s165
    %p169 = pneg %p163
    %p170 = scmp.eq.s32.totalorder %s13, 3
    %p171 = por %p169, %p170
    %p172 = scmp.ne.s32.totalorder %s164, %s167
    %p173 = scmp.eq.s32.totalorder %s13, 0
    %p174 = por %p172, %p173
    %p175 = scmp.ne.s32.totalorder %s164, %s167
    %p176 = scmp.eq.s32.totalorder %s18, 3
    %p177 = por %p175, %p176
    %p178 = scmp.ne.s32.totalorder %s167, %s168
    %p179 = scmp.eq.s32.totalorder %s18, 0
    %p180 = por %p178, %p179
    %p181 = scmp.ne.s32.totalorder %s167, %s168
    %p182 = scmp.eq.s32.totalorder %s19, 3
    %p183 = por %p181, %p182
    %p185 = scmp.ne.s32.totalorder %s168, %s184
    %p186 = scmp.eq.s32.totalorder %s19, 0
    %p187 = por %p185, %p186
    %s188 = ssub.s32 %s21, %s28
    %s189 = ssub.s32 %s20, %s32
    %s190 = sor.u32 %s188, %s189
    %p191 = scmp.eq.s32.totalorder %s190, 0
    %s193 = sadd.s32 %s192, 1
    %s194 = scalar_select %p191, %s192, %s193
    %p197 = pneg %p191
    %p198 = scmp.eq.s32.totalorder %s13, 3
    %p199 = por %p197, %p198
    %p200 = scmp.ne.s32.totalorder %s192, %s195
    %p201 = scmp.eq.s32.totalorder %s13, 0
    %p202 = por %p200, %p201
    %p203 = scmp.ne.s32.totalorder %s192, %s195
    %p204 = scmp.eq.s32.totalorder %s18, 3
    %p205 = por %p203, %p204
    %p206 = scmp.ne.s32.totalorder %s195, %s196
    %p207 = scmp.eq.s32.totalorder %s18, 0
    %p208 = por %p206, %p207
    %p209 = scmp.ne.s32.totalorder %s195, %s196
    %p210 = scmp.eq.s32.totalorder %s19, 3
    %p211 = por %p209, %p210
    %p213 = scmp.ne.s32.totalorder %s196, %s212
    %p214 = scmp.eq.s32.totalorder %s19, 0
    %p215 = por %p213, %p214
    %p216 = scmp.le.s32.totalorder 1, %s13
    %p217 = scmp.lt.s32.totalorder %s13, 5
    %p218 = pnand %p216, %p217
    %p219 = pneg %p218
    // Predicated region
    $region9: #{graph_transformer_teacher.5} parent=5 // pred_check
      _
    $region10: #{graph_transformer_teacher.5} parent=5 // pred_check_branch
      %221 = sbr.rel (%p218) target = $region12
    $region11: #{graph_transformer_teacher.5} parent=5 // pred_region
      %s222 = ssub.s32 %s13, 1
      // Predicated region
      $region13: #{graph_transformer_teacher.5} parent=11 // pred_check
        %p223 = pneg %p46
      $region14: #{graph_transformer_teacher.5} parent=11 // pred_check_branch
        %225 = sbr.rel (%p223) target = $region16
      $region15: #{graph_transformer_teacher.5} parent=11 // pred_region
        _
      $region16: #{graph_transformer_teacher.5} parent=11 // pred_fallthru
        _
      // Predicated region
      $region17: #{graph_transformer_teacher.5} parent=11 // pred_check
        %p226 = pneg %p152
      $region18: #{graph_transformer_teacher.5} parent=11 // pred_check_branch
        %228 = sbr.rel (%p226) target = $region20
      $region19: #{graph_transformer_teacher.5} parent=11 // pred_region
        %s229 = smul.u32 16, %s22
        %p230 = scmp.lt.s32.totalorder %s229, 15
        %s231 = scalar_select %p230, %s229, 15
        %s232 = smul.addr %s231, 2
        %s233 = scalar_lea.vmem %s4, %s232
        %s234 = smul.u32 16, %s22
      $region20: #{graph_transformer_teacher.5} parent=11 // pred_fallthru
        _
    $region12: #{graph_transformer_teacher.5} parent=5 // pred_fallthru
      _
    %p235 = scmp.lt.s32.totalorder %s13, 4
    // Predicated region
    $region21: #{graph_transformer_teacher.5} parent=5 // pred_check
      %p236 = pneg %p235
    $region22: #{graph_transformer_teacher.5} parent=5 // pred_check_branch
      %238 = sbr.rel (%p236) target = $region24
    $region23: #{graph_transformer_teacher.5} parent=5 // pred_region
      // Predicated region
      $region25: #{graph_transformer_teacher.5} parent=23 // pred_check
        %p239 = pneg %p66
      $region26: #{graph_transformer_teacher.5} parent=23 // pred_check_branch
        %241 = sbr.rel (%p239) target = $region28
      $region27: #{graph_transformer_teacher.5} parent=23 // pred_region
        %p242 = scmp.lt.s32.totalorder %s21, 3
        %s243 = scalar_select %p242, %s21, 3
        %s244 = scalar_lea.vmem %s1, %s243
      $region28: #{graph_transformer_teacher.5} parent=23 // pred_fallthru
        _
      // Predicated region
      $region29: #{graph_transformer_teacher.5} parent=23 // pred_check
        %p245 = pneg %p94
      $region30: #{graph_transformer_teacher.5} parent=23 // pred_check_branch
        %247 = sbr.rel (%p245) target = $region32
      $region31: #{graph_transformer_teacher.5} parent=23 // pred_region
        %s248 = smul.u32 16, %s20
        %p249 = scmp.lt.s32.totalorder %s21, 3
        %s250 = scalar_select %p249, %s21, 3
        %p251 = scmp.lt.s32.totalorder %s248, 15
        %s252 = scalar_select %p251, %s248, 15
        %s253 = smul.addr %s250, 16
        %s254 = sadd.s32 %s252, %s253
        %s255 = smul.addr %s254, 8
        %s256 = scalar_lea.vmem %s2, %s255
        %s257 = smul.u32 16, %s20
      $region32: #{graph_transformer_teacher.5} parent=23 // pred_fallthru
        _
      // Predicated region
      $region33: #{graph_transformer_teacher.5} parent=23 // pred_check
        %p258 = pneg %p120
      $region34: #{graph_transformer_teacher.5} parent=23 // pred_check_branch
        %260 = sbr.rel (%p258) target = $region36
      $region35: #{graph_transformer_teacher.5} parent=23 // pred_region
        %p261 = scmp.lt.s32.totalorder %s21, 3
        %s262 = scalar_select %p261, %s21, 3
        %s263 = scalar_lea.vmem %s3, %s262
      $region36: #{graph_transformer_teacher.5} parent=23 // pred_fallthru
        _
    $region24: #{graph_transformer_teacher.5} parent=5 // pred_fallthru
      _
    %p264 = scmp.le.s32.totalorder 1, %s13
    %p265 = scmp.lt.s32.totalorder %s13, 5
    %p266 = pnand %p264, %p265
    %p267 = pneg %p266
    // Predicated region
    $region37: #{graph_transformer_teacher.5} parent=5 // pred_check
      _
    $region38: #{graph_transformer_teacher.5} parent=5 // pred_check_branch
      %269 = sbr.rel (%p266) target = $region40
    $region39: #{graph_transformer_teacher.5} parent=5 // pred_region
      %s270 = ssub.s32 %s13, 1
      %p271 = pneg %p46
      %p272 = pneg %p43
      %p273 = scmp.lt.s32.totalorder %s23, 3
      %s274 = scalar_select %p273, %s23, 3
      %s275 = scalar_lea.vmem %s1, %s274
      %p276 = pneg %p72
      %p277 = pneg %p69
      %s278 = smul.u32 16, %s22
      %p279 = scmp.lt.s32.totalorder %s23, 3
      %s280 = scalar_select %p279, %s23, 3
      %p281 = scmp.lt.s32.totalorder %s278, 15
      %s282 = scalar_select %p281, %s278, 15
      %s283 = smul.addr %s280, 16
      %s284 = sadd.s32 %s282, %s283
      %s285 = smul.addr %s284, 8
      %s286 = scalar_lea.vmem %s2, %s285
      %p287 = pneg %p100
      %p288 = pneg %p97
      %p289 = scmp.lt.s32.totalorder %s23, 3
      %s290 = scalar_select %p289, %s23, 3
      %s291 = scalar_lea.vmem %s3, %s290
      %p292 = pneg %p126
      %p293 = pneg %p123
      %s294 = smul.u32 16, %s22
      %p295 = scmp.lt.s32.totalorder %s294, 15
      %s296 = scalar_select %p295, %s294, 15
      %s297 = smul.addr %s296, 2
      %s298 = scalar_lea.vmem %s4, %s297
      %p299 = pneg %p152
      %p300 = pneg %p149
      %p301 = pneg %p180
      %p302 = pneg %p177
      %s303 = smul.u32 16, %s22
      %p304 = scmp.lt.s32.totalorder %s23, 3
      %s305 = scalar_select %p304, %s23, 3
      %p306 = scmp.lt.s32.totalorder %s303, 15
      %s307 = scalar_select %p306, %s303, 15
      %s308 = smul.addr %s305, 16
      %s309 = sadd.s32 %s307, %s308
      %s310 = smul.addr %s309, 8
      %s311 = scalar_lea.vmem %s5, %s310
      %p312 = pneg %p208
      %p313 = pneg %p205
      %s314 = smul.u32 16, %s22
      %p315 = scmp.lt.s32.totalorder %s23, 3
      %s316 = scalar_select %p315, %s23, 3
      %p317 = scmp.lt.s32.totalorder %s314, 15
      %s318 = scalar_select %p317, %s314, 15
      %s319 = smul.addr %s316, 16
      %s320 = sadd.s32 %s318, %s319
      %s321 = smul.addr %s320, 8
      %s322 = scalar_lea.vmem %s6, %s321
      %p323 = scmp.lt.s32.totalorder %s23, 3
      %s324 = scalar_select %p323, %s23, 3
      %s325 = scalar_lea.vmem %s1, %s324
      %s326 = smul.u32 16, %s22
      %p327 = scmp.lt.s32.totalorder %s23, 3
      %s328 = scalar_select %p327, %s23, 3
      %p329 = scmp.lt.s32.totalorder %s326, 15
      %s330 = scalar_select %p329, %s326, 15
      %s331 = smul.addr %s328, 16
      %s332 = sadd.s32 %s330, %s331
      %s333 = smul.addr %s332, 8
      %s334 = scalar_lea.vmem %s2, %s333
      %s335 = smul.u32 16, %s22
      %p336 = scmp.lt.s32.totalorder %s23, 3
      %s337 = scalar_select %p336, %s23, 3
      %s338 = scalar_lea.vmem %s3, %s337
      %s339 = smul.u32 16, %s22
      %p340 = scmp.lt.s32.totalorder %s339, 15
      %s341 = scalar_select %p340, %s339, 15
      %s342 = smul.addr %s341, 2
      %s343 = scalar_lea.vmem %s4, %s342
      %s344 = smul.u32 16, %s22
      %s345 = smul.u32 16, %s22
      %p346 = scmp.lt.s32.totalorder %s23, 3
      %s347 = scalar_select %p346, %s23, 3
      %p348 = scmp.lt.s32.totalorder %s345, 15
      %s349 = scalar_select %p348, %s345, 15
      %s350 = smul.addr %s347, 16
      %s351 = sadd.s32 %s349, %s350
      %s352 = smul.addr %s351, 8
      %s353 = scalar_lea.vmem %s5, %s352
      %s354 = smul.u32 16, %s22
      %s355 = smul.u32 16, %s22
      %p356 = scmp.lt.s32.totalorder %s23, 3
      %s357 = scalar_select %p356, %s23, 3
      %p358 = scmp.lt.s32.totalorder %s355, 15
      %s359 = scalar_select %p358, %s355, 15
      %s360 = smul.addr %s357, 16
      %s361 = sadd.s32 %s359, %s360
      %s362 = smul.addr %s361, 8
      %s363 = scalar_lea.vmem %s6, %s362
      %s364 = smul.u32 16, %s22
      %s367 = smul.u32 %s23, 128
      %s368 = scalar_lea.vmem %s0, %s367
      %v369 = vld [vmem:[%s368] sm:$0xff]
      %v370 = vld [vmem:[%s368 + $0x8] sm:$0xff]
      %v371 = vld [vmem:[%s368 + $0x10] sm:$0xff]
      %v372 = vld [vmem:[%s368 + $0x18] sm:$0xff]
      %v373 = vld [vmem:[%s368 + $0x20] sm:$0xff]
      %v374 = vld [vmem:[%s368 + $0x28] sm:$0xff]
      %v375 = vld [vmem:[%s368 + $0x30] sm:$0xff]
      %v376 = vld [vmem:[%s368 + $0x38] sm:$0xff]
      %v377 = vld [vmem:[%s368 + $0x40] sm:$0xff]
      %v378 = vld [vmem:[%s368 + $0x48] sm:$0xff]
      %v379 = vld [vmem:[%s368 + $0x50] sm:$0xff]
      %v380 = vld [vmem:[%s368 + $0x58] sm:$0xff]
      %v381 = vld [vmem:[%s368 + $0x60] sm:$0xff]
      %v382 = vld [vmem:[%s368 + $0x68] sm:$0xff]
      %v383 = vld [vmem:[%s368 + $0x70] sm:$0xff]
      %v384 = vld [vmem:[%s368 + $0x78] sm:$0xff]
      %v385 = vld [vmem:[%s325] sm:$0x1]
      %v386 = vld [vmem:[%s334] sm:$0xff]
      %v387 = vld [vmem:[%s334 + $0x8] sm:$0xff]
      %v388 = vld [vmem:[%s334 + $0x10] sm:$0xff]
      %v389 = vld [vmem:[%s334 + $0x18] sm:$0xff]
      %v390 = vld [vmem:[%s334 + $0x20] sm:$0xff]
      %v391 = vld [vmem:[%s334 + $0x28] sm:$0xff]
      %v392 = vld [vmem:[%s334 + $0x30] sm:$0xff]
      %v393 = vld [vmem:[%s334 + $0x38] sm:$0xff]
      %v394 = vld [vmem:[%s334 + $0x40] sm:$0xff]
      %v395 = vld [vmem:[%s334 + $0x48] sm:$0xff]
      %v396 = vld [vmem:[%s334 + $0x50] sm:$0xff]
      %v397 = vld [vmem:[%s334 + $0x58] sm:$0xff]
      %v398 = vld [vmem:[%s334 + $0x60] sm:$0xff]
      %v399 = vld [vmem:[%s334 + $0x68] sm:$0xff]
      %v400 = vld [vmem:[%s334 + $0x70] sm:$0xff]
      %v401 = vld [vmem:[%s334 + $0x78] sm:$0xff]
      %v402 = vld [vmem:[%s343] sm:$0x3]
      %v403 = vld [vmem:[%s343 + $0x2] sm:$0x3]
      %v404 = vld [vmem:[%s343 + $0x4] sm:$0x3]
      %v405 = vld [vmem:[%s343 + $0x6] sm:$0x3]
      %v406 = vld [vmem:[%s343 + $0x8] sm:$0x3]
      %v407 = vld [vmem:[%s343 + $0xa] sm:$0x3]
      %v408 = vld [vmem:[%s343 + $0xc] sm:$0x3]
      %v409 = vld [vmem:[%s343 + $0xe] sm:$0x3]
      %v410 = vld [vmem:[%s343 + $0x10] sm:$0x3]
      %v411 = vld [vmem:[%s343 + $0x12] sm:$0x3]
      %v412 = vld [vmem:[%s343 + $0x14] sm:$0x3]
      %v413 = vld [vmem:[%s343 + $0x16] sm:$0x3]
      %v414 = vld [vmem:[%s343 + $0x18] sm:$0x3]
      %v415 = vld [vmem:[%s343 + $0x1a] sm:$0x3]
      %v416 = vld [vmem:[%s343 + $0x1c] sm:$0x3]
      %v417 = vld [vmem:[%s343 + $0x1e] sm:$0x3]
      %419 = vset.pattern.permute.xlu0 0
      %420 = vperm.xlu0 %419, %v386
      %v421 = vpop.permute.xlu0 %420
      %424 = vset.pattern.permute.xlu0 0
      %425 = vperm.xlu0 %424, %v387
      %v426 = vpop.permute.xlu0 %425
      %429 = vset.pattern.permute.xlu0 0
      %430 = vperm.xlu0 %429, %v388
      %v431 = vpop.permute.xlu0 %430
      %434 = vset.pattern.permute.xlu0 0
      %435 = vperm.xlu0 %434, %v389
      %v436 = vpop.permute.xlu0 %435
      %439 = vset.pattern.permute.xlu0 0
      %440 = vperm.xlu0 %439, %v390
      %v441 = vpop.permute.xlu0 %440
      %444 = vset.pattern.permute.xlu0 0
      %445 = vperm.xlu0 %444, %v391
      %v446 = vpop.permute.xlu0 %445
      %449 = vset.pattern.permute.xlu0 0
      %450 = vperm.xlu0 %449, %v392
      %v451 = vpop.permute.xlu0 %450
      %454 = vset.pattern.permute.xlu0 0
      %455 = vperm.xlu0 %454, %v393
      %v456 = vpop.permute.xlu0 %455
      %459 = vset.pattern.permute.xlu0 0
      %460 = vperm.xlu0 %459, %v394
      %v461 = vpop.permute.xlu0 %460
      %464 = vset.pattern.permute.xlu0 0
      %465 = vperm.xlu0 %464, %v395
      %v466 = vpop.permute.xlu0 %465
      %469 = vset.pattern.permute.xlu0 0
      %470 = vperm.xlu0 %469, %v396
      %v471 = vpop.permute.xlu0 %470
      %474 = vset.pattern.permute.xlu0 0
      %475 = vperm.xlu0 %474, %v397
      %v476 = vpop.permute.xlu0 %475
      %479 = vset.pattern.permute.xlu0 0
      %480 = vperm.xlu0 %479, %v398
      %v481 = vpop.permute.xlu0 %480
      %484 = vset.pattern.permute.xlu0 0
      %485 = vperm.xlu0 %484, %v399
      %v486 = vpop.permute.xlu0 %485
      %489 = vset.pattern.permute.xlu0 0
      %490 = vperm.xlu0 %489, %v400
      %v491 = vpop.permute.xlu0 %490
      %494 = vset.pattern.permute.xlu0 0
      %495 = vperm.xlu0 %494, %v401
      %v496 = vpop.permute.xlu0 %495
      %v499 = vlaneseq
      %v500 = vshrl.u32 %v499, 7
      %v501 = vsub.s32 0, %v500
      %v502 = vrot.slane %v385, %v501
      %v504 = vadd.f32 %v421, %v502
      %v505 = vadd.f32 %v426, %v502
      %v506 = vadd.f32 %v431, %v502
      %v507 = vadd.f32 %v436, %v502
      %v508 = vadd.f32 %v441, %v502
      %v509 = vadd.f32 %v446, %v502
      %v510 = vadd.f32 %v451, %v502
      %v511 = vadd.f32 %v456, %v502
      %v512 = vadd.f32 %v461, %v502
      %v513 = vadd.f32 %v466, %v502
      %v514 = vadd.f32 %v471, %v502
      %v515 = vadd.f32 %v476, %v502
      %v516 = vadd.f32 %v481, %v502
      %v517 = vadd.f32 %v486, %v502
      %v518 = vadd.f32 %v491, %v502
      %v519 = vadd.f32 %v496, %v502
      %vm520 = vcmp.gt.f32.partialorder %v504, 0.0
      %vm521 = vcmp.gt.f32.partialorder %v505, 0.0
      %vm522 = vcmp.gt.f32.partialorder %v506, 0.0
      %vm523 = vcmp.gt.f32.partialorder %v507, 0.0
      %vm524 = vcmp.gt.f32.partialorder %v508, 0.0
      %vm525 = vcmp.gt.f32.partialorder %v509, 0.0
      %vm526 = vcmp.gt.f32.partialorder %v510, 0.0
      %vm527 = vcmp.gt.f32.partialorder %v511, 0.0
      %vm528 = vcmp.gt.f32.partialorder %v512, 0.0
      %vm529 = vcmp.gt.f32.partialorder %v513, 0.0
      %vm530 = vcmp.gt.f32.partialorder %v514, 0.0
      %vm531 = vcmp.gt.f32.partialorder %v515, 0.0
      %vm532 = vcmp.gt.f32.partialorder %v516, 0.0
      %vm533 = vcmp.gt.f32.partialorder %v517, 0.0
      %vm534 = vcmp.gt.f32.partialorder %v518, 0.0
      %vm535 = vcmp.gt.f32.partialorder %v519, 0.0
      %v536 = vmul.f32 %v504, 0.2
      %v537 = vmul.f32 %v505, 0.2
      %v538 = vmul.f32 %v506, 0.2
      %v539 = vmul.f32 %v507, 0.2
      %v540 = vmul.f32 %v508, 0.2
      %v541 = vmul.f32 %v509, 0.2
      %v542 = vmul.f32 %v510, 0.2
      %v543 = vmul.f32 %v511, 0.2
      %v544 = vmul.f32 %v512, 0.2
      %v545 = vmul.f32 %v513, 0.2
      %v546 = vmul.f32 %v514, 0.2
      %v547 = vmul.f32 %v515, 0.2
      %v548 = vmul.f32 %v516, 0.2
      %v549 = vmul.f32 %v517, 0.2
      %v550 = vmul.f32 %v518, 0.2
      %v551 = vmul.f32 %v519, 0.2
      %v552 = vsel %vm520, %v504, %v536
      %v553 = vsel %vm521, %v505, %v537
      %v554 = vsel %vm522, %v506, %v538
      %v555 = vsel %vm523, %v507, %v539
      %v556 = vsel %vm524, %v508, %v540
      %v557 = vsel %vm525, %v509, %v541
      %v558 = vsel %vm526, %v510, %v542
      %v559 = vsel %vm527, %v511, %v543
      %v560 = vsel %vm528, %v512, %v544
      %v561 = vsel %vm529, %v513, %v545
      %v562 = vsel %vm530, %v514, %v546
      %v563 = vsel %vm531, %v515, %v547
      %v564 = vsel %vm532, %v516, %v548
      %v565 = vsel %vm533, %v517, %v549
      %v566 = vsel %vm534, %v518, %v550
      %v567 = vsel %vm535, %v519, %v551
      %vm568 = vnez %v402
      %vm569 = vnez %v403
      %vm570 = vnez %v404
      %vm571 = vnez %v405
      %vm572 = vnez %v406
      %vm573 = vnez %v407
      %vm574 = vnez %v408
      %vm575 = vnez %v409
      %vm576 = vnez %v410
      %vm577 = vnez %v411
      %vm578 = vnez %v412
      %vm579 = vnez %v413
      %vm580 = vnez %v414
      %vm581 = vnez %v415
      %vm582 = vnez %v416
      %vm583 = vnez %v417
      %v584 = vsel %vm568, 16843009, 0
      %v585 = vsel %vm569, 16843009, 0
      %v586 = vsel %vm570, 16843009, 0
      %v587 = vsel %vm571, 16843009, 0
      %v588 = vsel %vm572, 16843009, 0
      %v589 = vsel %vm573, 16843009, 0
      %v590 = vsel %vm574, 16843009, 0
      %v591 = vsel %vm575, 16843009, 0
      %v592 = vsel %vm576, 16843009, 0
      %v593 = vsel %vm577, 16843009, 0
      %v594 = vsel %vm578, 16843009, 0
      %v595 = vsel %vm579, 16843009, 0
      %v596 = vsel %vm580, 16843009, 0
      %v597 = vsel %vm581, 16843009, 0
      %v598 = vsel %vm582, 16843009, 0
      %v599 = vsel %vm583, 16843009, 0
      %v600 = vunpack.c.0.s8 %v584
      %v601 = vunpack.c.0.s8 %v585
      %v602 = vunpack.c.0.s8 %v586
      %v603 = vunpack.c.0.s8 %v587
      %v604 = vunpack.c.0.s8 %v588
      %v605 = vunpack.c.0.s8 %v589
      %v606 = vunpack.c.0.s8 %v590
      %v607 = vunpack.c.0.s8 %v591
      %v608 = vunpack.c.0.s8 %v592
      %v609 = vunpack.c.0.s8 %v593
      %v610 = vunpack.c.0.s8 %v594
      %v611 = vunpack.c.0.s8 %v595
      %v612 = vunpack.c.0.s8 %v596
      %v613 = vunpack.c.0.s8 %v597
      %v614 = vunpack.c.0.s8 %v598
      %v615 = vunpack.c.0.s8 %v599
      %vm616 = vcmp.ne.s32.totalorder %v600, 0
      %vm617 = vcmp.ne.s32.totalorder %v601, 0
      %vm618 = vcmp.ne.s32.totalorder %v602, 0
      %vm619 = vcmp.ne.s32.totalorder %v603, 0
      %vm620 = vcmp.ne.s32.totalorder %v604, 0
      %vm621 = vcmp.ne.s32.totalorder %v605, 0
      %vm622 = vcmp.ne.s32.totalorder %v606, 0
      %vm623 = vcmp.ne.s32.totalorder %v607, 0
      %vm624 = vcmp.ne.s32.totalorder %v608, 0
      %vm625 = vcmp.ne.s32.totalorder %v609, 0
      %vm626 = vcmp.ne.s32.totalorder %v610, 0
      %vm627 = vcmp.ne.s32.totalorder %v611, 0
      %vm628 = vcmp.ne.s32.totalorder %v612, 0
      %vm629 = vcmp.ne.s32.totalorder %v613, 0
      %vm630 = vcmp.ne.s32.totalorder %v614, 0
      %vm631 = vcmp.ne.s32.totalorder %v615, 0
      %v632 = vsel %vm616, %v552, -1e+30
      %v633 = vsel %vm617, %v553, -1e+30
      %v634 = vsel %vm618, %v554, -1e+30
      %v635 = vsel %vm619, %v555, -1e+30
      %v636 = vsel %vm620, %v556, -1e+30
      %v637 = vsel %vm621, %v557, -1e+30
      %v638 = vsel %vm622, %v558, -1e+30
      %v639 = vsel %vm623, %v559, -1e+30
      %v640 = vsel %vm624, %v560, -1e+30
      %v641 = vsel %vm625, %v561, -1e+30
      %v642 = vsel %vm626, %v562, -1e+30
      %v643 = vsel %vm627, %v563, -1e+30
      %v644 = vsel %vm628, %v564, -1e+30
      %v645 = vsel %vm629, %v565, -1e+30
      %v646 = vsel %vm630, %v566, -1e+30
      %v647 = vsel %vm631, %v567, -1e+30
      %648 = vmax.xlane.f32.xlu0 %v632
      %v649 = vpop.xlane.xlu0 %648
      %650 = vmax.xlane.f32.xlu0 %v633
      %v651 = vpop.xlane.xlu0 %650
      %652 = vmax.xlane.f32.xlu0 %v634
      %v653 = vpop.xlane.xlu0 %652
      %654 = vmax.xlane.f32.xlu0 %v635
      %v655 = vpop.xlane.xlu0 %654
      %656 = vmax.xlane.f32.xlu0 %v636
      %v657 = vpop.xlane.xlu0 %656
      %658 = vmax.xlane.f32.xlu0 %v637
      %v659 = vpop.xlane.xlu0 %658
      %660 = vmax.xlane.f32.xlu0 %v638
      %v661 = vpop.xlane.xlu0 %660
      %662 = vmax.xlane.f32.xlu0 %v639
      %v663 = vpop.xlane.xlu0 %662
      %664 = vmax.xlane.f32.xlu0 %v640
      %v665 = vpop.xlane.xlu0 %664
      %666 = vmax.xlane.f32.xlu0 %v641
      %v667 = vpop.xlane.xlu0 %666
      %668 = vmax.xlane.f32.xlu0 %v642
      %v669 = vpop.xlane.xlu0 %668
      %670 = vmax.xlane.f32.xlu0 %v643
      %v671 = vpop.xlane.xlu0 %670
      %672 = vmax.xlane.f32.xlu0 %v644
      %v673 = vpop.xlane.xlu0 %672
      %674 = vmax.xlane.f32.xlu0 %v645
      %v675 = vpop.xlane.xlu0 %674
      %676 = vmax.xlane.f32.xlu0 %v646
      %v677 = vpop.xlane.xlu0 %676
      %678 = vmax.xlane.f32.xlu0 %v647
      %v679 = vpop.xlane.xlu0 %678
      %v680 = vsub.f32 %v632, %v649
      %v681 = vsub.f32 %v633, %v651
      %v682 = vsub.f32 %v634, %v653
      %v683 = vsub.f32 %v635, %v655
      %v684 = vsub.f32 %v636, %v657
      %v685 = vsub.f32 %v637, %v659
      %v686 = vsub.f32 %v638, %v661
      %v687 = vsub.f32 %v639, %v663
      %v688 = vsub.f32 %v640, %v665
      %v689 = vsub.f32 %v641, %v667
      %v690 = vsub.f32 %v642, %v669
      %v691 = vsub.f32 %v643, %v671
      %v692 = vsub.f32 %v644, %v673
      %v693 = vsub.f32 %v645, %v675
      %v694 = vsub.f32 %v646, %v677
      %v695 = vsub.f32 %v647, %v679
      %v696 = vmul.f32 %v680, 1.442695
      %v697 = vpow.pop %v696
      %v698 = vmul.f32 %v681, 1.442695
      %v699 = vpow.pop %v698
      %v700 = vmul.f32 %v682, 1.442695
      %v701 = vpow.pop %v700
      %v702 = vmul.f32 %v683, 1.442695
      %v703 = vpow.pop %v702
      %v704 = vmul.f32 %v684, 1.442695
      %v705 = vpow.pop %v704
      %v706 = vmul.f32 %v685, 1.442695
      %v707 = vpow.pop %v706
      %v708 = vmul.f32 %v686, 1.442695
      %v709 = vpow.pop %v708
      %v710 = vmul.f32 %v687, 1.442695
      %v711 = vpow.pop %v710
      %v712 = vmul.f32 %v688, 1.442695
      %v713 = vpow.pop %v712
      %v714 = vmul.f32 %v689, 1.442695
      %v715 = vpow.pop %v714
      %v716 = vmul.f32 %v690, 1.442695
      %v717 = vpow.pop %v716
      %v718 = vmul.f32 %v691, 1.442695
      %v719 = vpow.pop %v718
      %v720 = vmul.f32 %v692, 1.442695
      %v721 = vpow.pop %v720
      %v722 = vmul.f32 %v693, 1.442695
      %v723 = vpow.pop %v722
      %v724 = vmul.f32 %v694, 1.442695
      %v725 = vpow.pop %v724
      %v726 = vmul.f32 %v695, 1.442695
      %v727 = vpow.pop %v726
      %728 = vadd.xlane.f32.xlu0 %v697
      %v729 = vpop.xlane.xlu0 %728
      %730 = vadd.xlane.f32.xlu0 %v699
      %v731 = vpop.xlane.xlu0 %730
      %732 = vadd.xlane.f32.xlu0 %v701
      %v733 = vpop.xlane.xlu0 %732
      %734 = vadd.xlane.f32.xlu0 %v703
      %v735 = vpop.xlane.xlu0 %734
      %736 = vadd.xlane.f32.xlu0 %v705
      %v737 = vpop.xlane.xlu0 %736
      %738 = vadd.xlane.f32.xlu0 %v707
      %v739 = vpop.xlane.xlu0 %738
      %740 = vadd.xlane.f32.xlu0 %v709
      %v741 = vpop.xlane.xlu0 %740
      %742 = vadd.xlane.f32.xlu0 %v711
      %v743 = vpop.xlane.xlu0 %742
      %744 = vadd.xlane.f32.xlu0 %v713
      %v745 = vpop.xlane.xlu0 %744
      %746 = vadd.xlane.f32.xlu0 %v715
      %v747 = vpop.xlane.xlu0 %746
      %748 = vadd.xlane.f32.xlu0 %v717
      %v749 = vpop.xlane.xlu0 %748
      %750 = vadd.xlane.f32.xlu0 %v719
      %v751 = vpop.xlane.xlu0 %750
      %752 = vadd.xlane.f32.xlu0 %v721
      %v753 = vpop.xlane.xlu0 %752
      %754 = vadd.xlane.f32.xlu0 %v723
      %v755 = vpop.xlane.xlu0 %754
      %756 = vadd.xlane.f32.xlu0 %v725
      %v757 = vpop.xlane.xlu0 %756
      %758 = vadd.xlane.f32.xlu0 %v727
      %v759 = vpop.xlane.xlu0 %758
      %v760 = vlog2.pop %v729
      %v761 = vmul.f32 %v760, 0.6931472
      %v762 = vlog2.pop %v731
      %v763 = vmul.f32 %v762, 0.6931472
      %v764 = vlog2.pop %v733
      %v765 = vmul.f32 %v764, 0.6931472
      %v766 = vlog2.pop %v735
      %v767 = vmul.f32 %v766, 0.6931472
      %v768 = vlog2.pop %v737
      %v769 = vmul.f32 %v768, 0.6931472
      %v770 = vlog2.pop %v739
      %v771 = vmul.f32 %v770, 0.6931472
      %v772 = vlog2.pop %v741
      %v773 = vmul.f32 %v772, 0.6931472
      %v774 = vlog2.pop %v743
      %v775 = vmul.f32 %v774, 0.6931472
      %v776 = vlog2.pop %v745
      %v777 = vmul.f32 %v776, 0.6931472
      %v778 = vlog2.pop %v747
      %v779 = vmul.f32 %v778, 0.6931472
      %v780 = vlog2.pop %v749
      %v781 = vmul.f32 %v780, 0.6931472
      %v782 = vlog2.pop %v751
      %v783 = vmul.f32 %v782, 0.6931472
      %v784 = vlog2.pop %v753
      %v785 = vmul.f32 %v784, 0.6931472
      %v786 = vlog2.pop %v755
      %v787 = vmul.f32 %v786, 0.6931472
      %v788 = vlog2.pop %v757
      %v789 = vmul.f32 %v788, 0.6931472
      %v790 = vlog2.pop %v759
      %v791 = vmul.f32 %v790, 0.6931472
      %v792 = vadd.f32 %v649, %v761
      %v793 = vadd.f32 %v651, %v763
      %v794 = vadd.f32 %v653, %v765
      %v795 = vadd.f32 %v655, %v767
      %v796 = vadd.f32 %v657, %v769
      %v797 = vadd.f32 %v659, %v771
      %v798 = vadd.f32 %v661, %v773
      %v799 = vadd.f32 %v663, %v775
      %v800 = vadd.f32 %v665, %v777
      %v801 = vadd.f32 %v667, %v779
      %v802 = vadd.f32 %v669, %v781
      %v803 = vadd.f32 %v671, %v783
      %v804 = vadd.f32 %v673, %v785
      %v805 = vadd.f32 %v675, %v787
      %v806 = vadd.f32 %v677, %v789
      %v807 = vadd.f32 %v679, %v791
      %vm808 = vcmask 7168
      %809 = vst.msk [vmem:[%s363] sm:$0xff] %vm808, %v792
      %810 = vst.msk [vmem:[%s363 + $0x8] sm:$0xff] %vm808, %v793
      %811 = vst.msk [vmem:[%s363 + $0x10] sm:$0xff] %vm808, %v794
      %812 = vst.msk [vmem:[%s363 + $0x18] sm:$0xff] %vm808, %v795
      %813 = vst.msk [vmem:[%s363 + $0x20] sm:$0xff] %vm808, %v796
      %814 = vst.msk [vmem:[%s363 + $0x28] sm:$0xff] %vm808, %v797
      %815 = vst.msk [vmem:[%s363 + $0x30] sm:$0xff] %vm808, %v798
      %816 = vst.msk [vmem:[%s363 + $0x38] sm:$0xff] %vm808, %v799
      %817 = vst.msk [vmem:[%s363 + $0x40] sm:$0xff] %vm808, %v800
      %818 = vst.msk [vmem:[%s363 + $0x48] sm:$0xff] %vm808, %v801
      %819 = vst.msk [vmem:[%s363 + $0x50] sm:$0xff] %vm808, %v802
      %820 = vst.msk [vmem:[%s363 + $0x58] sm:$0xff] %vm808, %v803
      %821 = vst.msk [vmem:[%s363 + $0x60] sm:$0xff] %vm808, %v804
      %822 = vst.msk [vmem:[%s363 + $0x68] sm:$0xff] %vm808, %v805
      %823 = vst.msk [vmem:[%s363 + $0x70] sm:$0xff] %vm808, %v806
      %824 = vst.msk [vmem:[%s363 + $0x78] sm:$0xff] %vm808, %v807
      %825 = vmatprep.subr.mxu0 0.0
      %826 = vmatpush1.msra.mxu0 %v384
      %827 = vmatprep.subr.mxu0 0.0
      %828 = vmatpush1.msra.mxu0 %v383
      %829 = vmatprep.subr.mxu0 0.0
      %830 = vmatpush1.msra.mxu0 %v382
      %831 = vmatprep.subr.mxu0 0.0
      %832 = vmatpush1.msra.mxu0 %v381
      %833 = vmatprep.subr.mxu0 0.0
      %834 = vmatpush1.msra.mxu0 %v380
      %835 = vmatprep.subr.mxu0 0.0
      %836 = vmatpush1.msra.mxu0 %v379
      %837 = vmatprep.subr.mxu0 0.0
      %838 = vmatpush1.msra.mxu0 %v378
      %839 = vmatprep.subr.mxu0 0.0
      %840 = vmatpush1.msra.mxu0 %v377
      %841 = vmatprep.subr.mxu0 0.0
      %842 = vmatpush1.msra.mxu0 %v376
      %843 = vmatprep.subr.mxu0 0.0
      %844 = vmatpush1.msra.mxu0 %v375
      %845 = vmatprep.subr.mxu0 0.0
      %846 = vmatpush1.msra.mxu0 %v374
      %847 = vmatprep.subr.mxu0 0.0
      %848 = vmatpush1.msra.mxu0 %v373
      %849 = vmatprep.subr.mxu0 0.0
      %850 = vmatpush1.msra.mxu0 %v372
      %851 = vmatprep.subr.mxu0 0.0
      %852 = vmatpush1.msra.mxu0 %v371
      %853 = vmatprep.subr.mxu0 0.0
      %854 = vmatpush1.msra.mxu0 %v370
      %855 = vmatprep.subr.mxu0 0.0
      %856 = vmatpush1.msra.mxu0 %v369
      %857 = vmatprep.subr.mxu0 0.0
      %858 = vmatpush2.msra.mxu0 0.0
      %859 = vmatprep.subr.mxu0 0.0
      %860 = vmatpush2.msra.mxu0 0.0
      %861 = vmatprep.subr.mxu0 0.0
      %862 = vmatpush2.msra.mxu0 0.0
      %863 = vmatprep.subr.mxu0 0.0
      %864 = vmatpush2.msra.mxu0 0.0
      %865 = vmatprep.subr.mxu0 0.0
      %866 = vmatpush2.msra.mxu0 0.0
      %867 = vmatprep.subr.mxu0 0.0
      %868 = vmatpush2.msra.mxu0 0.0
      %869 = vmatprep.subr.mxu0 0.0
      %870 = vmatpush2.msra.mxu0 0.0
      %871 = vmatprep.subr.mxu0 0.0
      %872 = vmatpush2.msra.mxu0 0.0
      %873 = vmatprep.subr.mxu0 0.0
      %874 = vmatpush2.msra.mxu0 0.0
      %875 = vmatprep.subr.mxu0 0.0
      %876 = vmatpush2.msra.mxu0 0.0
      %877 = vmatprep.subr.mxu0 0.0
      %878 = vmatpush2.msra.mxu0 0.0
      %879 = vmatprep.subr.mxu0 0.0
      %880 = vmatpush2.msra.mxu0 0.0
      %881 = vmatprep.subr.mxu0 0.0
      %882 = vmatpush2.msra.mxu0 0.0
      %883 = vmatprep.subr.mxu0 0.0
      %884 = vmatpush2.msra.mxu0 0.0
      %885 = vmatprep.subr.mxu0 0.0
      %886 = vmatpush2.msra.mxu0 0.0
      %887 = vmatprep.subr.mxu0 0.0
      %888 = vmatpush2.msra.mxu0 0.0
      %889 = vmatprep.mubr.f32.mxu0 0.0
      %890 = vmatmul.mubr.f32.gmra.mxu0 %v697
      %v891 = vpop.f32.mrf.mxu0
      %v892 = vadd.f32 0.0, %v891
      %v893 = vpop.f32.mrf.mxu0
      %894 = vmatprep.mubr.f32.mxu0 0.0
      %895 = vmatmul.mubr.f32.gmra.mxu0 %v699
      %v896 = vpop.f32.mrf.mxu0
      %v897 = vadd.f32 0.0, %v896
      %v898 = vpop.f32.mrf.mxu0
      %899 = vmatprep.mubr.f32.mxu0 0.0
      %900 = vmatmul.mubr.f32.gmra.mxu0 %v701
      %v901 = vpop.f32.mrf.mxu0
      %v902 = vadd.f32 0.0, %v901
      %v903 = vpop.f32.mrf.mxu0
      %904 = vmatprep.mubr.f32.mxu0 0.0
      %905 = vmatmul.mubr.f32.gmra.mxu0 %v703
      %v906 = vpop.f32.mrf.mxu0
      %v907 = vadd.f32 0.0, %v906
      %v908 = vpop.f32.mrf.mxu0
      %909 = vmatprep.mubr.f32.mxu0 0.0
      %910 = vmatmul.mubr.f32.gmra.mxu0 %v705
      %v911 = vpop.f32.mrf.mxu0
      %v912 = vadd.f32 0.0, %v911
      %v913 = vpop.f32.mrf.mxu0
      %914 = vmatprep.mubr.f32.mxu0 0.0
      %915 = vmatmul.mubr.f32.gmra.mxu0 %v707
      %v916 = vpop.f32.mrf.mxu0
      %v917 = vadd.f32 0.0, %v916
      %v918 = vpop.f32.mrf.mxu0
      %919 = vmatprep.mubr.f32.mxu0 0.0
      %920 = vmatmul.mubr.f32.gmra.mxu0 %v709
      %v921 = vpop.f32.mrf.mxu0
      %v922 = vadd.f32 0.0, %v921
      %v923 = vpop.f32.mrf.mxu0
      %924 = vmatprep.mubr.f32.mxu0 0.0
      %925 = vmatmul.mubr.f32.gmra.mxu0 %v711
      %v926 = vpop.f32.mrf.mxu0
      %v927 = vadd.f32 0.0, %v926
      %v928 = vpop.f32.mrf.mxu0
      %929 = vmatprep.mubr.f32.mxu0 0.0
      %930 = vmatmul.mubr.f32.gmra.mxu0 %v713
      %v931 = vpop.f32.mrf.mxu0
      %v932 = vadd.f32 0.0, %v931
      %v933 = vpop.f32.mrf.mxu0
      %934 = vmatprep.mubr.f32.mxu0 0.0
      %935 = vmatmul.mubr.f32.gmra.mxu0 %v715
      %v936 = vpop.f32.mrf.mxu0
      %v937 = vadd.f32 0.0, %v936
      %v938 = vpop.f32.mrf.mxu0
      %939 = vmatprep.mubr.f32.mxu0 0.0
      %940 = vmatmul.mubr.f32.gmra.mxu0 %v717
      %v941 = vpop.f32.mrf.mxu0
      %v942 = vadd.f32 0.0, %v941
      %v943 = vpop.f32.mrf.mxu0
      %944 = vmatprep.mubr.f32.mxu0 0.0
      %945 = vmatmul.mubr.f32.gmra.mxu0 %v719
      %v946 = vpop.f32.mrf.mxu0
      %v947 = vadd.f32 0.0, %v946
      %v948 = vpop.f32.mrf.mxu0
      %949 = vmatprep.mubr.f32.mxu0 0.0
      %950 = vmatmul.mubr.f32.gmra.mxu0 %v721
      %v951 = vpop.f32.mrf.mxu0
      %v952 = vadd.f32 0.0, %v951
      %v953 = vpop.f32.mrf.mxu0
      %954 = vmatprep.mubr.f32.mxu0 0.0
      %955 = vmatmul.mubr.f32.gmra.mxu0 %v723
      %v956 = vpop.f32.mrf.mxu0
      %v957 = vadd.f32 0.0, %v956
      %v958 = vpop.f32.mrf.mxu0
      %959 = vmatprep.mubr.f32.mxu0 0.0
      %960 = vmatmul.mubr.f32.gmra.mxu0 %v725
      %v961 = vpop.f32.mrf.mxu0
      %v962 = vadd.f32 0.0, %v961
      %v963 = vpop.f32.mrf.mxu0
      %964 = vmatprep.mubr.f32.mxu0 0.0
      %965 = vmatmul.mubr.f32.gmra.mxu0 %v727
      %v966 = vpop.f32.mrf.mxu0
      %v967 = vadd.f32 0.0, %v966
      %v968 = vpop.f32.mrf.mxu0
      %969 = vdwg.mxu0
      %v970 = vrcp.pop %v729
      %v971 = vmul.f32 %v892, %v970
      %v972 = vrcp.pop %v731
      %v973 = vmul.f32 %v897, %v972
      %v974 = vrcp.pop %v733
      %v975 = vmul.f32 %v902, %v974
      %v976 = vrcp.pop %v735
      %v977 = vmul.f32 %v907, %v976
      %v978 = vrcp.pop %v737
      %v979 = vmul.f32 %v912, %v978
      %v980 = vrcp.pop %v739
      %v981 = vmul.f32 %v917, %v980
      %v982 = vrcp.pop %v741
      %v983 = vmul.f32 %v922, %v982
      %v984 = vrcp.pop %v743
      %v985 = vmul.f32 %v927, %v984
      %v986 = vrcp.pop %v745
      %v987 = vmul.f32 %v932, %v986
      %v988 = vrcp.pop %v747
      %v989 = vmul.f32 %v937, %v988
      %v990 = vrcp.pop %v749
      %v991 = vmul.f32 %v942, %v990
      %v992 = vrcp.pop %v751
      %v993 = vmul.f32 %v947, %v992
      %v994 = vrcp.pop %v753
      %v995 = vmul.f32 %v952, %v994
      %v996 = vrcp.pop %v755
      %v997 = vmul.f32 %v957, %v996
      %v998 = vrcp.pop %v757
      %v999 = vmul.f32 %v962, %v998
      %v1000 = vrcp.pop %v759
      %v1001 = vmul.f32 %v967, %v1000
      %v1002 = vld [vmem:[%s338] sm:$0x1]
      %v1004 = vlaneseq
      %v1005 = vshrl.u32 %v1004, 7
      %v1006 = vsub.s32 0, %v1005
      %v1007 = vrot.slane %v1002, %v1006
      %v1009 = vadd.f32 %v971, %v1007
      %v1010 = vadd.f32 %v973, %v1007
      %v1011 = vadd.f32 %v975, %v1007
      %v1012 = vadd.f32 %v977, %v1007
      %v1013 = vadd.f32 %v979, %v1007
      %v1014 = vadd.f32 %v981, %v1007
      %v1015 = vadd.f32 %v983, %v1007
      %v1016 = vadd.f32 %v985, %v1007
      %v1017 = vadd.f32 %v987, %v1007
      %v1018 = vadd.f32 %v989, %v1007
      %v1019 = vadd.f32 %v991, %v1007
      %v1020 = vadd.f32 %v993, %v1007
      %v1021 = vadd.f32 %v995, %v1007
      %v1022 = vadd.f32 %v997, %v1007
      %v1023 = vadd.f32 %v999, %v1007
      %v1024 = vadd.f32 %v1001, %v1007
      %v1025 = vmax.f32 %v1009, 0.0
      %v1026 = vmax.f32 %v1010, 0.0
      %v1027 = vmax.f32 %v1011, 0.0
      %v1028 = vmax.f32 %v1012, 0.0
      %v1029 = vmax.f32 %v1013, 0.0
      %v1030 = vmax.f32 %v1014, 0.0
      %v1031 = vmax.f32 %v1015, 0.0
      %v1032 = vmax.f32 %v1016, 0.0
      %v1033 = vmax.f32 %v1017, 0.0
      %v1034 = vmax.f32 %v1018, 0.0
      %v1035 = vmax.f32 %v1019, 0.0
      %v1036 = vmax.f32 %v1020, 0.0
      %v1037 = vmax.f32 %v1021, 0.0
      %v1038 = vmax.f32 %v1022, 0.0
      %v1039 = vmax.f32 %v1023, 0.0
      %v1040 = vmax.f32 %v1024, 0.0
      %vm1041 = vcmask 64512
      %1042 = vst.msk [vmem:[%s353] sm:$0xff] %vm1041, %v1025
      %1043 = vst.msk [vmem:[%s353 + $0x8] sm:$0xff] %vm1041, %v1026
      %1044 = vst.msk [vmem:[%s353 + $0x10] sm:$0xff] %vm1041, %v1027
      %1045 = vst.msk [vmem:[%s353 + $0x18] sm:$0xff] %vm1041, %v1028
      %1046 = vst.msk [vmem:[%s353 + $0x20] sm:$0xff] %vm1041, %v1029
      %1047 = vst.msk [vmem:[%s353 + $0x28] sm:$0xff] %vm1041, %v1030
      %1048 = vst.msk [vmem:[%s353 + $0x30] sm:$0xff] %vm1041, %v1031
      %1049 = vst.msk [vmem:[%s353 + $0x38] sm:$0xff] %vm1041, %v1032
      %1050 = vst.msk [vmem:[%s353 + $0x40] sm:$0xff] %vm1041, %v1033
      %1051 = vst.msk [vmem:[%s353 + $0x48] sm:$0xff] %vm1041, %v1034
      %1052 = vst.msk [vmem:[%s353 + $0x50] sm:$0xff] %vm1041, %v1035
      %1053 = vst.msk [vmem:[%s353 + $0x58] sm:$0xff] %vm1041, %v1036
      %1054 = vst.msk [vmem:[%s353 + $0x60] sm:$0xff] %vm1041, %v1037
      %1055 = vst.msk [vmem:[%s353 + $0x68] sm:$0xff] %vm1041, %v1038
      %1056 = vst.msk [vmem:[%s353 + $0x70] sm:$0xff] %vm1041, %v1039
      %1057 = vst.msk [vmem:[%s353 + $0x78] sm:$0xff] %vm1041, %v1040
      %s1058 = smul.u32 16, %s22
      %p1059 = scmp.lt.s32.totalorder %s23, 3
      %s1060 = scalar_select %p1059, %s23, 3
      %p1061 = scmp.lt.s32.totalorder %s1058, 15
      %s1062 = scalar_select %p1061, %s1058, 15
      %s1063 = smul.addr %s1060, 16
      %s1064 = sadd.s32 %s1062, %s1063
      %s1065 = smul.addr %s1064, 8
      %s1066 = scalar_lea.vmem %s5, %s1065
      %s1067 = smul.u32 16, %s22
      %p1068 = scmp.lt.s32.totalorder %s23, 3
      %s1069 = scalar_select %p1068, %s23, 3
      %p1070 = scmp.lt.s32.totalorder %s1067, 15
      %s1071 = scalar_select %p1070, %s1067, 15
      %s1072 = smul.addr %s1069, 16
      %s1073 = sadd.s32 %s1071, %s1072
      %s1074 = smul.addr %s1073, 8
      %s1075 = scalar_lea.vmem %s6, %s1074
      // Predicated region
      $region41: #{graph_transformer_teacher.5} parent=39 // pred_check
        %p1076 = pneg %p177
      $region42: #{graph_transformer_teacher.5} parent=39 // pred_check_branch
        %1078 = sbr.rel (%p1076) target = $region44
      $region43: #{graph_transformer_teacher.5} parent=39 // pred_region
        %s1079 = smul.u32 16, %s22
      $region44: #{graph_transformer_teacher.5} parent=39 // pred_fallthru
        _
      // Predicated region
      $region45: #{graph_transformer_teacher.5} parent=39 // pred_check
        %p1080 = pneg %p205
      $region46: #{graph_transformer_teacher.5} parent=39 // pred_check_branch
        %1082 = sbr.rel (%p1080) target = $region48
      $region47: #{graph_transformer_teacher.5} parent=39 // pred_region
        %s1083 = smul.u32 16, %s22
      $region48: #{graph_transformer_teacher.5} parent=39 // pred_fallthru
        _
    $region40: #{graph_transformer_teacher.5} parent=5 // pred_fallthru
      _
    %p1084 = scmp.le.s32.totalorder 2, %s13
    // Predicated region
    $region49: #{graph_transformer_teacher.5} parent=5 // pred_check
      %p1085 = pneg %p1084
    $region50: #{graph_transformer_teacher.5} parent=5 // pred_check_branch
      %1087 = sbr.rel (%p1085) target = $region52
    $region51: #{graph_transformer_teacher.5} parent=5 // pred_region
      %s1088 = ssub.s32 %s13, 2
      // Predicated region
      $region53: #{graph_transformer_teacher.5} parent=51 // pred_check
        %p1089 = pneg %p183
      $region54: #{graph_transformer_teacher.5} parent=51 // pred_check_branch
        %1091 = sbr.rel (%p1089) target = $region56
      $region55: #{graph_transformer_teacher.5} parent=51 // pred_region
        %s1092 = smul.u32 16, %s24
        %p1093 = scmp.lt.s32.totalorder %s25, 3
        %s1094 = scalar_select %p1093, %s25, 3
        %p1095 = scmp.lt.s32.totalorder %s1092, 15
        %s1096 = scalar_select %p1095, %s1092, 15
        %s1097 = smul.addr %s1094, 16
        %s1098 = sadd.s32 %s1096, %s1097
        %s1099 = smul.addr %s1098, 8
        %s1100 = scalar_lea.vmem %s5, %s1099
      $region56: #{graph_transformer_teacher.5} parent=51 // pred_fallthru
        _
      // Predicated region
      $region57: #{graph_transformer_teacher.5} parent=51 // pred_check
        %p1101 = pneg %p211
      $region58: #{graph_transformer_teacher.5} parent=51 // pred_check_branch
        %1103 = sbr.rel (%p1101) target = $region60
      $region59: #{graph_transformer_teacher.5} parent=51 // pred_region
        %s1104 = smul.u32 16, %s24
        %p1105 = scmp.lt.s32.totalorder %s25, 3
        %s1106 = scalar_select %p1105, %s25, 3
        %p1107 = scmp.lt.s32.totalorder %s1104, 15
        %s1108 = scalar_select %p1107, %s1104, 15
        %s1109 = smul.addr %s1106, 16
        %s1110 = sadd.s32 %s1108, %s1109
        %s1111 = smul.addr %s1110, 8
        %s1112 = scalar_lea.vmem %s6, %s1111
      $region60: #{graph_transformer_teacher.5} parent=51 // pred_fallthru
        _
    $region52: #{graph_transformer_teacher.5} parent=5 // pred_fallthru
      _
  $region6: #{graph_transformer_teacher.5} parent=0 // loop_footer
    %s17 = sadd.s32 1, %s13
  $region7: #{graph_transformer_teacher.5} parent=0 // loop_footer_branch
    %12 = sbr.rel target = $region3
  $region8: #{graph_transformer_teacher.5} parent=0 // loop_exit
    _

// kernel: graph_transformer_teacher.7
$region0: #{graph_transformer_teacher.7}
  #allocation0 [shape = 'u32[]', space=smem, size = 0x4, offset = 0x4, fixed_abs, tag = 'smem constant byte address 0x4 - core index']
  #allocation1 [shape = 'u32[144,128]{1,0:T(1,128)}', space=vmem, size = 0x12000, scoped, tag = 'internal scratch']
  %s0 = inlined_call_operand.vmem [shape: f32[4,128,8], index: 0, kind: input, shape index: {}]
  %s1 = inlined_call_operand.vmem [shape: f32[4,1,128], index: 1, kind: input, shape index: {}]
  %s2 = inlined_call_operand.vmem [shape: f32[4,128,1], index: 2, kind: input, shape index: {}]
  %s3 = inlined_call_operand.vmem [shape: f32[1,1,8], index: 3, kind: input, shape index: {}]
  %s4 = inlined_call_operand.vmem [shape: s8[128,128], index: 4, kind: input, shape index: {}]
  %s5 = inlined_call_operand.vmem [shape: f32[128,8], index: 5, kind: output, shape index: {0}]
  %s6 = inlined_call_operand.vmem [shape: f32[4,128,1], index: 6, kind: output, shape index: {1}]
  %7 = xla_tuple %s5, %s6
  %s8 = sld [smem:[#allocation0]]
  $region69: #{graph_transformer_teacher.7} parent=0
    _
  %s10 = ssub.s32 1, %s8
  %s11 = scalar_select 0, %s10, %s8
  loop: start=0, step=1, limit=6
  $region2: #{graph_transformer_teacher.7} parent=0 // loop_pre_header
    _
  $region3: #{graph_transformer_teacher.7} parent=0 // loop_header
    %s13 = sphi 0, %s17
    %p14 = scmp.ge.s32.totalorder %s13, 6
    %s20 = sphi 0, %s32
    %s21 = sphi 0, %s28
    %s22 = sphi 0, %s20
    %s23 = sphi 0, %s21
    %s24 = sphi 0, %s22
    %s25 = sphi 0, %s23
    %s33 = sphi 0, %s33
    %s35 = sphi 0, %s33
    %s36 = sphi 0, %s35
    %s50 = sphi 0, %s36
    %s56 = sphi 0, %s58
    %s59 = sphi 0, %s56
    %s60 = sphi 0, %s59
    %s76 = sphi 0, %s60
    %s84 = sphi 0, %s86
    %s87 = sphi 0, %s84
    %s88 = sphi 0, %s87
    %s104 = sphi 0, %s88
    %s108 = sphi 0, %s108
    %s110 = sphi 0, %s108
    %s111 = sphi 0, %s110
    %s125 = sphi 0, %s111
    %s131 = sphi 0, %s133
    %s134 = sphi 0, %s131
    %s135 = sphi 0, %s134
    %s151 = sphi 0, %s135
    %s157 = sphi 0, %s159
    %s160 = sphi 0, %s157
    %s161 = sphi 0, %s160
    %s177 = sphi 0, %s161
    %s185 = sphi 0, %s187
    %s188 = sphi 0, %s185
    %s189 = sphi 0, %s188
    %s205 = sphi 0, %s189
  $region4: #{graph_transformer_teacher.7} parent=0 // loop_header_branch
    %16 = sbr.rel (%p14) target = $region8
  $region5: #{graph_transformer_teacher.7} parent=0 // loop_body
    %s18 = ssub.s32 %s13, 1
    %s19 = ssub.s32 %s13, 2
    %s26 = sadd.s32 1, %s21
    %p27 = scmp.ge.s32.totalorder %s26, 4
    %s28 = scalar_select %p27, 0, %s26
    %s29 = sadd.s32 1, %s20
    %s30 = scalar_select %p27, %s29, %s20
    %p31 = scmp.ge.s32.totalorder %s30, 1
    %s32 = scalar_select %p31, 0, %s30
    %s34 = sadd.s32 %s33, 1
    %p37 = scmp.eq.s32.totalorder %s13, 3
    %p38 = scmp.ne.s32.totalorder %s33, %s35
    %p39 = scmp.eq.s32.totalorder %s13, 0
    %p40 = por %p38, %p39
    %p41 = scmp.ne.s32.totalorder %s33, %s35
    %p42 = scmp.eq.s32.totalorder %s18, 3
    %p43 = por %p41, %p42
    %p44 = scmp.ne.s32.totalorder %s35, %s36
    %p45 = scmp.eq.s32.totalorder %s18, 0
    %p46 = por %p44, %p45
    %p47 = scmp.ne.s32.totalorder %s35, %s36
    %p48 = scmp.eq.s32.totalorder %s19, 3
    %p49 = por %p47, %p48
    %p51 = scmp.ne.s32.totalorder %s36, %s50
    %p52 = scmp.eq.s32.totalorder %s19, 0
    %p53 = por %p51, %p52
    %s54 = ssub.s32 %s21, %s28
    %p55 = scmp.eq.s32.totalorder %s54, 0
    %s57 = sadd.s32 %s56, 1
    %s58 = scalar_select %p55, %s56, %s57
    %p61 = pneg %p55
    %p62 = scmp.eq.s32.totalorder %s13, 3
    %p63 = por %p61, %p62
    %p64 = scmp.ne.s32.totalorder %s56, %s59
    %p65 = scmp.eq.s32.totalorder %s13, 0
    %p66 = por %p64, %p65
    %p67 = scmp.ne.s32.totalorder %s56, %s59
    %p68 = scmp.eq.s32.totalorder %s18, 3
    %p69 = por %p67, %p68
    %p70 = scmp.ne.s32.totalorder %s59, %s60
    %p71 = scmp.eq.s32.totalorder %s18, 0
    %p72 = por %p70, %p71
    %p73 = scmp.ne.s32.totalorder %s59, %s60
    %p74 = scmp.eq.s32.totalorder %s19, 3
    %p75 = por %p73, %p74
    %p77 = scmp.ne.s32.totalorder %s60, %s76
    %p78 = scmp.eq.s32.totalorder %s19, 0
    %p79 = por %p77, %p78
    %s80 = ssub.s32 %s21, %s28
    %s81 = ssub.s32 %s20, %s32
    %s82 = sor.u32 %s80, %s81
    %p83 = scmp.eq.s32.totalorder %s82, 0
    %s85 = sadd.s32 %s84, 1
    %s86 = scalar_select %p83, %s84, %s85
    %p89 = pneg %p83
    %p90 = scmp.eq.s32.totalorder %s13, 3
    %p91 = por %p89, %p90
    %p92 = scmp.ne.s32.totalorder %s84, %s87
    %p93 = scmp.eq.s32.totalorder %s13, 0
    %p94 = por %p92, %p93
    %p95 = scmp.ne.s32.totalorder %s84, %s87
    %p96 = scmp.eq.s32.totalorder %s18, 3
    %p97 = por %p95, %p96
    %p98 = scmp.ne.s32.totalorder %s87, %s88
    %p99 = scmp.eq.s32.totalorder %s18, 0
    %p100 = por %p98, %p99
    %p101 = scmp.ne.s32.totalorder %s87, %s88
    %p102 = scmp.eq.s32.totalorder %s19, 3
    %p103 = por %p101, %p102
    %p105 = scmp.ne.s32.totalorder %s88, %s104
    %p106 = scmp.eq.s32.totalorder %s19, 0
    %p107 = por %p105, %p106
    %s109 = sadd.s32 %s108, 1
    %p112 = scmp.eq.s32.totalorder %s13, 3
    %p113 = scmp.ne.s32.totalorder %s108, %s110
    %p114 = scmp.eq.s32.totalorder %s13, 0
    %p115 = por %p113, %p114
    %p116 = scmp.ne.s32.totalorder %s108, %s110
    %p117 = scmp.eq.s32.totalorder %s18, 3
    %p118 = por %p116, %p117
    %p119 = scmp.ne.s32.totalorder %s110, %s111
    %p120 = scmp.eq.s32.totalorder %s18, 0
    %p121 = por %p119, %p120
    %p122 = scmp.ne.s32.totalorder %s110, %s111
    %p123 = scmp.eq.s32.totalorder %s19, 3
    %p124 = por %p122, %p123
    %p126 = scmp.ne.s32.totalorder %s111, %s125
    %p127 = scmp.eq.s32.totalorder %s19, 0
    %p128 = por %p126, %p127
    %s129 = ssub.s32 %s20, %s32
    %p130 = scmp.eq.s32.totalorder %s129, 0
    %s132 = sadd.s32 %s131, 1
    %s133 = scalar_select %p130, %s131, %s132
    %p136 = pneg %p130
    %p137 = scmp.eq.s32.totalorder %s13, 3
    %p138 = por %p136, %p137
    %p139 = scmp.ne.s32.totalorder %s131, %s134
    %p140 = scmp.eq.s32.totalorder %s13, 0
    %p141 = por %p139, %p140
    %p142 = scmp.ne.s32.totalorder %s131, %s134
    %p143 = scmp.eq.s32.totalorder %s18, 3
    %p144 = por %p142, %p143
    %p145 = scmp.ne.s32.totalorder %s134, %s135
    %p146 = scmp.eq.s32.totalorder %s18, 0
    %p147 = por %p145, %p146
    %p148 = scmp.ne.s32.totalorder %s134, %s135
    %p149 = scmp.eq.s32.totalorder %s19, 3
    %p150 = por %p148, %p149
    %p152 = scmp.ne.s32.totalorder %s135, %s151
    %p153 = scmp.eq.s32.totalorder %s19, 0
    %p154 = por %p152, %p153
    %s155 = ssub.s32 %s20, %s32
    %p156 = scmp.eq.s32.totalorder %s155, 0
    %s158 = sadd.s32 %s157, 1
    %s159 = scalar_select %p156, %s157, %s158
    %p162 = pneg %p156
    %p163 = scmp.eq.s32.totalorder %s13, 3
    %p164 = por %p162, %p163
    %p165 = scmp.ne.s32.totalorder %s157, %s160
    %p166 = scmp.eq.s32.totalorder %s13, 0
    %p167 = por %p165, %p166
    %p168 = scmp.ne.s32.totalorder %s157, %s160
    %p169 = scmp.eq.s32.totalorder %s18, 3
    %p170 = por %p168, %p169
    %p171 = scmp.ne.s32.totalorder %s160, %s161
    %p172 = scmp.eq.s32.totalorder %s18, 0
    %p173 = por %p171, %p172
    %p174 = scmp.ne.s32.totalorder %s160, %s161
    %p175 = scmp.eq.s32.totalorder %s19, 3
    %p176 = por %p174, %p175
    %p178 = scmp.ne.s32.totalorder %s161, %s177
    %p179 = scmp.eq.s32.totalorder %s19, 0
    %p180 = por %p178, %p179
    %s181 = ssub.s32 %s21, %s28
    %s182 = ssub.s32 %s20, %s32
    %s183 = sor.u32 %s181, %s182
    %p184 = scmp.eq.s32.totalorder %s183, 0
    %s186 = sadd.s32 %s185, 1
    %s187 = scalar_select %p184, %s185, %s186
    %p190 = pneg %p184
    %p191 = scmp.eq.s32.totalorder %s13, 3
    %p192 = por %p190, %p191
    %p193 = scmp.ne.s32.totalorder %s185, %s188
    %p194 = scmp.eq.s32.totalorder %s13, 0
    %p195 = por %p193, %p194
    %p196 = scmp.ne.s32.totalorder %s185, %s188
    %p197 = scmp.eq.s32.totalorder %s18, 3
    %p198 = por %p196, %p197
    %p199 = scmp.ne.s32.totalorder %s188, %s189
    %p200 = scmp.eq.s32.totalorder %s18, 0
    %p201 = por %p199, %p200
    %p202 = scmp.ne.s32.totalorder %s188, %s189
    %p203 = scmp.eq.s32.totalorder %s19, 3
    %p204 = por %p202, %p203
    %p206 = scmp.ne.s32.totalorder %s189, %s205
    %p207 = scmp.eq.s32.totalorder %s19, 0
    %p208 = por %p206, %p207
    %p209 = scmp.le.s32.totalorder 1, %s13
    %p210 = scmp.lt.s32.totalorder %s13, 5
    %p211 = pnand %p209, %p210
    %p212 = pneg %p211
    // Predicated region
    $region9: #{graph_transformer_teacher.7} parent=5 // pred_check
      _
    $region10: #{graph_transformer_teacher.7} parent=5 // pred_check_branch
      %214 = sbr.rel (%p211) target = $region12
    $region11: #{graph_transformer_teacher.7} parent=5 // pred_region
      %s215 = ssub.s32 %s13, 1
      // Predicated region
      $region13: #{graph_transformer_teacher.7} parent=11 // pred_check
        %p216 = pneg %p46
      $region14: #{graph_transformer_teacher.7} parent=11 // pred_check_branch
        %218 = sbr.rel (%p216) target = $region16
      $region15: #{graph_transformer_teacher.7} parent=11 // pred_region
        _
      $region16: #{graph_transformer_teacher.7} parent=11 // pred_fallthru
        _
      // Predicated region
      $region17: #{graph_transformer_teacher.7} parent=11 // pred_check
        %p219 = pneg %p121
      $region18: #{graph_transformer_teacher.7} parent=11 // pred_check_branch
        %221 = sbr.rel (%p219) target = $region20
      $region19: #{graph_transformer_teacher.7} parent=11 // pred_region
        _
      $region20: #{graph_transformer_teacher.7} parent=11 // pred_fallthru
        _
      // Predicated region
      $region21: #{graph_transformer_teacher.7} parent=11 // pred_check
        %p222 = pneg %p147
      $region22: #{graph_transformer_teacher.7} parent=11 // pred_check_branch
        %224 = sbr.rel (%p222) target = $region24
      $region23: #{graph_transformer_teacher.7} parent=11 // pred_region
        %s225 = smul.u32 16, %s22
        %p226 = scmp.lt.s32.totalorder %s225, 15
        %s227 = scalar_select %p226, %s225, 15
        %s228 = smul.addr %s227, 2
        %s229 = scalar_lea.vmem %s4, %s228
        %s230 = smul.u32 16, %s22
      $region24: #{graph_transformer_teacher.7} parent=11 // pred_fallthru
        _
    $region12: #{graph_transformer_teacher.7} parent=5 // pred_fallthru
      _
    %p231 = scmp.lt.s32.totalorder %s13, 4
    // Predicated region
    $region25: #{graph_transformer_teacher.7} parent=5 // pred_check
      %p232 = pneg %p231
    $region26: #{graph_transformer_teacher.7} parent=5 // pred_check_branch
      %234 = sbr.rel (%p232) target = $region28
    $region27: #{graph_transformer_teacher.7} parent=5 // pred_region
      // Predicated region
      $region29: #{graph_transformer_teacher.7} parent=27 // pred_check
        %p235 = pneg %p66
      $region30: #{graph_transformer_teacher.7} parent=27 // pred_check_branch
        %237 = sbr.rel (%p235) target = $region32
      $region31: #{graph_transformer_teacher.7} parent=27 // pred_region
        %p238 = scmp.lt.s32.totalorder %s21, 3
        %s239 = scalar_select %p238, %s21, 3
        %s240 = scalar_lea.vmem %s1, %s239
      $region32: #{graph_transformer_teacher.7} parent=27 // pred_fallthru
        _
      // Predicated region
      $region33: #{graph_transformer_teacher.7} parent=27 // pred_check
        %p241 = pneg %p94
      $region34: #{graph_transformer_teacher.7} parent=27 // pred_check_branch
        %243 = sbr.rel (%p241) target = $region36
      $region35: #{graph_transformer_teacher.7} parent=27 // pred_region
        %s244 = smul.u32 16, %s20
        %p245 = scmp.lt.s32.totalorder %s21, 3
        %s246 = scalar_select %p245, %s21, 3
        %p247 = scmp.lt.s32.totalorder %s244, 15
        %s248 = scalar_select %p247, %s244, 15
        %s249 = smul.addr %s246, 16
        %s250 = sadd.s32 %s248, %s249
        %s251 = smul.addr %s250, 8
        %s252 = scalar_lea.vmem %s2, %s251
        %s253 = smul.u32 16, %s20
      $region36: #{graph_transformer_teacher.7} parent=27 // pred_fallthru
        _
    $region28: #{graph_transformer_teacher.7} parent=5 // pred_fallthru
      _
    %p254 = scmp.le.s32.totalorder 1, %s13
    %p255 = scmp.lt.s32.totalorder %s13, 5
    %p256 = pnand %p254, %p255
    %p257 = pneg %p256
    // Predicated region
    $region37: #{graph_transformer_teacher.7} parent=5 // pred_check
      _
    $region38: #{graph_transformer_teacher.7} parent=5 // pred_check_branch
      %259 = sbr.rel (%p256) target = $region40
    $region39: #{graph_transformer_teacher.7} parent=5 // pred_region
      %s260 = ssub.s32 %s13, 1
      %p261 = pneg %p46
      %p262 = pneg %p43
      %p263 = scmp.lt.s32.totalorder %s23, 3
      %s264 = scalar_select %p263, %s23, 3
      %s265 = scalar_lea.vmem %s1, %s264
      %p266 = pneg %p72
      %p267 = pneg %p69
      %s268 = smul.u32 16, %s22
      %p269 = scmp.lt.s32.totalorder %s23, 3
      %s270 = scalar_select %p269, %s23, 3
      %p271 = scmp.lt.s32.totalorder %s268, 15
      %s272 = scalar_select %p271, %s268, 15
      %s273 = smul.addr %s270, 16
      %s274 = sadd.s32 %s272, %s273
      %s275 = smul.addr %s274, 8
      %s276 = scalar_lea.vmem %s2, %s275
      %p277 = pneg %p100
      %p278 = pneg %p97
      %p279 = pneg %p121
      %p280 = pneg %p118
      %s281 = smul.u32 16, %s22
      %p282 = scmp.lt.s32.totalorder %s281, 15
      %s283 = scalar_select %p282, %s281, 15
      %s284 = smul.addr %s283, 2
      %s285 = scalar_lea.vmem %s4, %s284
      %p286 = pneg %p147
      %p287 = pneg %p144
      %p288 = pneg %p173
      %p289 = pneg %p170
      %s290 = smul.u32 16, %s22
      %p291 = scmp.lt.s32.totalorder %s290, 15
      %s292 = scalar_select %p291, %s290, 15
      %s293 = smul.addr %s292, 8
      %s294 = scalar_lea.vmem %s5, %s293
      %p295 = pneg %p201
      %p296 = pneg %p198
      %s297 = smul.u32 16, %s22
      %p298 = scmp.lt.s32.totalorder %s23, 3
      %s299 = scalar_select %p298, %s23, 3
      %p300 = scmp.lt.s32.totalorder %s297, 15
      %s301 = scalar_select %p300, %s297, 15
      %s302 = smul.addr %s299, 16
      %s303 = sadd.s32 %s301, %s302
      %s304 = smul.addr %s303, 8
      %s305 = scalar_lea.vmem %s6, %s304
      %p306 = scmp.lt.s32.totalorder %s23, 3
      %s307 = scalar_select %p306, %s23, 3
      %s308 = scalar_lea.vmem %s1, %s307
      %s309 = smul.u32 16, %s22
      %p310 = scmp.lt.s32.totalorder %s23, 3
      %s311 = scalar_select %p310, %s23, 3
      %p312 = scmp.lt.s32.totalorder %s309, 15
      %s313 = scalar_select %p312, %s309, 15
      %s314 = smul.addr %s311, 16
      %s315 = sadd.s32 %s313, %s314
      %s316 = smul.addr %s315, 8
      %s317 = scalar_lea.vmem %s2, %s316
      %s318 = smul.u32 16, %s22
      %s319 = smul.u32 16, %s22
      %p320 = scmp.lt.s32.totalorder %s319, 15
      %s321 = scalar_select %p320, %s319, 15
      %s322 = smul.addr %s321, 2
      %s323 = scalar_lea.vmem %s4, %s322
      %s324 = smul.u32 16, %s22
      %s325 = smul.u32 16, %s22
      %p326 = scmp.lt.s32.totalorder %s325, 15
      %s327 = scalar_select %p326, %s325, 15
      %s328 = smul.addr %s327, 8
      %s329 = scalar_lea.vmem %s5, %s328
      %s330 = smul.u32 16, %s22
      %s331 = smul.u32 16, %s22
      %p332 = scmp.lt.s32.totalorder %s23, 3
      %s333 = scalar_select %p332, %s23, 3
      %p334 = scmp.lt.s32.totalorder %s331, 15
      %s335 = scalar_select %p334, %s331, 15
      %s336 = smul.addr %s333, 16
      %s337 = sadd.s32 %s335, %s336
      %s338 = smul.addr %s337, 8
      %s339 = scalar_lea.vmem %s6, %s338
      %s340 = smul.u32 16, %s22
      %s343 = smul.u32 %s23, 128
      %s344 = scalar_lea.vmem %s0, %s343
      %v345 = vld [vmem:[%s344] sm:$0xff]
      %v346 = vld [vmem:[%s344 + $0x8] sm:$0xff]
      %v347 = vld [vmem:[%s344 + $0x10] sm:$0xff]
      %v348 = vld [vmem:[%s344 + $0x18] sm:$0xff]
      %v349 = vld [vmem:[%s344 + $0x20] sm:$0xff]
      %v350 = vld [vmem:[%s344 + $0x28] sm:$0xff]
      %v351 = vld [vmem:[%s344 + $0x30] sm:$0xff]
      %v352 = vld [vmem:[%s344 + $0x38] sm:$0xff]
      %v353 = vld [vmem:[%s344 + $0x40] sm:$0xff]
      %v354 = vld [vmem:[%s344 + $0x48] sm:$0xff]
      %v355 = vld [vmem:[%s344 + $0x50] sm:$0xff]
      %v356 = vld [vmem:[%s344 + $0x58] sm:$0xff]
      %v357 = vld [vmem:[%s344 + $0x60] sm:$0xff]
      %v358 = vld [vmem:[%s344 + $0x68] sm:$0xff]
      %v359 = vld [vmem:[%s344 + $0x70] sm:$0xff]
      %v360 = vld [vmem:[%s344 + $0x78] sm:$0xff]
      %v361 = vld [vmem:[%s308] sm:$0x1]
      %v362 = vld [vmem:[%s317] sm:$0xff]
      %v363 = vld [vmem:[%s317 + $0x8] sm:$0xff]
      %v364 = vld [vmem:[%s317 + $0x10] sm:$0xff]
      %v365 = vld [vmem:[%s317 + $0x18] sm:$0xff]
      %v366 = vld [vmem:[%s317 + $0x20] sm:$0xff]
      %v367 = vld [vmem:[%s317 + $0x28] sm:$0xff]
      %v368 = vld [vmem:[%s317 + $0x30] sm:$0xff]
      %v369 = vld [vmem:[%s317 + $0x38] sm:$0xff]
      %v370 = vld [vmem:[%s317 + $0x40] sm:$0xff]
      %v371 = vld [vmem:[%s317 + $0x48] sm:$0xff]
      %v372 = vld [vmem:[%s317 + $0x50] sm:$0xff]
      %v373 = vld [vmem:[%s317 + $0x58] sm:$0xff]
      %v374 = vld [vmem:[%s317 + $0x60] sm:$0xff]
      %v375 = vld [vmem:[%s317 + $0x68] sm:$0xff]
      %v376 = vld [vmem:[%s317 + $0x70] sm:$0xff]
      %v377 = vld [vmem:[%s317 + $0x78] sm:$0xff]
      %v378 = vld [vmem:[%s323] sm:$0x3]
      %v379 = vld [vmem:[%s323 + $0x2] sm:$0x3]
      %v380 = vld [vmem:[%s323 + $0x4] sm:$0x3]
      %v381 = vld [vmem:[%s323 + $0x6] sm:$0x3]
      %v382 = vld [vmem:[%s323 + $0x8] sm:$0x3]
      %v383 = vld [vmem:[%s323 + $0xa] sm:$0x3]
      %v384 = vld [vmem:[%s323 + $0xc] sm:$0x3]
      %v385 = vld [vmem:[%s323 + $0xe] sm:$0x3]
      %v386 = vld [vmem:[%s323 + $0x10] sm:$0x3]
      %v387 = vld [vmem:[%s323 + $0x12] sm:$0x3]
      %v388 = vld [vmem:[%s323 + $0x14] sm:$0x3]
      %v389 = vld [vmem:[%s323 + $0x16] sm:$0x3]
      %v390 = vld [vmem:[%s323 + $0x18] sm:$0x3]
      %v391 = vld [vmem:[%s323 + $0x1a] sm:$0x3]
      %v392 = vld [vmem:[%s323 + $0x1c] sm:$0x3]
      %v393 = vld [vmem:[%s323 + $0x1e] sm:$0x3]
      %395 = vset.pattern.permute.xlu0 0
      %396 = vperm.xlu0 %395, %v362
      %v397 = vpop.permute.xlu0 %396
      %400 = vset.pattern.permute.xlu0 0
      %401 = vperm.xlu0 %400, %v363
      %v402 = vpop.permute.xlu0 %401
      %405 = vset.pattern.permute.xlu0 0
      %406 = vperm.xlu0 %405, %v364
      %v407 = vpop.permute.xlu0 %406
      %410 = vset.pattern.permute.xlu0 0
      %411 = vperm.xlu0 %410, %v365
      %v412 = vpop.permute.xlu0 %411
      %415 = vset.pattern.permute.xlu0 0
      %416 = vperm.xlu0 %415, %v366
      %v417 = vpop.permute.xlu0 %416
      %420 = vset.pattern.permute.xlu0 0
      %421 = vperm.xlu0 %420, %v367
      %v422 = vpop.permute.xlu0 %421
      %425 = vset.pattern.permute.xlu0 0
      %426 = vperm.xlu0 %425, %v368
      %v427 = vpop.permute.xlu0 %426
      %430 = vset.pattern.permute.xlu0 0
      %431 = vperm.xlu0 %430, %v369
      %v432 = vpop.permute.xlu0 %431
      %435 = vset.pattern.permute.xlu0 0
      %436 = vperm.xlu0 %435, %v370
      %v437 = vpop.permute.xlu0 %436
      %440 = vset.pattern.permute.xlu0 0
      %441 = vperm.xlu0 %440, %v371
      %v442 = vpop.permute.xlu0 %441
      %445 = vset.pattern.permute.xlu0 0
      %446 = vperm.xlu0 %445, %v372
      %v447 = vpop.permute.xlu0 %446
      %450 = vset.pattern.permute.xlu0 0
      %451 = vperm.xlu0 %450, %v373
      %v452 = vpop.permute.xlu0 %451
      %455 = vset.pattern.permute.xlu0 0
      %456 = vperm.xlu0 %455, %v374
      %v457 = vpop.permute.xlu0 %456
      %460 = vset.pattern.permute.xlu0 0
      %461 = vperm.xlu0 %460, %v375
      %v462 = vpop.permute.xlu0 %461
      %465 = vset.pattern.permute.xlu0 0
      %466 = vperm.xlu0 %465, %v376
      %v467 = vpop.permute.xlu0 %466
      %470 = vset.pattern.permute.xlu0 0
      %471 = vperm.xlu0 %470, %v377
      %v472 = vpop.permute.xlu0 %471
      %v475 = vlaneseq
      %v476 = vshrl.u32 %v475, 7
      %v477 = vsub.s32 0, %v476
      %v478 = vrot.slane %v361, %v477
      %v480 = vadd.f32 %v397, %v478
      %v481 = vadd.f32 %v402, %v478
      %v482 = vadd.f32 %v407, %v478
      %v483 = vadd.f32 %v412, %v478
      %v484 = vadd.f32 %v417, %v478
      %v485 = vadd.f32 %v422, %v478
      %v486 = vadd.f32 %v427, %v478
      %v487 = vadd.f32 %v432, %v478
      %v488 = vadd.f32 %v437, %v478
      %v489 = vadd.f32 %v442, %v478
      %v490 = vadd.f32 %v447, %v478
      %v491 = vadd.f32 %v452, %v478
      %v492 = vadd.f32 %v457, %v478
      %v493 = vadd.f32 %v462, %v478
      %v494 = vadd.f32 %v467, %v478
      %v495 = vadd.f32 %v472, %v478
      %vm496 = vcmp.gt.f32.partialorder %v480, 0.0
      %vm497 = vcmp.gt.f32.partialorder %v481, 0.0
      %vm498 = vcmp.gt.f32.partialorder %v482, 0.0
      %vm499 = vcmp.gt.f32.partialorder %v483, 0.0
      %vm500 = vcmp.gt.f32.partialorder %v484, 0.0
      %vm501 = vcmp.gt.f32.partialorder %v485, 0.0
      %vm502 = vcmp.gt.f32.partialorder %v486, 0.0
      %vm503 = vcmp.gt.f32.partialorder %v487, 0.0
      %vm504 = vcmp.gt.f32.partialorder %v488, 0.0
      %vm505 = vcmp.gt.f32.partialorder %v489, 0.0
      %vm506 = vcmp.gt.f32.partialorder %v490, 0.0
      %vm507 = vcmp.gt.f32.partialorder %v491, 0.0
      %vm508 = vcmp.gt.f32.partialorder %v492, 0.0
      %vm509 = vcmp.gt.f32.partialorder %v493, 0.0
      %vm510 = vcmp.gt.f32.partialorder %v494, 0.0
      %vm511 = vcmp.gt.f32.partialorder %v495, 0.0
      %v512 = vmul.f32 %v480, 0.2
      %v513 = vmul.f32 %v481, 0.2
      %v514 = vmul.f32 %v482, 0.2
      %v515 = vmul.f32 %v483, 0.2
      %v516 = vmul.f32 %v484, 0.2
      %v517 = vmul.f32 %v485, 0.2
      %v518 = vmul.f32 %v486, 0.2
      %v519 = vmul.f32 %v487, 0.2
      %v520 = vmul.f32 %v488, 0.2
      %v521 = vmul.f32 %v489, 0.2
      %v522 = vmul.f32 %v490, 0.2
      %v523 = vmul.f32 %v491, 0.2
      %v524 = vmul.f32 %v492, 0.2
      %v525 = vmul.f32 %v493, 0.2
      %v526 = vmul.f32 %v494, 0.2
      %v527 = vmul.f32 %v495, 0.2
      %v528 = vsel %vm496, %v480, %v512
      %v529 = vsel %vm497, %v481, %v513
      %v530 = vsel %vm498, %v482, %v514
      %v531 = vsel %vm499, %v483, %v515
      %v532 = vsel %vm500, %v484, %v516
      %v533 = vsel %vm501, %v485, %v517
      %v534 = vsel %vm502, %v486, %v518
      %v535 = vsel %vm503, %v487, %v519
      %v536 = vsel %vm504, %v488, %v520
      %v537 = vsel %vm505, %v489, %v521
      %v538 = vsel %vm506, %v490, %v522
      %v539 = vsel %vm507, %v491, %v523
      %v540 = vsel %vm508, %v492, %v524
      %v541 = vsel %vm509, %v493, %v525
      %v542 = vsel %vm510, %v494, %v526
      %v543 = vsel %vm511, %v495, %v527
      %vm544 = vnez %v378
      %vm545 = vnez %v379
      %vm546 = vnez %v380
      %vm547 = vnez %v381
      %vm548 = vnez %v382
      %vm549 = vnez %v383
      %vm550 = vnez %v384
      %vm551 = vnez %v385
      %vm552 = vnez %v386
      %vm553 = vnez %v387
      %vm554 = vnez %v388
      %vm555 = vnez %v389
      %vm556 = vnez %v390
      %vm557 = vnez %v391
      %vm558 = vnez %v392
      %vm559 = vnez %v393
      %v560 = vsel %vm544, 16843009, 0
      %v561 = vsel %vm545, 16843009, 0
      %v562 = vsel %vm546, 16843009, 0
      %v563 = vsel %vm547, 16843009, 0
      %v564 = vsel %vm548, 16843009, 0
      %v565 = vsel %vm549, 16843009, 0
      %v566 = vsel %vm550, 16843009, 0
      %v567 = vsel %vm551, 16843009, 0
      %v568 = vsel %vm552, 16843009, 0
      %v569 = vsel %vm553, 16843009, 0
      %v570 = vsel %vm554, 16843009, 0
      %v571 = vsel %vm555, 16843009, 0
      %v572 = vsel %vm556, 16843009, 0
      %v573 = vsel %vm557, 16843009, 0
      %v574 = vsel %vm558, 16843009, 0
      %v575 = vsel %vm559, 16843009, 0
      %v576 = vunpack.c.0.s8 %v560
      %v577 = vunpack.c.0.s8 %v561
      %v578 = vunpack.c.0.s8 %v562
      %v579 = vunpack.c.0.s8 %v563
      %v580 = vunpack.c.0.s8 %v564
      %v581 = vunpack.c.0.s8 %v565
      %v582 = vunpack.c.0.s8 %v566
      %v583 = vunpack.c.0.s8 %v567
      %v584 = vunpack.c.0.s8 %v568
      %v585 = vunpack.c.0.s8 %v569
      %v586 = vunpack.c.0.s8 %v570
      %v587 = vunpack.c.0.s8 %v571
      %v588 = vunpack.c.0.s8 %v572
      %v589 = vunpack.c.0.s8 %v573
      %v590 = vunpack.c.0.s8 %v574
      %v591 = vunpack.c.0.s8 %v575
      %vm592 = vcmp.ne.s32.totalorder %v576, 0
      %vm593 = vcmp.ne.s32.totalorder %v577, 0
      %vm594 = vcmp.ne.s32.totalorder %v578, 0
      %vm595 = vcmp.ne.s32.totalorder %v579, 0
      %vm596 = vcmp.ne.s32.totalorder %v580, 0
      %vm597 = vcmp.ne.s32.totalorder %v581, 0
      %vm598 = vcmp.ne.s32.totalorder %v582, 0
      %vm599 = vcmp.ne.s32.totalorder %v583, 0
      %vm600 = vcmp.ne.s32.totalorder %v584, 0
      %vm601 = vcmp.ne.s32.totalorder %v585, 0
      %vm602 = vcmp.ne.s32.totalorder %v586, 0
      %vm603 = vcmp.ne.s32.totalorder %v587, 0
      %vm604 = vcmp.ne.s32.totalorder %v588, 0
      %vm605 = vcmp.ne.s32.totalorder %v589, 0
      %vm606 = vcmp.ne.s32.totalorder %v590, 0
      %vm607 = vcmp.ne.s32.totalorder %v591, 0
      %v608 = vsel %vm592, %v528, -1e+30
      %v609 = vsel %vm593, %v529, -1e+30
      %v610 = vsel %vm594, %v530, -1e+30
      %v611 = vsel %vm595, %v531, -1e+30
      %v612 = vsel %vm596, %v532, -1e+30
      %v613 = vsel %vm597, %v533, -1e+30
      %v614 = vsel %vm598, %v534, -1e+30
      %v615 = vsel %vm599, %v535, -1e+30
      %v616 = vsel %vm600, %v536, -1e+30
      %v617 = vsel %vm601, %v537, -1e+30
      %v618 = vsel %vm602, %v538, -1e+30
      %v619 = vsel %vm603, %v539, -1e+30
      %v620 = vsel %vm604, %v540, -1e+30
      %v621 = vsel %vm605, %v541, -1e+30
      %v622 = vsel %vm606, %v542, -1e+30
      %v623 = vsel %vm607, %v543, -1e+30
      %624 = vmax.xlane.f32.xlu0 %v608
      %v625 = vpop.xlane.xlu0 %624
      %626 = vmax.xlane.f32.xlu0 %v609
      %v627 = vpop.xlane.xlu0 %626
      %628 = vmax.xlane.f32.xlu0 %v610
      %v629 = vpop.xlane.xlu0 %628
      %630 = vmax.xlane.f32.xlu0 %v611
      %v631 = vpop.xlane.xlu0 %630
      %632 = vmax.xlane.f32.xlu0 %v612
      %v633 = vpop.xlane.xlu0 %632
      %634 = vmax.xlane.f32.xlu0 %v613
      %v635 = vpop.xlane.xlu0 %634
      %636 = vmax.xlane.f32.xlu0 %v614
      %v637 = vpop.xlane.xlu0 %636
      %638 = vmax.xlane.f32.xlu0 %v615
      %v639 = vpop.xlane.xlu0 %638
      %640 = vmax.xlane.f32.xlu0 %v616
      %v641 = vpop.xlane.xlu0 %640
      %642 = vmax.xlane.f32.xlu0 %v617
      %v643 = vpop.xlane.xlu0 %642
      %644 = vmax.xlane.f32.xlu0 %v618
      %v645 = vpop.xlane.xlu0 %644
      %646 = vmax.xlane.f32.xlu0 %v619
      %v647 = vpop.xlane.xlu0 %646
      %648 = vmax.xlane.f32.xlu0 %v620
      %v649 = vpop.xlane.xlu0 %648
      %650 = vmax.xlane.f32.xlu0 %v621
      %v651 = vpop.xlane.xlu0 %650
      %652 = vmax.xlane.f32.xlu0 %v622
      %v653 = vpop.xlane.xlu0 %652
      %654 = vmax.xlane.f32.xlu0 %v623
      %v655 = vpop.xlane.xlu0 %654
      %v656 = vsub.f32 %v608, %v625
      %v657 = vsub.f32 %v609, %v627
      %v658 = vsub.f32 %v610, %v629
      %v659 = vsub.f32 %v611, %v631
      %v660 = vsub.f32 %v612, %v633
      %v661 = vsub.f32 %v613, %v635
      %v662 = vsub.f32 %v614, %v637
      %v663 = vsub.f32 %v615, %v639
      %v664 = vsub.f32 %v616, %v641
      %v665 = vsub.f32 %v617, %v643
      %v666 = vsub.f32 %v618, %v645
      %v667 = vsub.f32 %v619, %v647
      %v668 = vsub.f32 %v620, %v649
      %v669 = vsub.f32 %v621, %v651
      %v670 = vsub.f32 %v622, %v653
      %v671 = vsub.f32 %v623, %v655
      %v672 = vmul.f32 %v656, 1.442695
      %v673 = vpow.pop %v672
      %v674 = vmul.f32 %v657, 1.442695
      %v675 = vpow.pop %v674
      %v676 = vmul.f32 %v658, 1.442695
      %v677 = vpow.pop %v676
      %v678 = vmul.f32 %v659, 1.442695
      %v679 = vpow.pop %v678
      %v680 = vmul.f32 %v660, 1.442695
      %v681 = vpow.pop %v680
      %v682 = vmul.f32 %v661, 1.442695
      %v683 = vpow.pop %v682
      %v684 = vmul.f32 %v662, 1.442695
      %v685 = vpow.pop %v684
      %v686 = vmul.f32 %v663, 1.442695
      %v687 = vpow.pop %v686
      %v688 = vmul.f32 %v664, 1.442695
      %v689 = vpow.pop %v688
      %v690 = vmul.f32 %v665, 1.442695
      %v691 = vpow.pop %v690
      %v692 = vmul.f32 %v666, 1.442695
      %v693 = vpow.pop %v692
      %v694 = vmul.f32 %v667, 1.442695
      %v695 = vpow.pop %v694
      %v696 = vmul.f32 %v668, 1.442695
      %v697 = vpow.pop %v696
      %v698 = vmul.f32 %v669, 1.442695
      %v699 = vpow.pop %v698
      %v700 = vmul.f32 %v670, 1.442695
      %v701 = vpow.pop %v700
      %v702 = vmul.f32 %v671, 1.442695
      %v703 = vpow.pop %v702
      %704 = vadd.xlane.f32.xlu0 %v673
      %v705 = vpop.xlane.xlu0 %704
      %706 = vadd.xlane.f32.xlu0 %v675
      %v707 = vpop.xlane.xlu0 %706
      %708 = vadd.xlane.f32.xlu0 %v677
      %v709 = vpop.xlane.xlu0 %708
      %710 = vadd.xlane.f32.xlu0 %v679
      %v711 = vpop.xlane.xlu0 %710
      %712 = vadd.xlane.f32.xlu0 %v681
      %v713 = vpop.xlane.xlu0 %712
      %714 = vadd.xlane.f32.xlu0 %v683
      %v715 = vpop.xlane.xlu0 %714
      %716 = vadd.xlane.f32.xlu0 %v685
      %v717 = vpop.xlane.xlu0 %716
      %718 = vadd.xlane.f32.xlu0 %v687
      %v719 = vpop.xlane.xlu0 %718
      %720 = vadd.xlane.f32.xlu0 %v689
      %v721 = vpop.xlane.xlu0 %720
      %722 = vadd.xlane.f32.xlu0 %v691
      %v723 = vpop.xlane.xlu0 %722
      %724 = vadd.xlane.f32.xlu0 %v693
      %v725 = vpop.xlane.xlu0 %724
      %726 = vadd.xlane.f32.xlu0 %v695
      %v727 = vpop.xlane.xlu0 %726
      %728 = vadd.xlane.f32.xlu0 %v697
      %v729 = vpop.xlane.xlu0 %728
      %730 = vadd.xlane.f32.xlu0 %v699
      %v731 = vpop.xlane.xlu0 %730
      %732 = vadd.xlane.f32.xlu0 %v701
      %v733 = vpop.xlane.xlu0 %732
      %734 = vadd.xlane.f32.xlu0 %v703
      %v735 = vpop.xlane.xlu0 %734
      %v736 = vlog2.pop %v705
      %v737 = vmul.f32 %v736, 0.6931472
      %v738 = vlog2.pop %v707
      %v739 = vmul.f32 %v738, 0.6931472
      %v740 = vlog2.pop %v709
      %v741 = vmul.f32 %v740, 0.6931472
      %v742 = vlog2.pop %v711
      %v743 = vmul.f32 %v742, 0.6931472
      %v744 = vlog2.pop %v713
      %v745 = vmul.f32 %v744, 0.6931472
      %v746 = vlog2.pop %v715
      %v747 = vmul.f32 %v746, 0.6931472
      %v748 = vlog2.pop %v717
      %v749 = vmul.f32 %v748, 0.6931472
      %v750 = vlog2.pop %v719
      %v751 = vmul.f32 %v750, 0.6931472
      %v752 = vlog2.pop %v721
      %v753 = vmul.f32 %v752, 0.6931472
      %v754 = vlog2.pop %v723
      %v755 = vmul.f32 %v754, 0.6931472
      %v756 = vlog2.pop %v725
      %v757 = vmul.f32 %v756, 0.6931472
      %v758 = vlog2.pop %v727
      %v759 = vmul.f32 %v758, 0.6931472
      %v760 = vlog2.pop %v729
      %v761 = vmul.f32 %v760, 0.6931472
      %v762 = vlog2.pop %v731
      %v763 = vmul.f32 %v762, 0.6931472
      %v764 = vlog2.pop %v733
      %v765 = vmul.f32 %v764, 0.6931472
      %v766 = vlog2.pop %v735
      %v767 = vmul.f32 %v766, 0.6931472
      %v768 = vadd.f32 %v625, %v737
      %v769 = vadd.f32 %v627, %v739
      %v770 = vadd.f32 %v629, %v741
      %v771 = vadd.f32 %v631, %v743
      %v772 = vadd.f32 %v633, %v745
      %v773 = vadd.f32 %v635, %v747
      %v774 = vadd.f32 %v637, %v749
      %v775 = vadd.f32 %v639, %v751
      %v776 = vadd.f32 %v641, %v753
      %v777 = vadd.f32 %v643, %v755
      %v778 = vadd.f32 %v645, %v757
      %v779 = vadd.f32 %v647, %v759
      %v780 = vadd.f32 %v649, %v761
      %v781 = vadd.f32 %v651, %v763
      %v782 = vadd.f32 %v653, %v765
      %v783 = vadd.f32 %v655, %v767
      %vm784 = vcmask 7168
      %785 = vst.msk [vmem:[%s339] sm:$0xff] %vm784, %v768
      %786 = vst.msk [vmem:[%s339 + $0x8] sm:$0xff] %vm784, %v769
      %787 = vst.msk [vmem:[%s339 + $0x10] sm:$0xff] %vm784, %v770
      %788 = vst.msk [vmem:[%s339 + $0x18] sm:$0xff] %vm784, %v771
      %789 = vst.msk [vmem:[%s339 + $0x20] sm:$0xff] %vm784, %v772
      %790 = vst.msk [vmem:[%s339 + $0x28] sm:$0xff] %vm784, %v773
      %791 = vst.msk [vmem:[%s339 + $0x30] sm:$0xff] %vm784, %v774
      %792 = vst.msk [vmem:[%s339 + $0x38] sm:$0xff] %vm784, %v775
      %793 = vst.msk [vmem:[%s339 + $0x40] sm:$0xff] %vm784, %v776
      %794 = vst.msk [vmem:[%s339 + $0x48] sm:$0xff] %vm784, %v777
      %795 = vst.msk [vmem:[%s339 + $0x50] sm:$0xff] %vm784, %v778
      %796 = vst.msk [vmem:[%s339 + $0x58] sm:$0xff] %vm784, %v779
      %797 = vst.msk [vmem:[%s339 + $0x60] sm:$0xff] %vm784, %v780
      %798 = vst.msk [vmem:[%s339 + $0x68] sm:$0xff] %vm784, %v781
      %799 = vst.msk [vmem:[%s339 + $0x70] sm:$0xff] %vm784, %v782
      %800 = vst.msk [vmem:[%s339 + $0x78] sm:$0xff] %vm784, %v783
      %801 = vmatprep.subr.mxu0 0.0
      %802 = vmatpush1.msra.mxu0 %v360
      %803 = vmatprep.subr.mxu0 0.0
      %804 = vmatpush1.msra.mxu0 %v359
      %805 = vmatprep.subr.mxu0 0.0
      %806 = vmatpush1.msra.mxu0 %v358
      %807 = vmatprep.subr.mxu0 0.0
      %808 = vmatpush1.msra.mxu0 %v357
      %809 = vmatprep.subr.mxu0 0.0
      %810 = vmatpush1.msra.mxu0 %v356
      %811 = vmatprep.subr.mxu0 0.0
      %812 = vmatpush1.msra.mxu0 %v355
      %813 = vmatprep.subr.mxu0 0.0
      %814 = vmatpush1.msra.mxu0 %v354
      %815 = vmatprep.subr.mxu0 0.0
      %816 = vmatpush1.msra.mxu0 %v353
      %817 = vmatprep.subr.mxu0 0.0
      %818 = vmatpush1.msra.mxu0 %v352
      %819 = vmatprep.subr.mxu0 0.0
      %820 = vmatpush1.msra.mxu0 %v351
      %821 = vmatprep.subr.mxu0 0.0
      %822 = vmatpush1.msra.mxu0 %v350
      %823 = vmatprep.subr.mxu0 0.0
      %824 = vmatpush1.msra.mxu0 %v349
      %825 = vmatprep.subr.mxu0 0.0
      %826 = vmatpush1.msra.mxu0 %v348
      %827 = vmatprep.subr.mxu0 0.0
      %828 = vmatpush1.msra.mxu0 %v347
      %829 = vmatprep.subr.mxu0 0.0
      %830 = vmatpush1.msra.mxu0 %v346
      %831 = vmatprep.subr.mxu0 0.0
      %832 = vmatpush1.msra.mxu0 %v345
      %833 = vmatprep.subr.mxu0 0.0
      %834 = vmatpush2.msra.mxu0 0.0
      %835 = vmatprep.subr.mxu0 0.0
      %836 = vmatpush2.msra.mxu0 0.0
      %837 = vmatprep.subr.mxu0 0.0
      %838 = vmatpush2.msra.mxu0 0.0
      %839 = vmatprep.subr.mxu0 0.0
      %840 = vmatpush2.msra.mxu0 0.0
      %841 = vmatprep.subr.mxu0 0.0
      %842 = vmatpush2.msra.mxu0 0.0
      %843 = vmatprep.subr.mxu0 0.0
      %844 = vmatpush2.msra.mxu0 0.0
      %845 = vmatprep.subr.mxu0 0.0
      %846 = vmatpush2.msra.mxu0 0.0
      %847 = vmatprep.subr.mxu0 0.0
      %848 = vmatpush2.msra.mxu0 0.0
      %849 = vmatprep.subr.mxu0 0.0
      %850 = vmatpush2.msra.mxu0 0.0
      %851 = vmatprep.subr.mxu0 0.0
      %852 = vmatpush2.msra.mxu0 0.0
      %853 = vmatprep.subr.mxu0 0.0
      %854 = vmatpush2.msra.mxu0 0.0
      %855 = vmatprep.subr.mxu0 0.0
      %856 = vmatpush2.msra.mxu0 0.0
      %857 = vmatprep.subr.mxu0 0.0
      %858 = vmatpush2.msra.mxu0 0.0
      %859 = vmatprep.subr.mxu0 0.0
      %860 = vmatpush2.msra.mxu0 0.0
      %861 = vmatprep.subr.mxu0 0.0
      %862 = vmatpush2.msra.mxu0 0.0
      %863 = vmatprep.subr.mxu0 0.0
      %864 = vmatpush2.msra.mxu0 0.0
      %865 = vmatprep.mubr.f32.mxu0 0.0
      %866 = vmatmul.mubr.f32.gmra.mxu0 %v673
      %v867 = vpop.f32.mrf.mxu0
      %v868 = vadd.f32 0.0, %v867
      %v869 = vpop.f32.mrf.mxu0
      %870 = vmatprep.mubr.f32.mxu0 0.0
      %871 = vmatmul.mubr.f32.gmra.mxu0 %v675
      %v872 = vpop.f32.mrf.mxu0
      %v873 = vadd.f32 0.0, %v872
      %v874 = vpop.f32.mrf.mxu0
      %875 = vmatprep.mubr.f32.mxu0 0.0
      %876 = vmatmul.mubr.f32.gmra.mxu0 %v677
      %v877 = vpop.f32.mrf.mxu0
      %v878 = vadd.f32 0.0, %v877
      %v879 = vpop.f32.mrf.mxu0
      %880 = vmatprep.mubr.f32.mxu0 0.0
      %881 = vmatmul.mubr.f32.gmra.mxu0 %v679
      %v882 = vpop.f32.mrf.mxu0
      %v883 = vadd.f32 0.0, %v882
      %v884 = vpop.f32.mrf.mxu0
      %885 = vmatprep.mubr.f32.mxu0 0.0
      %886 = vmatmul.mubr.f32.gmra.mxu0 %v681
      %v887 = vpop.f32.mrf.mxu0
      %v888 = vadd.f32 0.0, %v887
      %v889 = vpop.f32.mrf.mxu0
      %890 = vmatprep.mubr.f32.mxu0 0.0
      %891 = vmatmul.mubr.f32.gmra.mxu0 %v683
      %v892 = vpop.f32.mrf.mxu0
      %v893 = vadd.f32 0.0, %v892
      %v894 = vpop.f32.mrf.mxu0
      %895 = vmatprep.mubr.f32.mxu0 0.0
      %896 = vmatmul.mubr.f32.gmra.mxu0 %v685
      %v897 = vpop.f32.mrf.mxu0
      %v898 = vadd.f32 0.0, %v897
      %v899 = vpop.f32.mrf.mxu0
      %900 = vmatprep.mubr.f32.mxu0 0.0
      %901 = vmatmul.mubr.f32.gmra.mxu0 %v687
      %v902 = vpop.f32.mrf.mxu0
      %v903 = vadd.f32 0.0, %v902
      %v904 = vpop.f32.mrf.mxu0
      %905 = vmatprep.mubr.f32.mxu0 0.0
      %906 = vmatmul.mubr.f32.gmra.mxu0 %v689
      %v907 = vpop.f32.mrf.mxu0
      %v908 = vadd.f32 0.0, %v907
      %v909 = vpop.f32.mrf.mxu0
      %910 = vmatprep.mubr.f32.mxu0 0.0
      %911 = vmatmul.mubr.f32.gmra.mxu0 %v691
      %v912 = vpop.f32.mrf.mxu0
      %v913 = vadd.f32 0.0, %v912
      %v914 = vpop.f32.mrf.mxu0
      %915 = vmatprep.mubr.f32.mxu0 0.0
      %916 = vmatmul.mubr.f32.gmra.mxu0 %v693
      %v917 = vpop.f32.mrf.mxu0
      %v918 = vadd.f32 0.0, %v917
      %v919 = vpop.f32.mrf.mxu0
      %920 = vmatprep.mubr.f32.mxu0 0.0
      %921 = vmatmul.mubr.f32.gmra.mxu0 %v695
      %v922 = vpop.f32.mrf.mxu0
      %v923 = vadd.f32 0.0, %v922
      %v924 = vpop.f32.mrf.mxu0
      %925 = vmatprep.mubr.f32.mxu0 0.0
      %926 = vmatmul.mubr.f32.gmra.mxu0 %v697
      %v927 = vpop.f32.mrf.mxu0
      %v928 = vadd.f32 0.0, %v927
      %v929 = vpop.f32.mrf.mxu0
      %930 = vmatprep.mubr.f32.mxu0 0.0
      %931 = vmatmul.mubr.f32.gmra.mxu0 %v699
      %v932 = vpop.f32.mrf.mxu0
      %v933 = vadd.f32 0.0, %v932
      %v934 = vpop.f32.mrf.mxu0
      %935 = vmatprep.mubr.f32.mxu0 0.0
      %936 = vmatmul.mubr.f32.gmra.mxu0 %v701
      %v937 = vpop.f32.mrf.mxu0
      %v938 = vadd.f32 0.0, %v937
      %v939 = vpop.f32.mrf.mxu0
      %940 = vmatprep.mubr.f32.mxu0 0.0
      %941 = vmatmul.mubr.f32.gmra.mxu0 %v703
      %v942 = vpop.f32.mrf.mxu0
      %v943 = vadd.f32 0.0, %v942
      %v944 = vpop.f32.mrf.mxu0
      %945 = vdwg.mxu0
      %v946 = vrcp.pop %v705
      %v947 = vmul.f32 %v868, %v946
      %v948 = vrcp.pop %v707
      %v949 = vmul.f32 %v873, %v948
      %v950 = vrcp.pop %v709
      %v951 = vmul.f32 %v878, %v950
      %v952 = vrcp.pop %v711
      %v953 = vmul.f32 %v883, %v952
      %v954 = vrcp.pop %v713
      %v955 = vmul.f32 %v888, %v954
      %v956 = vrcp.pop %v715
      %v957 = vmul.f32 %v893, %v956
      %v958 = vrcp.pop %v717
      %v959 = vmul.f32 %v898, %v958
      %v960 = vrcp.pop %v719
      %v961 = vmul.f32 %v903, %v960
      %v962 = vrcp.pop %v721
      %v963 = vmul.f32 %v908, %v962
      %v964 = vrcp.pop %v723
      %v965 = vmul.f32 %v913, %v964
      %v966 = vrcp.pop %v725
      %v967 = vmul.f32 %v918, %v966
      %v968 = vrcp.pop %v727
      %v969 = vmul.f32 %v923, %v968
      %v970 = vrcp.pop %v729
      %v971 = vmul.f32 %v928, %v970
      %v972 = vrcp.pop %v731
      %v973 = vmul.f32 %v933, %v972
      %v974 = vrcp.pop %v733
      %v975 = vmul.f32 %v938, %v974
      %v976 = vrcp.pop %v735
      %v977 = vmul.f32 %v943, %v976
      %p978 = scmp.eq.s32.totalorder %s23, 0
      // Predicated region
      $region41: #{graph_transformer_teacher.7} parent=39 // pred_check
        %p979 = pneg %p978
      $region42: #{graph_transformer_teacher.7} parent=39 // pred_check_branch
        %981 = sbr.rel (%p979) target = $region44
      $region43: #{graph_transformer_teacher.7} parent=39 // pred_region
        %vm982 = vcmask 64512
        %983 = vst.msk [vmem:[%s329] sm:$0xff] %vm982, 0.0
        %984 = vst.msk [vmem:[%s329 + $0x8] sm:$0xff] %vm982, 0.0
        %985 = vst.msk [vmem:[%s329 + $0x10] sm:$0xff] %vm982, 0.0
        %986 = vst.msk [vmem:[%s329 + $0x18] sm:$0xff] %vm982, 0.0
        %987 = vst.msk [vmem:[%s329 + $0x20] sm:$0xff] %vm982, 0.0
        %988 = vst.msk [vmem:[%s329 + $0x28] sm:$0xff] %vm982, 0.0
        %989 = vst.msk [vmem:[%s329 + $0x30] sm:$0xff] %vm982, 0.0
        %990 = vst.msk [vmem:[%s329 + $0x38] sm:$0xff] %vm982, 0.0
        %991 = vst.msk [vmem:[%s329 + $0x40] sm:$0xff] %vm982, 0.0
        %992 = vst.msk [vmem:[%s329 + $0x48] sm:$0xff] %vm982, 0.0
        %993 = vst.msk [vmem:[%s329 + $0x50] sm:$0xff] %vm982, 0.0
        %994 = vst.msk [vmem:[%s329 + $0x58] sm:$0xff] %vm982, 0.0
        %995 = vst.msk [vmem:[%s329 + $0x60] sm:$0xff] %vm982, 0.0
        %996 = vst.msk [vmem:[%s329 + $0x68] sm:$0xff] %vm982, 0.0
        %997 = vst.msk [vmem:[%s329 + $0x70] sm:$0xff] %vm982, 0.0
        %998 = vst.msk [vmem:[%s329 + $0x78] sm:$0xff] %vm982, 0.0
      $region44: #{graph_transformer_teacher.7} parent=39 // pred_fallthru
        _
      %v999 = vld [vmem:[%s329] sm:$0xff]
      %v1000 = vld [vmem:[%s329 + $0x8] sm:$0xff]
      %v1001 = vld [vmem:[%s329 + $0x10] sm:$0xff]
      %v1002 = vld [vmem:[%s329 + $0x18] sm:$0xff]
      %v1003 = vld [vmem:[%s329 + $0x20] sm:$0xff]
      %v1004 = vld [vmem:[%s329 + $0x28] sm:$0xff]
      %v1005 = vld [vmem:[%s329 + $0x30] sm:$0xff]
      %v1006 = vld [vmem:[%s329 + $0x38] sm:$0xff]
      %v1007 = vld [vmem:[%s329 + $0x40] sm:$0xff]
      %v1008 = vld [vmem:[%s329 + $0x48] sm:$0xff]
      %v1009 = vld [vmem:[%s329 + $0x50] sm:$0xff]
      %v1010 = vld [vmem:[%s329 + $0x58] sm:$0xff]
      %v1011 = vld [vmem:[%s329 + $0x60] sm:$0xff]
      %v1012 = vld [vmem:[%s329 + $0x68] sm:$0xff]
      %v1013 = vld [vmem:[%s329 + $0x70] sm:$0xff]
      %v1014 = vld [vmem:[%s329 + $0x78] sm:$0xff]
      %v1015 = vadd.f32 %v999, %v947
      %v1016 = vadd.f32 %v1000, %v949
      %v1017 = vadd.f32 %v1001, %v951
      %v1018 = vadd.f32 %v1002, %v953
      %v1019 = vadd.f32 %v1003, %v955
      %v1020 = vadd.f32 %v1004, %v957
      %v1021 = vadd.f32 %v1005, %v959
      %v1022 = vadd.f32 %v1006, %v961
      %v1023 = vadd.f32 %v1007, %v963
      %v1024 = vadd.f32 %v1008, %v965
      %v1025 = vadd.f32 %v1009, %v967
      %v1026 = vadd.f32 %v1010, %v969
      %v1027 = vadd.f32 %v1011, %v971
      %v1028 = vadd.f32 %v1012, %v973
      %v1029 = vadd.f32 %v1013, %v975
      %v1030 = vadd.f32 %v1014, %v977
      %vm1031 = vcmask 64512
      %1032 = vst.msk [vmem:[%s329] sm:$0xff] %vm1031, %v1015
      %1033 = vst.msk [vmem:[%s329 + $0x8] sm:$0xff] %vm1031, %v1016
      %1034 = vst.msk [vmem:[%s329 + $0x10] sm:$0xff] %vm1031, %v1017
      %1035 = vst.msk [vmem:[%s329 + $0x18] sm:$0xff] %vm1031, %v1018
      %1036 = vst.msk [vmem:[%s329 + $0x20] sm:$0xff] %vm1031, %v1019
      %1037 = vst.msk [vmem:[%s329 + $0x28] sm:$0xff] %vm1031, %v1020
      %1038 = vst.msk [vmem:[%s329 + $0x30] sm:$0xff] %vm1031, %v1021
      %1039 = vst.msk [vmem:[%s329 + $0x38] sm:$0xff] %vm1031, %v1022
      %1040 = vst.msk [vmem:[%s329 + $0x40] sm:$0xff] %vm1031, %v1023
      %1041 = vst.msk [vmem:[%s329 + $0x48] sm:$0xff] %vm1031, %v1024
      %1042 = vst.msk [vmem:[%s329 + $0x50] sm:$0xff] %vm1031, %v1025
      %1043 = vst.msk [vmem:[%s329 + $0x58] sm:$0xff] %vm1031, %v1026
      %1044 = vst.msk [vmem:[%s329 + $0x60] sm:$0xff] %vm1031, %v1027
      %1045 = vst.msk [vmem:[%s329 + $0x68] sm:$0xff] %vm1031, %v1028
      %1046 = vst.msk [vmem:[%s329 + $0x70] sm:$0xff] %vm1031, %v1029
      %1047 = vst.msk [vmem:[%s329 + $0x78] sm:$0xff] %vm1031, %v1030
      %p1048 = scmp.eq.s32.totalorder %s23, 3
      // Predicated region
      $region45: #{graph_transformer_teacher.7} parent=39 // pred_check
        %p1049 = pneg %p1048
      $region46: #{graph_transformer_teacher.7} parent=39 // pred_check_branch
        %1051 = sbr.rel (%p1049) target = $region48
      $region47: #{graph_transformer_teacher.7} parent=39 // pred_region
        %v1052 = vld [vmem:[%s329] sm:$0xff]
        %v1053 = vld [vmem:[%s329 + $0x8] sm:$0xff]
        %v1054 = vld [vmem:[%s329 + $0x10] sm:$0xff]
        %v1055 = vld [vmem:[%s329 + $0x18] sm:$0xff]
        %v1056 = vld [vmem:[%s329 + $0x20] sm:$0xff]
        %v1057 = vld [vmem:[%s329 + $0x28] sm:$0xff]
        %v1058 = vld [vmem:[%s329 + $0x30] sm:$0xff]
        %v1059 = vld [vmem:[%s329 + $0x38] sm:$0xff]
        %v1060 = vld [vmem:[%s329 + $0x40] sm:$0xff]
        %v1061 = vld [vmem:[%s329 + $0x48] sm:$0xff]
        %v1062 = vld [vmem:[%s329 + $0x50] sm:$0xff]
        %v1063 = vld [vmem:[%s329 + $0x58] sm:$0xff]
        %v1064 = vld [vmem:[%s329 + $0x60] sm:$0xff]
        %v1065 = vld [vmem:[%s329 + $0x68] sm:$0xff]
        %v1066 = vld [vmem:[%s329 + $0x70] sm:$0xff]
        %v1067 = vld [vmem:[%s329 + $0x78] sm:$0xff]
        %v1068 = vmul.f32 %v1052, 0.25
        %v1069 = vmul.f32 %v1053, 0.25
        %v1070 = vmul.f32 %v1054, 0.25
        %v1071 = vmul.f32 %v1055, 0.25
        %v1072 = vmul.f32 %v1056, 0.25
        %v1073 = vmul.f32 %v1057, 0.25
        %v1074 = vmul.f32 %v1058, 0.25
        %v1075 = vmul.f32 %v1059, 0.25
        %v1076 = vmul.f32 %v1060, 0.25
        %v1077 = vmul.f32 %v1061, 0.25
        %v1078 = vmul.f32 %v1062, 0.25
        %v1079 = vmul.f32 %v1063, 0.25
        %v1080 = vmul.f32 %v1064, 0.25
        %v1081 = vmul.f32 %v1065, 0.25
        %v1082 = vmul.f32 %v1066, 0.25
        %v1083 = vmul.f32 %v1067, 0.25
        %v1084 = vld [vmem:[%s3] sm:$0x1]
        %v1086 = vlaneseq
        %v1087 = vshrl.u32 %v1086, 7
        %v1088 = vsub.s32 0, %v1087
        %v1089 = vrot.slane %v1084, %v1088
        %v1091 = vadd.f32 %v1068, %v1089
        %v1092 = vadd.f32 %v1069, %v1089
        %v1093 = vadd.f32 %v1070, %v1089
        %v1094 = vadd.f32 %v1071, %v1089
        %v1095 = vadd.f32 %v1072, %v1089
        %v1096 = vadd.f32 %v1073, %v1089
        %v1097 = vadd.f32 %v1074, %v1089
        %v1098 = vadd.f32 %v1075, %v1089
        %v1099 = vadd.f32 %v1076, %v1089
        %v1100 = vadd.f32 %v1077, %v1089
        %v1101 = vadd.f32 %v1078, %v1089
        %v1102 = vadd.f32 %v1079, %v1089
        %v1103 = vadd.f32 %v1080, %v1089
        %v1104 = vadd.f32 %v1081, %v1089
        %v1105 = vadd.f32 %v1082, %v1089
        %v1106 = vadd.f32 %v1083, %v1089
        %1107 = vst.msk [vmem:[%s329] sm:$0xff] %vm1031, %v1091
        %1108 = vst.msk [vmem:[%s329 + $0x8] sm:$0xff] %vm1031, %v1092
        %1109 = vst.msk [vmem:[%s329 + $0x10] sm:$0xff] %vm1031, %v1093
        %1110 = vst.msk [vmem:[%s329 + $0x18] sm:$0xff] %vm1031, %v1094
        %1111 = vst.msk [vmem:[%s329 + $0x20] sm:$0xff] %vm1031, %v1095
        %1112 = vst.msk [vmem:[%s329 + $0x28] sm:$0xff] %vm1031, %v1096
        %1113 = vst.msk [vmem:[%s329 + $0x30] sm:$0xff] %vm1031, %v1097
        %1114 = vst.msk [vmem:[%s329 + $0x38] sm:$0xff] %vm1031, %v1098
        %1115 = vst.msk [vmem:[%s329 + $0x40] sm:$0xff] %vm1031, %v1099
        %1116 = vst.msk [vmem:[%s329 + $0x48] sm:$0xff] %vm1031, %v1100
        %1117 = vst.msk [vmem:[%s329 + $0x50] sm:$0xff] %vm1031, %v1101
        %1118 = vst.msk [vmem:[%s329 + $0x58] sm:$0xff] %vm1031, %v1102
        %1119 = vst.msk [vmem:[%s329 + $0x60] sm:$0xff] %vm1031, %v1103
        %1120 = vst.msk [vmem:[%s329 + $0x68] sm:$0xff] %vm1031, %v1104
        %1121 = vst.msk [vmem:[%s329 + $0x70] sm:$0xff] %vm1031, %v1105
        %1122 = vst.msk [vmem:[%s329 + $0x78] sm:$0xff] %vm1031, %v1106
      $region48: #{graph_transformer_teacher.7} parent=39 // pred_fallthru
        _
      %s1123 = smul.u32 16, %s22
      %p1124 = scmp.lt.s32.totalorder %s1123, 15
      %s1125 = scalar_select %p1124, %s1123, 15
      %s1126 = smul.addr %s1125, 8
      %s1127 = scalar_lea.vmem %s5, %s1126
      %s1128 = smul.u32 16, %s22
      %p1129 = scmp.lt.s32.totalorder %s23, 3
      %s1130 = scalar_select %p1129, %s23, 3
      %p1131 = scmp.lt.s32.totalorder %s1128, 15
      %s1132 = scalar_select %p1131, %s1128, 15
      %s1133 = smul.addr %s1130, 16
      %s1134 = sadd.s32 %s1132, %s1133
      %s1135 = smul.addr %s1134, 8
      %s1136 = scalar_lea.vmem %s6, %s1135
      // Predicated region
      $region49: #{graph_transformer_teacher.7} parent=39 // pred_check
        %p1137 = pneg %p170
      $region50: #{graph_transformer_teacher.7} parent=39 // pred_check_branch
        %1139 = sbr.rel (%p1137) target = $region52
      $region51: #{graph_transformer_teacher.7} parent=39 // pred_region
        %s1140 = smul.u32 16, %s22
      $region52: #{graph_transformer_teacher.7} parent=39 // pred_fallthru
        _
      // Predicated region
      $region53: #{graph_transformer_teacher.7} parent=39 // pred_check
        %p1141 = pneg %p198
      $region54: #{graph_transformer_teacher.7} parent=39 // pred_check_branch
        %1143 = sbr.rel (%p1141) target = $region56
      $region55: #{graph_transformer_teacher.7} parent=39 // pred_region
        %s1144 = smul.u32 16, %s22
      $region56: #{graph_transformer_teacher.7} parent=39 // pred_fallthru
        _
      // Predicated region
      $region57: #{graph_transformer_teacher.7} parent=39 // pred_check
        %p1145 = pneg %p170
      $region58: #{graph_transformer_teacher.7} parent=39 // pred_check_branch
        %1147 = sbr.rel (%p1145) target = $region60
      $region59: #{graph_transformer_teacher.7} parent=39 // pred_region
        %s1148 = smul.u32 16, %s22
        %p1149 = scmp.lt.s32.totalorder %s1148, 15
        %s1150 = scalar_select %p1149, %s1148, 15
        %s1151 = smul.addr %s1150, 8
        %s1152 = scalar_lea.vmem %s5, %s1151
      $region60: #{graph_transformer_teacher.7} parent=39 // pred_fallthru
        _
    $region40: #{graph_transformer_teacher.7} parent=5 // pred_fallthru
      _
    %p1153 = scmp.le.s32.totalorder 2, %s13
    // Predicated region
    $region61: #{graph_transformer_teacher.7} parent=5 // pred_check
      %p1154 = pneg %p1153
    $region62: #{graph_transformer_teacher.7} parent=5 // pred_check_branch
      %1156 = sbr.rel (%p1154) target = $region64
    $region63: #{graph_transformer_teacher.7} parent=5 // pred_region
      %s1157 = ssub.s32 %s13, 2
      // Predicated region
      $region65: #{graph_transformer_teacher.7} parent=63 // pred_check
        %p1158 = pneg %p204
      $region66: #{graph_transformer_teacher.7} parent=63 // pred_check_branch
        %1160 = sbr.rel (%p1158) target = $region68
      $region67: #{graph_transformer_teacher.7} parent=63 // pred_region
        %s1161 = smul.u32 16, %s24
        %p1162 = scmp.lt.s32.totalorder %s25, 3
        %s1163 = scalar_select %p1162, %s25, 3
        %p1164 = scmp.lt.s32.totalorder %s1161, 15
        %s1165 = scalar_select %p1164, %s1161, 15
        %s1166 = smul.addr %s1163, 16
        %s1167 = sadd.s32 %s1165, %s1166
        %s1168 = smul.addr %s1167, 8
        %s1169 = scalar_lea.vmem %s6, %s1168
      $region68: #{graph_transformer_teacher.7} parent=63 // pred_fallthru
        _
    $region64: #{graph_transformer_teacher.7} parent=5 // pred_fallthru
      _
  $region6: #{graph_transformer_teacher.7} parent=0 // loop_footer
    %s17 = sadd.s32 1, %s13
  $region7: #{graph_transformer_teacher.7} parent=0 // loop_footer_branch
    %12 = sbr.rel target = $region3
  $region8: #{graph_transformer_teacher.7} parent=0 // loop_exit
    _

// kernel: graph_transformer_teacher.6
$region0: #{graph_transformer_teacher.6}
  #allocation0 [shape = 'u32[]', space=smem, size = 0x4, offset = 0x4, fixed_abs, tag = 'smem constant byte address 0x4 - core index']
  #allocation1 [shape = 'u32[144,128]{1,0:T(1,128)}', space=vmem, size = 0x12000, scoped, tag = 'internal scratch']
  %s0 = inlined_call_operand.vmem [shape: f32[4,128,8], index: 0, kind: input, shape index: {}]
  %s1 = inlined_call_operand.vmem [shape: f32[4,8,32], index: 1, kind: input, shape index: {}]
  %s2 = inlined_call_operand.vmem [shape: f32[32,4], index: 2, kind: input, shape index: {}]
  %s3 = inlined_call_operand.vmem [shape: f32[32,4], index: 3, kind: input, shape index: {}]
  %s4 = inlined_call_operand.vmem [shape: f32[4,128,8], index: 4, kind: output, shape index: {0}]
  %s5 = inlined_call_operand.vmem [shape: f32[128,4], index: 5, kind: output, shape index: {1}]
  %s6 = inlined_call_operand.vmem [shape: f32[128,4], index: 6, kind: output, shape index: {2}]
  %7 = xla_tuple %s4, %s5, %s6
  %s8 = sld [smem:[#allocation0]]
  $region42: #{graph_transformer_teacher.6} parent=0
    _
  %s10 = ssub.s32 1, %s8
  %s11 = scalar_select 0, %s10, %s8
  // Predicated region
  $region2: #{graph_transformer_teacher.6} parent=0 // pred_check
    _
  $region3: #{graph_transformer_teacher.6} parent=0 // pred_check_branch
    %13 = sbr.rel (0) target = $region5
  $region4: #{graph_transformer_teacher.6} parent=0 // pred_region
    _
  $region5: #{graph_transformer_teacher.6} parent=0 // pred_fallthru
    _
  // Predicated region
  $region6: #{graph_transformer_teacher.6} parent=0 // pred_check
    _
  $region7: #{graph_transformer_teacher.6} parent=0 // pred_check_branch
    %15 = sbr.rel (0) target = $region9
  $region8: #{graph_transformer_teacher.6} parent=0 // pred_region
    _
  $region9: #{graph_transformer_teacher.6} parent=0 // pred_fallthru
    _
  // Predicated region
  $region10: #{graph_transformer_teacher.6} parent=0 // pred_check
    _
  $region11: #{graph_transformer_teacher.6} parent=0 // pred_check_branch
    %17 = sbr.rel (0) target = $region13
  $region12: #{graph_transformer_teacher.6} parent=0 // pred_region
    _
  $region13: #{graph_transformer_teacher.6} parent=0 // pred_fallthru
    _
  // Predicated region
  $region14: #{graph_transformer_teacher.6} parent=0 // pred_check
    _
  $region15: #{graph_transformer_teacher.6} parent=0 // pred_check_branch
    %19 = sbr.rel (0) target = $region17
  $region16: #{graph_transformer_teacher.6} parent=0 // pred_region
    _
  $region17: #{graph_transformer_teacher.6} parent=0 // pred_fallthru
    _
  %v20 = vld [vmem:[%s0] sm:$0xff]
  %v21 = vld [vmem:[%s0 + $0x8] sm:$0xff]
  %v22 = vld [vmem:[%s0 + $0x10] sm:$0xff]
  %v23 = vld [vmem:[%s0 + $0x18] sm:$0xff]
  %v24 = vld [vmem:[%s0 + $0x20] sm:$0xff]
  %v25 = vld [vmem:[%s0 + $0x28] sm:$0xff]
  %v26 = vld [vmem:[%s0 + $0x30] sm:$0xff]
  %v27 = vld [vmem:[%s0 + $0x38] sm:$0xff]
  %v28 = vld [vmem:[%s0 + $0x40] sm:$0xff]
  %v29 = vld [vmem:[%s0 + $0x48] sm:$0xff]
  %v30 = vld [vmem:[%s0 + $0x50] sm:$0xff]
  %v31 = vld [vmem:[%s0 + $0x58] sm:$0xff]
  %v32 = vld [vmem:[%s0 + $0x60] sm:$0xff]
  %v33 = vld [vmem:[%s0 + $0x68] sm:$0xff]
  %v34 = vld [vmem:[%s0 + $0x70] sm:$0xff]
  %v35 = vld [vmem:[%s0 + $0x78] sm:$0xff]
  %v36 = vld [vmem:[%s1] sm:$0xff]
  %s37 = scalar_lea.vmem %s0, 128
  %v38 = vld [vmem:[%s37] sm:$0xff]
  %v39 = vld [vmem:[%s37 + $0x8] sm:$0xff]
  %v40 = vld [vmem:[%s37 + $0x10] sm:$0xff]
  %v41 = vld [vmem:[%s37 + $0x18] sm:$0xff]
  %v42 = vld [vmem:[%s37 + $0x20] sm:$0xff]
  %v43 = vld [vmem:[%s37 + $0x28] sm:$0xff]
  %v44 = vld [vmem:[%s37 + $0x30] sm:$0xff]
  %v45 = vld [vmem:[%s37 + $0x38] sm:$0xff]
  %v46 = vld [vmem:[%s37 + $0x40] sm:$0xff]
  %v47 = vld [vmem:[%s37 + $0x48] sm:$0xff]
  %v48 = vld [vmem:[%s37 + $0x50] sm:$0xff]
  %v49 = vld [vmem:[%s37 + $0x58] sm:$0xff]
  %v50 = vld [vmem:[%s37 + $0x60] sm:$0xff]
  %v51 = vld [vmem:[%s37 + $0x68] sm:$0xff]
  %v52 = vld [vmem:[%s37 + $0x70] sm:$0xff]
  %v53 = vld [vmem:[%s37 + $0x78] sm:$0xff]
  %s54 = scalar_lea.vmem %s1, 8
  %v55 = vld [vmem:[%s54] sm:$0xff]
  %vm56 = vcmask 64512
  %v58 = vsel %vm56, %v38, 0
  %v61 = vsel %vm56, %v39, 0
  %v64 = vsel %vm56, %v40, 0
  %v67 = vsel %vm56, %v41, 0
  %v70 = vsel %vm56, %v42, 0
  %v73 = vsel %vm56, %v43, 0
  %v76 = vsel %vm56, %v44, 0
  %v79 = vsel %vm56, %v45, 0
  %v82 = vsel %vm56, %v46, 0
  %v85 = vsel %vm56, %v47, 0
  %v88 = vsel %vm56, %v48, 0
  %v91 = vsel %vm56, %v49, 0
  %v94 = vsel %vm56, %v50, 0
  %v97 = vsel %vm56, %v51, 0
  %v100 = vsel %vm56, %v52, 0
  %v103 = vsel %vm56, %v53, 0
  %105 = vmatprep.subr.mxu0 0.0
  %106 = vmatpush1.msra.mxu0 0.0
  %107 = vmatprep.subr.mxu0 0.0
  %108 = vmatpush1.msra.mxu0 0.0
  %109 = vmatprep.subr.mxu0 0.0
  %110 = vmatpush1.msra.mxu0 0.0
  %111 = vmatprep.subr.mxu0 0.0
  %112 = vmatpush1.msra.mxu0 0.0
  %113 = vmatprep.subr.mxu0 0.0
  %114 = vmatpush1.msra.mxu0 0.0
  %115 = vmatprep.subr.mxu0 0.0
  %116 = vmatpush1.msra.mxu0 0.0
  %117 = vmatprep.subr.mxu0 0.0
  %118 = vmatpush1.msra.mxu0 0.0
  %119 = vmatprep.subr.mxu0 0.0
  %120 = vmatpush1.msra.mxu0 0.0
  %121 = vmatprep.subr.mxu0 0.0
  %122 = vmatpush1.msra.mxu0 0.0
  %123 = vmatprep.subr.mxu0 0.0
  %124 = vmatpush1.msra.mxu0 0.0
  %125 = vmatprep.subr.mxu0 0.0
  %126 = vmatpush1.msra.mxu0 0.0
  %127 = vmatprep.subr.mxu0 0.0
  %128 = vmatpush1.msra.mxu0 0.0
  %129 = vmatprep.subr.mxu0 0.0
  %130 = vmatpush1.msra.mxu0 0.0
  %131 = vmatprep.subr.mxu0 0.0
  %132 = vmatpush1.msra.mxu0 0.0
  %133 = vmatprep.subr.mxu0 0.0
  %134 = vmatpush1.msra.mxu0 0.0
  %135 = vmatprep.subr.mxu0 0.0
  %136 = vmatpush1.msra.mxu0 %v55
  %137 = vmatprep.subr.mxu0 0.0
  %138 = vmatpush2.msra.mxu0 0.0
  %139 = vmatprep.subr.mxu0 0.0
  %140 = vmatpush2.msra.mxu0 0.0
  %141 = vmatprep.subr.mxu0 0.0
  %142 = vmatpush2.msra.mxu0 0.0
  %143 = vmatprep.subr.mxu0 0.0
  %144 = vmatpush2.msra.mxu0 0.0
  %145 = vmatprep.subr.mxu0 0.0
  %146 = vmatpush2.msra.mxu0 0.0
  %147 = vmatprep.subr.mxu0 0.0
  %148 = vmatpush2.msra.mxu0 0.0
  %149 = vmatprep.subr.mxu0 0.0
  %150 = vmatpush2.msra.mxu0 0.0
  %151 = vmatprep.subr.mxu0 0.0
  %152 = vmatpush2.msra.mxu0 0.0
  %153 = vmatprep.subr.mxu0 0.0
  %154 = vmatpush2.msra.mxu0 0.0
  %155 = vmatprep.subr.mxu0 0.0
  %156 = vmatpush2.msra.mxu0 0.0
  %157 = vmatprep.subr.mxu0 0.0
  %158 = vmatpush2.msra.mxu0 0.0
  %159 = vmatprep.subr.mxu0 0.0
  %160 = vmatpush2.msra.mxu0 0.0
  %161 = vmatprep.subr.mxu0 0.0
  %162 = vmatpush2.msra.mxu0 0.0
  %163 = vmatprep.subr.mxu0 0.0
  %164 = vmatpush2.msra.mxu0 0.0
  %165 = vmatprep.subr.mxu0 0.0
  %166 = vmatpush2.msra.mxu0 0.0
  %167 = vmatprep.subr.mxu0 0.0
  %168 = vmatpush2.msra.mxu0 0.0
  %169 = vmatprep.mubr.f32.mxu0 0.0
  %170 = vmatmul.mubr.f32.gmra.mxu0 %v58
  %v171 = vpop.f32.mrf.mxu0
  %v172 = vadd.f32 0.0, %v171
  %v173 = vpop.f32.mrf.mxu0
  %174 = vmatprep.mubr.f32.mxu0 0.0
  %175 = vmatmul.mubr.f32.gmra.mxu0 %v61
  %v176 = vpop.f32.mrf.mxu0
  %v177 = vadd.f32 0.0, %v176
  %v178 = vpop.f32.mrf.mxu0
  %179 = vmatprep.mubr.f32.mxu0 0.0
  %180 = vmatmul.mubr.f32.gmra.mxu0 %v64
  %v181 = vpop.f32.mrf.mxu0
  %v182 = vadd.f32 0.0, %v181
  %v183 = vpop.f32.mrf.mxu0
  %184 = vmatprep.mubr.f32.mxu0 0.0
  %185 = vmatmul.mubr.f32.gmra.mxu0 %v67
  %v186 = vpop.f32.mrf.mxu0
  %v187 = vadd.f32 0.0, %v186
  %v188 = vpop.f32.mrf.mxu0
  %189 = vmatprep.mubr.f32.mxu0 0.0
  %190 = vmatmul.mubr.f32.gmra.mxu0 %v70
  %v191 = vpop.f32.mrf.mxu0
  %v192 = vadd.f32 0.0, %v191
  %v193 = vpop.f32.mrf.mxu0
  %194 = vmatprep.mubr.f32.mxu0 0.0
  %195 = vmatmul.mubr.f32.gmra.mxu0 %v73
  %v196 = vpop.f32.mrf.mxu0
  %v197 = vadd.f32 0.0, %v196
  %v198 = vpop.f32.mrf.mxu0
  %199 = vmatprep.mubr.f32.mxu0 0.0
  %200 = vmatmul.mubr.f32.gmra.mxu0 %v76
  %v201 = vpop.f32.mrf.mxu0
  %v202 = vadd.f32 0.0, %v201
  %v203 = vpop.f32.mrf.mxu0
  %204 = vmatprep.mubr.f32.mxu0 0.0
  %205 = vmatmul.mubr.f32.gmra.mxu0 %v79
  %v206 = vpop.f32.mrf.mxu0
  %v207 = vadd.f32 0.0, %v206
  %v208 = vpop.f32.mrf.mxu0
  %209 = vmatprep.mubr.f32.mxu0 0.0
  %210 = vmatmul.mubr.f32.gmra.mxu0 %v82
  %v211 = vpop.f32.mrf.mxu0
  %v212 = vadd.f32 0.0, %v211
  %v213 = vpop.f32.mrf.mxu0
  %214 = vmatprep.mubr.f32.mxu0 0.0
  %215 = vmatmul.mubr.f32.gmra.mxu0 %v85
  %v216 = vpop.f32.mrf.mxu0
  %v217 = vadd.f32 0.0, %v216
  %v218 = vpop.f32.mrf.mxu0
  %219 = vmatprep.mubr.f32.mxu0 0.0
  %220 = vmatmul.mubr.f32.gmra.mxu0 %v88
  %v221 = vpop.f32.mrf.mxu0
  %v222 = vadd.f32 0.0, %v221
  %v223 = vpop.f32.mrf.mxu0
  %224 = vmatprep.mubr.f32.mxu0 0.0
  %225 = vmatmul.mubr.f32.gmra.mxu0 %v91
  %v226 = vpop.f32.mrf.mxu0
  %v227 = vadd.f32 0.0, %v226
  %v228 = vpop.f32.mrf.mxu0
  %229 = vmatprep.mubr.f32.mxu0 0.0
  %230 = vmatmul.mubr.f32.gmra.mxu0 %v94
  %v231 = vpop.f32.mrf.mxu0
  %v232 = vadd.f32 0.0, %v231
  %v233 = vpop.f32.mrf.mxu0
  %234 = vmatprep.mubr.f32.mxu0 0.0
  %235 = vmatmul.mubr.f32.gmra.mxu0 %v97
  %v236 = vpop.f32.mrf.mxu0
  %v237 = vadd.f32 0.0, %v236
  %v238 = vpop.f32.mrf.mxu0
  %239 = vmatprep.mubr.f32.mxu0 0.0
  %240 = vmatmul.mubr.f32.gmra.mxu0 %v100
  %v241 = vpop.f32.mrf.mxu0
  %v242 = vadd.f32 0.0, %v241
  %v243 = vpop.f32.mrf.mxu0
  %244 = vmatprep.mubr.f32.mxu0 0.0
  %245 = vmatmul.mubr.f32.gmra.mxu0 %v103
  %v246 = vpop.f32.mrf.mxu0
  %v247 = vadd.f32 0.0, %v246
  %v248 = vpop.f32.mrf.mxu0
  %249 = vdwg.mxu0
  %v251 = vsel %vm56, %v20, 0
  %v254 = vsel %vm56, %v21, 0
  %v257 = vsel %vm56, %v22, 0
  %v260 = vsel %vm56, %v23, 0
  %v263 = vsel %vm56, %v24, 0
  %v266 = vsel %vm56, %v25, 0
  %v269 = vsel %vm56, %v26, 0
  %v272 = vsel %vm56, %v27, 0
  %v275 = vsel %vm56, %v28, 0
  %v278 = vsel %vm56, %v29, 0
  %v281 = vsel %vm56, %v30, 0
  %v284 = vsel %vm56, %v31, 0
  %v287 = vsel %vm56, %v32, 0
  %v290 = vsel %vm56, %v33, 0
  %v293 = vsel %vm56, %v34, 0
  %v296 = vsel %vm56, %v35, 0
  %298 = vmatprep.subr.mxu0 0.0
  %299 = vmatpush1.msra.mxu0 0.0
  %300 = vmatprep.subr.mxu0 0.0
  %301 = vmatpush1.msra.mxu0 0.0
  %302 = vmatprep.subr.mxu0 0.0
  %303 = vmatpush1.msra.mxu0 0.0
  %304 = vmatprep.subr.mxu0 0.0
  %305 = vmatpush1.msra.mxu0 0.0
  %306 = vmatprep.subr.mxu0 0.0
  %307 = vmatpush1.msra.mxu0 0.0
  %308 = vmatprep.subr.mxu0 0.0
  %309 = vmatpush1.msra.mxu0 0.0
  %310 = vmatprep.subr.mxu0 0.0
  %311 = vmatpush1.msra.mxu0 0.0
  %312 = vmatprep.subr.mxu0 0.0
  %313 = vmatpush1.msra.mxu0 0.0
  %314 = vmatprep.subr.mxu0 0.0
  %315 = vmatpush1.msra.mxu0 0.0
  %316 = vmatprep.subr.mxu0 0.0
  %317 = vmatpush1.msra.mxu0 0.0
  %318 = vmatprep.subr.mxu0 0.0
  %319 = vmatpush1.msra.mxu0 0.0
  %320 = vmatprep.subr.mxu0 0.0
  %321 = vmatpush1.msra.mxu0 0.0
  %322 = vmatprep.subr.mxu0 0.0
  %323 = vmatpush1.msra.mxu0 0.0
  %324 = vmatprep.subr.mxu0 0.0
  %325 = vmatpush1.msra.mxu0 0.0
  %326 = vmatprep.subr.mxu0 0.0
  %327 = vmatpush1.msra.mxu0 0.0
  %328 = vmatprep.subr.mxu0 0.0
  %329 = vmatpush1.msra.mxu0 %v36
  %330 = vmatprep.subr.mxu0 0.0
  %331 = vmatpush2.msra.mxu0 0.0
  %332 = vmatprep.subr.mxu0 0.0
  %333 = vmatpush2.msra.mxu0 0.0
  %334 = vmatprep.subr.mxu0 0.0
  %335 = vmatpush2.msra.mxu0 0.0
  %336 = vmatprep.subr.mxu0 0.0
  %337 = vmatpush2.msra.mxu0 0.0
  %338 = vmatprep.subr.mxu0 0.0
  %339 = vmatpush2.msra.mxu0 0.0
  %340 = vmatprep.subr.mxu0 0.0
  %341 = vmatpush2.msra.mxu0 0.0
  %342 = vmatprep.subr.mxu0 0.0
  %343 = vmatpush2.msra.mxu0 0.0
  %344 = vmatprep.subr.mxu0 0.0
  %345 = vmatpush2.msra.mxu0 0.0
  %346 = vmatprep.subr.mxu0 0.0
  %347 = vmatpush2.msra.mxu0 0.0
  %348 = vmatprep.subr.mxu0 0.0
  %349 = vmatpush2.msra.mxu0 0.0
  %350 = vmatprep.subr.mxu0 0.0
  %351 = vmatpush2.msra.mxu0 0.0
  %352 = vmatprep.subr.mxu0 0.0
  %353 = vmatpush2.msra.mxu0 0.0
  %354 = vmatprep.subr.mxu0 0.0
  %355 = vmatpush2.msra.mxu0 0.0
  %356 = vmatprep.subr.mxu0 0.0
  %357 = vmatpush2.msra.mxu0 0.0
  %358 = vmatprep.subr.mxu0 0.0
  %359 = vmatpush2.msra.mxu0 0.0
  %360 = vmatprep.subr.mxu0 0.0
  %361 = vmatpush2.msra.mxu0 0.0
  %362 = vmatprep.mubr.f32.mxu0 0.0
  %363 = vmatmul.mubr.f32.gmra.mxu0 %v251
  %v364 = vpop.f32.mrf.mxu0
  %v365 = vadd.f32 %v172, %v364
  %v366 = vpop.f32.mrf.mxu0
  %367 = vmatprep.mubr.f32.mxu0 0.0
  %368 = vmatmul.mubr.f32.gmra.mxu0 %v254
  %v369 = vpop.f32.mrf.mxu0
  %v370 = vadd.f32 %v177, %v369
  %v371 = vpop.f32.mrf.mxu0
  %372 = vmatprep.mubr.f32.mxu0 0.0
  %373 = vmatmul.mubr.f32.gmra.mxu0 %v257
  %v374 = vpop.f32.mrf.mxu0
  %v375 = vadd.f32 %v182, %v374
  %v376 = vpop.f32.mrf.mxu0
  %377 = vmatprep.mubr.f32.mxu0 0.0
  %378 = vmatmul.mubr.f32.gmra.mxu0 %v260
  %v379 = vpop.f32.mrf.mxu0
  %v380 = vadd.f32 %v187, %v379
  %v381 = vpop.f32.mrf.mxu0
  %382 = vmatprep.mubr.f32.mxu0 0.0
  %383 = vmatmul.mubr.f32.gmra.mxu0 %v263
  %v384 = vpop.f32.mrf.mxu0
  %v385 = vadd.f32 %v192, %v384
  %v386 = vpop.f32.mrf.mxu0
  %387 = vmatprep.mubr.f32.mxu0 0.0
  %388 = vmatmul.mubr.f32.gmra.mxu0 %v266
  %v389 = vpop.f32.mrf.mxu0
  %v390 = vadd.f32 %v197, %v389
  %v391 = vpop.f32.mrf.mxu0
  %392 = vmatprep.mubr.f32.mxu0 0.0
  %393 = vmatmul.mubr.f32.gmra.mxu0 %v269
  %v394 = vpop.f32.mrf.mxu0
  %v395 = vadd.f32 %v202, %v394
  %v396 = vpop.f32.mrf.mxu0
  %397 = vmatprep.mubr.f32.mxu0 0.0
  %398 = vmatmul.mubr.f32.gmra.mxu0 %v272
  %v399 = vpop.f32.mrf.mxu0
  %v400 = vadd.f32 %v207, %v399
  %v401 = vpop.f32.mrf.mxu0
  %402 = vmatprep.mubr.f32.mxu0 0.0
  %403 = vmatmul.mubr.f32.gmra.mxu0 %v275
  %v404 = vpop.f32.mrf.mxu0
  %v405 = vadd.f32 %v212, %v404
  %v406 = vpop.f32.mrf.mxu0
  %407 = vmatprep.mubr.f32.mxu0 0.0
  %408 = vmatmul.mubr.f32.gmra.mxu0 %v278
  %v409 = vpop.f32.mrf.mxu0
  %v410 = vadd.f32 %v217, %v409
  %v411 = vpop.f32.mrf.mxu0
  %412 = vmatprep.mubr.f32.mxu0 0.0
  %413 = vmatmul.mubr.f32.gmra.mxu0 %v281
  %v414 = vpop.f32.mrf.mxu0
  %v415 = vadd.f32 %v222, %v414
  %v416 = vpop.f32.mrf.mxu0
  %417 = vmatprep.mubr.f32.mxu0 0.0
  %418 = vmatmul.mubr.f32.gmra.mxu0 %v284
  %v419 = vpop.f32.mrf.mxu0
  %v420 = vadd.f32 %v227, %v419
  %v421 = vpop.f32.mrf.mxu0
  %422 = vmatprep.mubr.f32.mxu0 0.0
  %423 = vmatmul.mubr.f32.gmra.mxu0 %v287
  %v424 = vpop.f32.mrf.mxu0
  %v425 = vadd.f32 %v232, %v424
  %v426 = vpop.f32.mrf.mxu0
  %427 = vmatprep.mubr.f32.mxu0 0.0
  %428 = vmatmul.mubr.f32.gmra.mxu0 %v290
  %v429 = vpop.f32.mrf.mxu0
  %v430 = vadd.f32 %v237, %v429
  %v431 = vpop.f32.mrf.mxu0
  %432 = vmatprep.mubr.f32.mxu0 0.0
  %433 = vmatmul.mubr.f32.gmra.mxu0 %v293
  %v434 = vpop.f32.mrf.mxu0
  %v435 = vadd.f32 %v242, %v434
  %v436 = vpop.f32.mrf.mxu0
  %437 = vmatprep.mubr.f32.mxu0 0.0
  %438 = vmatmul.mubr.f32.gmra.mxu0 %v296
  %v439 = vpop.f32.mrf.mxu0
  %v440 = vadd.f32 %v247, %v439
  %v441 = vpop.f32.mrf.mxu0
  %442 = vdwg.mxu0
  %s443 = scalar_lea.vmem %s0, 256
  %v444 = vld [vmem:[%s443] sm:$0xff]
  %v445 = vld [vmem:[%s443 + $0x8] sm:$0xff]
  %v446 = vld [vmem:[%s443 + $0x10] sm:$0xff]
  %v447 = vld [vmem:[%s443 + $0x18] sm:$0xff]
  %v448 = vld [vmem:[%s443 + $0x20] sm:$0xff]
  %v449 = vld [vmem:[%s443 + $0x28] sm:$0xff]
  %v450 = vld [vmem:[%s443 + $0x30] sm:$0xff]
  %v451 = vld [vmem:[%s443 + $0x38] sm:$0xff]
  %v452 = vld [vmem:[%s443 + $0x40] sm:$0xff]
  %v453 = vld [vmem:[%s443 + $0x48] sm:$0xff]
  %v454 = vld [vmem:[%s443 + $0x50] sm:$0xff]
  %v455 = vld [vmem:[%s443 + $0x58] sm:$0xff]
  %v456 = vld [vmem:[%s443 + $0x60] sm:$0xff]
  %v457 = vld [vmem:[%s443 + $0x68] sm:$0xff]
  %v458 = vld [vmem:[%s443 + $0x70] sm:$0xff]
  %v459 = vld [vmem:[%s443 + $0x78] sm:$0xff]
  %s460 = scalar_lea.vmem %s1, 16
  %v461 = vld [vmem:[%s460] sm:$0xff]
  %v463 = vsel %vm56, %v444, 0
  %v466 = vsel %vm56, %v445, 0
  %v469 = vsel %vm56, %v446, 0
  %v472 = vsel %vm56, %v447, 0
  %v475 = vsel %vm56, %v448, 0
  %v478 = vsel %vm56, %v449, 0
  %v481 = vsel %vm56, %v450, 0
  %v484 = vsel %vm56, %v451, 0
  %v487 = vsel %vm56, %v452, 0
  %v490 = vsel %vm56, %v453, 0
  %v493 = vsel %vm56, %v454, 0
  %v496 = vsel %vm56, %v455, 0
  %v499 = vsel %vm56, %v456, 0
  %v502 = vsel %vm56, %v457, 0
  %v505 = vsel %vm56, %v458, 0
  %v508 = vsel %vm56, %v459, 0
  %510 = vmatprep.subr.mxu0 0.0
  %511 = vmatpush1.msra.mxu0 0.0
  %512 = vmatprep.subr.mxu0 0.0
  %513 = vmatpush1.msra.mxu0 0.0
  %514 = vmatprep.subr.mxu0 0.0
  %515 = vmatpush1.msra.mxu0 0.0
  %516 = vmatprep.subr.mxu0 0.0
  %517 = vmatpush1.msra.mxu0 0.0
  %518 = vmatprep.subr.mxu0 0.0
  %519 = vmatpush1.msra.mxu0 0.0
  %520 = vmatprep.subr.mxu0 0.0
  %521 = vmatpush1.msra.mxu0 0.0
  %522 = vmatprep.subr.mxu0 0.0
  %523 = vmatpush1.msra.mxu0 0.0
  %524 = vmatprep.subr.mxu0 0.0
  %525 = vmatpush1.msra.mxu0 0.0
  %526 = vmatprep.subr.mxu0 0.0
  %527 = vmatpush1.msra.mxu0 0.0
  %528 = vmatprep.subr.mxu0 0.0
  %529 = vmatpush1.msra.mxu0 0.0
  %530 = vmatprep.subr.mxu0 0.0
  %531 = vmatpush1.msra.mxu0 0.0
  %532 = vmatprep.subr.mxu0 0.0
  %533 = vmatpush1.msra.mxu0 0.0
  %534 = vmatprep.subr.mxu0 0.0
  %535 = vmatpush1.msra.mxu0 0.0
  %536 = vmatprep.subr.mxu0 0.0
  %537 = vmatpush1.msra.mxu0 0.0
  %538 = vmatprep.subr.mxu0 0.0
  %539 = vmatpush1.msra.mxu0 0.0
  %540 = vmatprep.subr.mxu0 0.0
  %541 = vmatpush1.msra.mxu0 %v461
  %542 = vmatprep.subr.mxu0 0.0
  %543 = vmatpush2.msra.mxu0 0.0
  %544 = vmatprep.subr.mxu0 0.0
  %545 = vmatpush2.msra.mxu0 0.0
  %546 = vmatprep.subr.mxu0 0.0
  %547 = vmatpush2.msra.mxu0 0.0
  %548 = vmatprep.subr.mxu0 0.0
  %549 = vmatpush2.msra.mxu0 0.0
  %550 = vmatprep.subr.mxu0 0.0
  %551 = vmatpush2.msra.mxu0 0.0
  %552 = vmatprep.subr.mxu0 0.0
  %553 = vmatpush2.msra.mxu0 0.0
  %554 = vmatprep.subr.mxu0 0.0
  %555 = vmatpush2.msra.mxu0 0.0
  %556 = vmatprep.subr.mxu0 0.0
  %557 = vmatpush2.msra.mxu0 0.0
  %558 = vmatprep.subr.mxu0 0.0
  %559 = vmatpush2.msra.mxu0 0.0
  %560 = vmatprep.subr.mxu0 0.0
  %561 = vmatpush2.msra.mxu0 0.0
  %562 = vmatprep.subr.mxu0 0.0
  %563 = vmatpush2.msra.mxu0 0.0
  %564 = vmatprep.subr.mxu0 0.0
  %565 = vmatpush2.msra.mxu0 0.0
  %566 = vmatprep.subr.mxu0 0.0
  %567 = vmatpush2.msra.mxu0 0.0
  %568 = vmatprep.subr.mxu0 0.0
  %569 = vmatpush2.msra.mxu0 0.0
  %570 = vmatprep.subr.mxu0 0.0
  %571 = vmatpush2.msra.mxu0 0.0
  %572 = vmatprep.subr.mxu0 0.0
  %573 = vmatpush2.msra.mxu0 0.0
  %574 = vmatprep.mubr.f32.mxu0 0.0
  %575 = vmatmul.mubr.f32.gmra.mxu0 %v463
  %v576 = vpop.f32.mrf.mxu0
  %v577 = vadd.f32 0.0, %v576
  %v578 = vpop.f32.mrf.mxu0
  %579 = vmatprep.mubr.f32.mxu0 0.0
  %580 = vmatmul.mubr.f32.gmra.mxu0 %v466
  %v581 = vpop.f32.mrf.mxu0
  %v582 = vadd.f32 0.0, %v581
  %v583 = vpop.f32.mrf.mxu0
  %584 = vmatprep.mubr.f32.mxu0 0.0
  %585 = vmatmul.mubr.f32.gmra.mxu0 %v469
  %v586 = vpop.f32.mrf.mxu0
  %v587 = vadd.f32 0.0, %v586
  %v588 = vpop.f32.mrf.mxu0
  %589 = vmatprep.mubr.f32.mxu0 0.0
  %590 = vmatmul.mubr.f32.gmra.mxu0 %v472
  %v591 = vpop.f32.mrf.mxu0
  %v592 = vadd.f32 0.0, %v591
  %v593 = vpop.f32.mrf.mxu0
  %594 = vmatprep.mubr.f32.mxu0 0.0
  %595 = vmatmul.mubr.f32.gmra.mxu0 %v475
  %v596 = vpop.f32.mrf.mxu0
  %v597 = vadd.f32 0.0, %v596
  %v598 = vpop.f32.mrf.mxu0
  %599 = vmatprep.mubr.f32.mxu0 0.0
  %600 = vmatmul.mubr.f32.gmra.mxu0 %v478
  %v601 = vpop.f32.mrf.mxu0
  %v602 = vadd.f32 0.0, %v601
  %v603 = vpop.f32.mrf.mxu0
  %604 = vmatprep.mubr.f32.mxu0 0.0
  %605 = vmatmul.mubr.f32.gmra.mxu0 %v481
  %v606 = vpop.f32.mrf.mxu0
  %v607 = vadd.f32 0.0, %v606
  %v608 = vpop.f32.mrf.mxu0
  %609 = vmatprep.mubr.f32.mxu0 0.0
  %610 = vmatmul.mubr.f32.gmra.mxu0 %v484
  %v611 = vpop.f32.mrf.mxu0
  %v612 = vadd.f32 0.0, %v611
  %v613 = vpop.f32.mrf.mxu0
  %614 = vmatprep.mubr.f32.mxu0 0.0
  %615 = vmatmul.mubr.f32.gmra.mxu0 %v487
  %v616 = vpop.f32.mrf.mxu0
  %v617 = vadd.f32 0.0, %v616
  %v618 = vpop.f32.mrf.mxu0
  %619 = vmatprep.mubr.f32.mxu0 0.0
  %620 = vmatmul.mubr.f32.gmra.mxu0 %v490
  %v621 = vpop.f32.mrf.mxu0
  %v622 = vadd.f32 0.0, %v621
  %v623 = vpop.f32.mrf.mxu0
  %624 = vmatprep.mubr.f32.mxu0 0.0
  %625 = vmatmul.mubr.f32.gmra.mxu0 %v493
  %v626 = vpop.f32.mrf.mxu0
  %v627 = vadd.f32 0.0, %v626
  %v628 = vpop.f32.mrf.mxu0
  %629 = vmatprep.mubr.f32.mxu0 0.0
  %630 = vmatmul.mubr.f32.gmra.mxu0 %v496
  %v631 = vpop.f32.mrf.mxu0
  %v632 = vadd.f32 0.0, %v631
  %v633 = vpop.f32.mrf.mxu0
  %634 = vmatprep.mubr.f32.mxu0 0.0
  %635 = vmatmul.mubr.f32.gmra.mxu0 %v499
  %v636 = vpop.f32.mrf.mxu0
  %v637 = vadd.f32 0.0, %v636
  %v638 = vpop.f32.mrf.mxu0
  %639 = vmatprep.mubr.f32.mxu0 0.0
  %640 = vmatmul.mubr.f32.gmra.mxu0 %v502
  %v641 = vpop.f32.mrf.mxu0
  %v642 = vadd.f32 0.0, %v641
  %v643 = vpop.f32.mrf.mxu0
  %644 = vmatprep.mubr.f32.mxu0 0.0
  %645 = vmatmul.mubr.f32.gmra.mxu0 %v505
  %v646 = vpop.f32.mrf.mxu0
  %v647 = vadd.f32 0.0, %v646
  %v648 = vpop.f32.mrf.mxu0
  %649 = vmatprep.mubr.f32.mxu0 0.0
  %650 = vmatmul.mubr.f32.gmra.mxu0 %v508
  %v651 = vpop.f32.mrf.mxu0
  %v652 = vadd.f32 0.0, %v651
  %v653 = vpop.f32.mrf.mxu0
  %654 = vdwg.mxu0
  %v655 = vadd.f32 %v365, %v577
  %v656 = vadd.f32 %v370, %v582
  %v657 = vadd.f32 %v375, %v587
  %v658 = vadd.f32 %v380, %v592
  %v659 = vadd.f32 %v385, %v597
  %v660 = vadd.f32 %v390, %v602
  %v661 = vadd.f32 %v395, %v607
  %v662 = vadd.f32 %v400, %v612
  %v663 = vadd.f32 %v405, %v617
  %v664 = vadd.f32 %v410, %v622
  %v665 = vadd.f32 %v415, %v627
  %v666 = vadd.f32 %v420, %v632
  %v667 = vadd.f32 %v425, %v637
  %v668 = vadd.f32 %v430, %v642
  %v669 = vadd.f32 %v435, %v647
  %v670 = vadd.f32 %v440, %v652
  %s671 = scalar_lea.vmem %s0, 384
  %v672 = vld [vmem:[%s671] sm:$0xff]
  %v673 = vld [vmem:[%s671 + $0x8] sm:$0xff]
  %v674 = vld [vmem:[%s671 + $0x10] sm:$0xff]
  %v675 = vld [vmem:[%s671 + $0x18] sm:$0xff]
  %v676 = vld [vmem:[%s671 + $0x20] sm:$0xff]
  %v677 = vld [vmem:[%s671 + $0x28] sm:$0xff]
  %v678 = vld [vmem:[%s671 + $0x30] sm:$0xff]
  %v679 = vld [vmem:[%s671 + $0x38] sm:$0xff]
  %v680 = vld [vmem:[%s671 + $0x40] sm:$0xff]
  %v681 = vld [vmem:[%s671 + $0x48] sm:$0xff]
  %v682 = vld [vmem:[%s671 + $0x50] sm:$0xff]
  %v683 = vld [vmem:[%s671 + $0x58] sm:$0xff]
  %v684 = vld [vmem:[%s671 + $0x60] sm:$0xff]
  %v685 = vld [vmem:[%s671 + $0x68] sm:$0xff]
  %v686 = vld [vmem:[%s671 + $0x70] sm:$0xff]
  %v687 = vld [vmem:[%s671 + $0x78] sm:$0xff]
  %s688 = scalar_lea.vmem %s1, 24
  %v689 = vld [vmem:[%s688] sm:$0xff]
  %v691 = vsel %vm56, %v672, 0
  %v694 = vsel %vm56, %v673, 0
  %v697 = vsel %vm56, %v674, 0
  %v700 = vsel %vm56, %v675, 0
  %v703 = vsel %vm56, %v676, 0
  %v706 = vsel %vm56, %v677, 0
  %v709 = vsel %vm56, %v678, 0
  %v712 = vsel %vm56, %v679, 0
  %v715 = vsel %vm56, %v680, 0
  %v718 = vsel %vm56, %v681, 0
  %v721 = vsel %vm56, %v682, 0
  %v724 = vsel %vm56, %v683, 0
  %v727 = vsel %vm56, %v684, 0
  %v730 = vsel %vm56, %v685, 0
  %v733 = vsel %vm56, %v686, 0
  %v736 = vsel %vm56, %v687, 0
  %738 = vmatprep.subr.mxu0 0.0
  %739 = vmatpush1.msra.mxu0 0.0
  %740 = vmatprep.subr.mxu0 0.0
  %741 = vmatpush1.msra.mxu0 0.0
  %742 = vmatprep.subr.mxu0 0.0
  %743 = vmatpush1.msra.mxu0 0.0
  %744 = vmatprep.subr.mxu0 0.0
  %745 = vmatpush1.msra.mxu0 0.0
  %746 = vmatprep.subr.mxu0 0.0
  %747 = vmatpush1.msra.mxu0 0.0
  %748 = vmatprep.subr.mxu0 0.0
  %749 = vmatpush1.msra.mxu0 0.0
  %750 = vmatprep.subr.mxu0 0.0
  %751 = vmatpush1.msra.mxu0 0.0
  %752 = vmatprep.subr.mxu0 0.0
  %753 = vmatpush1.msra.mxu0 0.0
  %754 = vmatprep.subr.mxu0 0.0
  %755 = vmatpush1.msra.mxu0 0.0
  %756 = vmatprep.subr.mxu0 0.0
  %757 = vmatpush1.msra.mxu0 0.0
  %758 = vmatprep.subr.mxu0 0.0
  %759 = vmatpush1.msra.mxu0 0.0
  %760 = vmatprep.subr.mxu0 0.0
  %761 = vmatpush1.msra.mxu0 0.0
  %762 = vmatprep.subr.mxu0 0.0
  %763 = vmatpush1.msra.mxu0 0.0
  %764 = vmatprep.subr.mxu0 0.0
  %765 = vmatpush1.msra.mxu0 0.0
  %766 = vmatprep.subr.mxu0 0.0
  %767 = vmatpush1.msra.mxu0 0.0
  %768 = vmatprep.subr.mxu0 0.0
  %769 = vmatpush1.msra.mxu0 %v689
  %770 = vmatprep.subr.mxu0 0.0
  %771 = vmatpush2.msra.mxu0 0.0
  %772 = vmatprep.subr.mxu0 0.0
  %773 = vmatpush2.msra.mxu0 0.0
  %774 = vmatprep.subr.mxu0 0.0
  %775 = vmatpush2.msra.mxu0 0.0
  %776 = vmatprep.subr.mxu0 0.0
  %777 = vmatpush2.msra.mxu0 0.0
  %778 = vmatprep.subr.mxu0 0.0
  %779 = vmatpush2.msra.mxu0 0.0
  %780 = vmatprep.subr.mxu0 0.0
  %781 = vmatpush2.msra.mxu0 0.0
  %782 = vmatprep.subr.mxu0 0.0
  %783 = vmatpush2.msra.mxu0 0.0
  %784 = vmatprep.subr.mxu0 0.0
  %785 = vmatpush2.msra.mxu0 0.0
  %786 = vmatprep.subr.mxu0 0.0
  %787 = vmatpush2.msra.mxu0 0.0
  %788 = vmatprep.subr.mxu0 0.0
  %789 = vmatpush2.msra.mxu0 0.0
  %790 = vmatprep.subr.mxu0 0.0
  %791 = vmatpush2.msra.mxu0 0.0
  %792 = vmatprep.subr.mxu0 0.0
  %793 = vmatpush2.msra.mxu0 0.0
  %794 = vmatprep.subr.mxu0 0.0
  %795 = vmatpush2.msra.mxu0 0.0
  %796 = vmatprep.subr.mxu0 0.0
  %797 = vmatpush2.msra.mxu0 0.0
  %798 = vmatprep.subr.mxu0 0.0
  %799 = vmatpush2.msra.mxu0 0.0
  %800 = vmatprep.subr.mxu0 0.0
  %801 = vmatpush2.msra.mxu0 0.0
  %802 = vmatprep.mubr.f32.mxu0 0.0
  %803 = vmatmul.mubr.f32.gmra.mxu0 %v691
  %v804 = vpop.f32.mrf.mxu0
  %v805 = vadd.f32 0.0, %v804
  %v806 = vpop.f32.mrf.mxu0
  %807 = vmatprep.mubr.f32.mxu0 0.0
  %808 = vmatmul.mubr.f32.gmra.mxu0 %v694
  %v809 = vpop.f32.mrf.mxu0
  %v810 = vadd.f32 0.0, %v809
  %v811 = vpop.f32.mrf.mxu0
  %812 = vmatprep.mubr.f32.mxu0 0.0
  %813 = vmatmul.mubr.f32.gmra.mxu0 %v697
  %v814 = vpop.f32.mrf.mxu0
  %v815 = vadd.f32 0.0, %v814
  %v816 = vpop.f32.mrf.mxu0
  %817 = vmatprep.mubr.f32.mxu0 0.0
  %818 = vmatmul.mubr.f32.gmra.mxu0 %v700
  %v819 = vpop.f32.mrf.mxu0
  %v820 = vadd.f32 0.0, %v819
  %v821 = vpop.f32.mrf.mxu0
  %822 = vmatprep.mubr.f32.mxu0 0.0
  %823 = vmatmul.mubr.f32.gmra.mxu0 %v703
  %v824 = vpop.f32.mrf.mxu0
  %v825 = vadd.f32 0.0, %v824
  %v826 = vpop.f32.mrf.mxu0
  %827 = vmatprep.mubr.f32.mxu0 0.0
  %828 = vmatmul.mubr.f32.gmra.mxu0 %v706
  %v829 = vpop.f32.mrf.mxu0
  %v830 = vadd.f32 0.0, %v829
  %v831 = vpop.f32.mrf.mxu0
  %832 = vmatprep.mubr.f32.mxu0 0.0
  %833 = vmatmul.mubr.f32.gmra.mxu0 %v709
  %v834 = vpop.f32.mrf.mxu0
  %v835 = vadd.f32 0.0, %v834
  %v836 = vpop.f32.mrf.mxu0
  %837 = vmatprep.mubr.f32.mxu0 0.0
  %838 = vmatmul.mubr.f32.gmra.mxu0 %v712
  %v839 = vpop.f32.mrf.mxu0
  %v840 = vadd.f32 0.0, %v839
  %v841 = vpop.f32.mrf.mxu0
  %842 = vmatprep.mubr.f32.mxu0 0.0
  %843 = vmatmul.mubr.f32.gmra.mxu0 %v715
  %v844 = vpop.f32.mrf.mxu0
  %v845 = vadd.f32 0.0, %v844
  %v846 = vpop.f32.mrf.mxu0
  %847 = vmatprep.mubr.f32.mxu0 0.0
  %848 = vmatmul.mubr.f32.gmra.mxu0 %v718
  %v849 = vpop.f32.mrf.mxu0
  %v850 = vadd.f32 0.0, %v849
  %v851 = vpop.f32.mrf.mxu0
  %852 = vmatprep.mubr.f32.mxu0 0.0
  %853 = vmatmul.mubr.f32.gmra.mxu0 %v721
  %v854 = vpop.f32.mrf.mxu0
  %v855 = vadd.f32 0.0, %v854
  %v856 = vpop.f32.mrf.mxu0
  %857 = vmatprep.mubr.f32.mxu0 0.0
  %858 = vmatmul.mubr.f32.gmra.mxu0 %v724
  %v859 = vpop.f32.mrf.mxu0
  %v860 = vadd.f32 0.0, %v859
  %v861 = vpop.f32.mrf.mxu0
  %862 = vmatprep.mubr.f32.mxu0 0.0
  %863 = vmatmul.mubr.f32.gmra.mxu0 %v727
  %v864 = vpop.f32.mrf.mxu0
  %v865 = vadd.f32 0.0, %v864
  %v866 = vpop.f32.mrf.mxu0
  %867 = vmatprep.mubr.f32.mxu0 0.0
  %868 = vmatmul.mubr.f32.gmra.mxu0 %v730
  %v869 = vpop.f32.mrf.mxu0
  %v870 = vadd.f32 0.0, %v869
  %v871 = vpop.f32.mrf.mxu0
  %872 = vmatprep.mubr.f32.mxu0 0.0
  %873 = vmatmul.mubr.f32.gmra.mxu0 %v733
  %v874 = vpop.f32.mrf.mxu0
  %v875 = vadd.f32 0.0, %v874
  %v876 = vpop.f32.mrf.mxu0
  %877 = vmatprep.mubr.f32.mxu0 0.0
  %878 = vmatmul.mubr.f32.gmra.mxu0 %v736
  %v879 = vpop.f32.mrf.mxu0
  %v880 = vadd.f32 0.0, %v879
  %v881 = vpop.f32.mrf.mxu0
  %882 = vdwg.mxu0
  %v883 = vadd.f32 %v655, %v805
  %v884 = vadd.f32 %v656, %v810
  %v885 = vadd.f32 %v657, %v815
  %v886 = vadd.f32 %v658, %v820
  %v887 = vadd.f32 %v659, %v825
  %v888 = vadd.f32 %v660, %v830
  %v889 = vadd.f32 %v661, %v835
  %v890 = vadd.f32 %v662, %v840
  %v891 = vadd.f32 %v663, %v845
  %v892 = vadd.f32 %v664, %v850
  %v893 = vadd.f32 %v665, %v855
  %v894 = vadd.f32 %v666, %v860
  %v895 = vadd.f32 %v667, %v865
  %v896 = vadd.f32 %v668, %v870
  %v897 = vadd.f32 %v669, %v875
  %v898 = vadd.f32 %v670, %v880
  %v899 = vld [vmem:[%s2] sm:$0xff]
  %v900 = vld [vmem:[%s2 + $0x8] sm:$0xff]
  %v901 = vld [vmem:[%s2 + $0x10] sm:$0xff]
  %v902 = vld [vmem:[%s2 + $0x18] sm:$0xff]
  %vm903 = vcmask 261120
  %v905 = vsel %vm903, %v883, 0
  %v908 = vsel %vm903, %v884, 0
  %v911 = vsel %vm903, %v885, 0
  %v914 = vsel %vm903, %v886, 0
  %v917 = vsel %vm903, %v887, 0
  %v920 = vsel %vm903, %v888, 0
  %v923 = vsel %vm903, %v889, 0
  %v926 = vsel %vm903, %v890, 0
  %v929 = vsel %vm903, %v891, 0
  %v932 = vsel %vm903, %v892, 0
  %v935 = vsel %vm903, %v893, 0
  %v938 = vsel %vm903, %v894, 0
  %v941 = vsel %vm903, %v895, 0
  %v944 = vsel %vm903, %v896, 0
  %v947 = vsel %vm903, %v897, 0
  %v950 = vsel %vm903, %v898, 0
  %952 = vmatprep.subr.mxu0 0.0
  %953 = vmatpush1.msra.mxu0 0.0
  %954 = vmatprep.subr.mxu0 0.0
  %955 = vmatpush1.msra.mxu0 0.0
  %956 = vmatprep.subr.mxu0 0.0
  %957 = vmatpush1.msra.mxu0 0.0
  %958 = vmatprep.subr.mxu0 0.0
  %959 = vmatpush1.msra.mxu0 0.0
  %960 = vmatprep.subr.mxu0 0.0
  %961 = vmatpush1.msra.mxu0 0.0
  %962 = vmatprep.subr.mxu0 0.0
  %963 = vmatpush1.msra.mxu0 0.0
  %964 = vmatprep.subr.mxu0 0.0
  %965 = vmatpush1.msra.mxu0 0.0
  %966 = vmatprep.subr.mxu0 0.0
  %967 = vmatpush1.msra.mxu0 0.0
  %968 = vmatprep.subr.mxu0 0.0
  %969 = vmatpush1.msra.mxu0 0.0
  %970 = vmatprep.subr.mxu0 0.0
  %971 = vmatpush1.msra.mxu0 0.0
  %972 = vmatprep.subr.mxu0 0.0
  %973 = vmatpush1.msra.mxu0 0.0
  %974 = vmatprep.subr.mxu0 0.0
  %975 = vmatpush1.msra.mxu0 0.0
  %976 = vmatprep.subr.mxu0 0.0
  %977 = vmatpush1.msra.mxu0 %v902
  %978 = vmatprep.subr.mxu0 0.0
  %979 = vmatpush1.msra.mxu0 %v901
  %980 = vmatprep.subr.mxu0 0.0
  %981 = vmatpush1.msra.mxu0 %v900
  %982 = vmatprep.subr.mxu0 0.0
  %983 = vmatpush1.msra.mxu0 %v899
  %984 = vmatprep.subr.mxu0 0.0
  %985 = vmatpush2.msra.mxu0 0.0
  %986 = vmatprep.subr.mxu0 0.0
  %987 = vmatpush2.msra.mxu0 0.0
  %988 = vmatprep.subr.mxu0 0.0
  %989 = vmatpush2.msra.mxu0 0.0
  %990 = vmatprep.subr.mxu0 0.0
  %991 = vmatpush2.msra.mxu0 0.0
  %992 = vmatprep.subr.mxu0 0.0
  %993 = vmatpush2.msra.mxu0 0.0
  %994 = vmatprep.subr.mxu0 0.0
  %995 = vmatpush2.msra.mxu0 0.0
  %996 = vmatprep.subr.mxu0 0.0
  %997 = vmatpush2.msra.mxu0 0.0
  %998 = vmatprep.subr.mxu0 0.0
  %999 = vmatpush2.msra.mxu0 0.0
  %1000 = vmatprep.subr.mxu0 0.0
  %1001 = vmatpush2.msra.mxu0 0.0
  %1002 = vmatprep.subr.mxu0 0.0
  %1003 = vmatpush2.msra.mxu0 0.0
  %1004 = vmatprep.subr.mxu0 0.0
  %1005 = vmatpush2.msra.mxu0 0.0
  %1006 = vmatprep.subr.mxu0 0.0
  %1007 = vmatpush2.msra.mxu0 0.0
  %1008 = vmatprep.subr.mxu0 0.0
  %1009 = vmatpush2.msra.mxu0 0.0
  %1010 = vmatprep.subr.mxu0 0.0
  %1011 = vmatpush2.msra.mxu0 0.0
  %1012 = vmatprep.subr.mxu0 0.0
  %1013 = vmatpush2.msra.mxu0 0.0
  %1014 = vmatprep.subr.mxu0 0.0
  %1015 = vmatpush2.msra.mxu0 0.0
  %1016 = vmatprep.mubr.f32.mxu0 0.0
  %1017 = vmatmul.mubr.f32.gmra.mxu0 %v905
  %v1018 = vpop.f32.mrf.mxu0
  %v1019 = vadd.f32 0.0, %v1018
  %v1020 = vpop.f32.mrf.mxu0
  %1021 = vmatprep.mubr.f32.mxu0 0.0
  %1022 = vmatmul.mubr.f32.gmra.mxu0 %v908
  %v1023 = vpop.f32.mrf.mxu0
  %v1024 = vadd.f32 0.0, %v1023
  %v1025 = vpop.f32.mrf.mxu0
  %1026 = vmatprep.mubr.f32.mxu0 0.0
  %1027 = vmatmul.mubr.f32.gmra.mxu0 %v911
  %v1028 = vpop.f32.mrf.mxu0
  %v1029 = vadd.f32 0.0, %v1028
  %v1030 = vpop.f32.mrf.mxu0
  %1031 = vmatprep.mubr.f32.mxu0 0.0
  %1032 = vmatmul.mubr.f32.gmra.mxu0 %v914
  %v1033 = vpop.f32.mrf.mxu0
  %v1034 = vadd.f32 0.0, %v1033
  %v1035 = vpop.f32.mrf.mxu0
  %1036 = vmatprep.mubr.f32.mxu0 0.0
  %1037 = vmatmul.mubr.f32.gmra.mxu0 %v917
  %v1038 = vpop.f32.mrf.mxu0
  %v1039 = vadd.f32 0.0, %v1038
  %v1040 = vpop.f32.mrf.mxu0
  %1041 = vmatprep.mubr.f32.mxu0 0.0
  %1042 = vmatmul.mubr.f32.gmra.mxu0 %v920
  %v1043 = vpop.f32.mrf.mxu0
  %v1044 = vadd.f32 0.0, %v1043
  %v1045 = vpop.f32.mrf.mxu0
  %1046 = vmatprep.mubr.f32.mxu0 0.0
  %1047 = vmatmul.mubr.f32.gmra.mxu0 %v923
  %v1048 = vpop.f32.mrf.mxu0
  %v1049 = vadd.f32 0.0, %v1048
  %v1050 = vpop.f32.mrf.mxu0
  %1051 = vmatprep.mubr.f32.mxu0 0.0
  %1052 = vmatmul.mubr.f32.gmra.mxu0 %v926
  %v1053 = vpop.f32.mrf.mxu0
  %v1054 = vadd.f32 0.0, %v1053
  %v1055 = vpop.f32.mrf.mxu0
  %1056 = vmatprep.mubr.f32.mxu0 0.0
  %1057 = vmatmul.mubr.f32.gmra.mxu0 %v929
  %v1058 = vpop.f32.mrf.mxu0
  %v1059 = vadd.f32 0.0, %v1058
  %v1060 = vpop.f32.mrf.mxu0
  %1061 = vmatprep.mubr.f32.mxu0 0.0
  %1062 = vmatmul.mubr.f32.gmra.mxu0 %v932
  %v1063 = vpop.f32.mrf.mxu0
  %v1064 = vadd.f32 0.0, %v1063
  %v1065 = vpop.f32.mrf.mxu0
  %1066 = vmatprep.mubr.f32.mxu0 0.0
  %1067 = vmatmul.mubr.f32.gmra.mxu0 %v935
  %v1068 = vpop.f32.mrf.mxu0
  %v1069 = vadd.f32 0.0, %v1068
  %v1070 = vpop.f32.mrf.mxu0
  %1071 = vmatprep.mubr.f32.mxu0 0.0
  %1072 = vmatmul.mubr.f32.gmra.mxu0 %v938
  %v1073 = vpop.f32.mrf.mxu0
  %v1074 = vadd.f32 0.0, %v1073
  %v1075 = vpop.f32.mrf.mxu0
  %1076 = vmatprep.mubr.f32.mxu0 0.0
  %1077 = vmatmul.mubr.f32.gmra.mxu0 %v941
  %v1078 = vpop.f32.mrf.mxu0
  %v1079 = vadd.f32 0.0, %v1078
  %v1080 = vpop.f32.mrf.mxu0
  %1081 = vmatprep.mubr.f32.mxu0 0.0
  %1082 = vmatmul.mubr.f32.gmra.mxu0 %v944
  %v1083 = vpop.f32.mrf.mxu0
  %v1084 = vadd.f32 0.0, %v1083
  %v1085 = vpop.f32.mrf.mxu0
  %1086 = vmatprep.mubr.f32.mxu0 0.0
  %1087 = vmatmul.mubr.f32.gmra.mxu0 %v947
  %v1088 = vpop.f32.mrf.mxu0
  %v1089 = vadd.f32 0.0, %v1088
  %v1090 = vpop.f32.mrf.mxu0
  %1091 = vmatprep.mubr.f32.mxu0 0.0
  %1092 = vmatmul.mubr.f32.gmra.mxu0 %v950
  %v1093 = vpop.f32.mrf.mxu0
  %v1094 = vadd.f32 0.0, %v1093
  %v1095 = vpop.f32.mrf.mxu0
  %1096 = vdwg.mxu0
  %vm1097 = vcmask 31744
  %1098 = vst.msk [vmem:[%s5] sm:$0xff] %vm1097, %v1019
  %1099 = vst.msk [vmem:[%s5 + $0x8] sm:$0xff] %vm1097, %v1024
  %1100 = vst.msk [vmem:[%s5 + $0x10] sm:$0xff] %vm1097, %v1029
  %1101 = vst.msk [vmem:[%s5 + $0x18] sm:$0xff] %vm1097, %v1034
  %1102 = vst.msk [vmem:[%s5 + $0x20] sm:$0xff] %vm1097, %v1039
  %1103 = vst.msk [vmem:[%s5 + $0x28] sm:$0xff] %vm1097, %v1044
  %1104 = vst.msk [vmem:[%s5 + $0x30] sm:$0xff] %vm1097, %v1049
  %1105 = vst.msk [vmem:[%s5 + $0x38] sm:$0xff] %vm1097, %v1054
  %1106 = vst.msk [vmem:[%s5 + $0x40] sm:$0xff] %vm1097, %v1059
  %1107 = vst.msk [vmem:[%s5 + $0x48] sm:$0xff] %vm1097, %v1064
  %1108 = vst.msk [vmem:[%s5 + $0x50] sm:$0xff] %vm1097, %v1069
  %1109 = vst.msk [vmem:[%s5 + $0x58] sm:$0xff] %vm1097, %v1074
  %1110 = vst.msk [vmem:[%s5 + $0x60] sm:$0xff] %vm1097, %v1079
  %1111 = vst.msk [vmem:[%s5 + $0x68] sm:$0xff] %vm1097, %v1084
  %1112 = vst.msk [vmem:[%s5 + $0x70] sm:$0xff] %vm1097, %v1089
  %1113 = vst.msk [vmem:[%s5 + $0x78] sm:$0xff] %vm1097, %v1094
  %v1114 = vld [vmem:[%s3] sm:$0xff]
  %v1115 = vld [vmem:[%s3 + $0x8] sm:$0xff]
  %v1116 = vld [vmem:[%s3 + $0x10] sm:$0xff]
  %v1117 = vld [vmem:[%s3 + $0x18] sm:$0xff]
  %1118 = vmatprep.subr.mxu0 0.0
  %1119 = vmatpush1.msra.mxu0 0.0
  %1120 = vmatprep.subr.mxu0 0.0
  %1121 = vmatpush1.msra.mxu0 0.0
  %1122 = vmatprep.subr.mxu0 0.0
  %1123 = vmatpush1.msra.mxu0 0.0
  %1124 = vmatprep.subr.mxu0 0.0
  %1125 = vmatpush1.msra.mxu0 0.0
  %1126 = vmatprep.subr.mxu0 0.0
  %1127 = vmatpush1.msra.mxu0 0.0
  %1128 = vmatprep.subr.mxu0 0.0
  %1129 = vmatpush1.msra.mxu0 0.0
  %1130 = vmatprep.subr.mxu0 0.0
  %1131 = vmatpush1.msra.mxu0 0.0
  %1132 = vmatprep.subr.mxu0 0.0
  %1133 = vmatpush1.msra.mxu0 0.0
  %1134 = vmatprep.subr.mxu0 0.0
  %1135 = vmatpush1.msra.mxu0 0.0
  %1136 = vmatprep.subr.mxu0 0.0
  %1137 = vmatpush1.msra.mxu0 0.0
  %1138 = vmatprep.subr.mxu0 0.0
  %1139 = vmatpush1.msra.mxu0 0.0
  %1140 = vmatprep.subr.mxu0 0.0
  %1141 = vmatpush1.msra.mxu0 0.0
  %1142 = vmatprep.subr.mxu0 0.0
  %1143 = vmatpush1.msra.mxu0 %v1117
  %1144 = vmatprep.subr.mxu0 0.0
  %1145 = vmatpush1.msra.mxu0 %v1116
  %1146 = vmatprep.subr.mxu0 0.0
  %1147 = vmatpush1.msra.mxu0 %v1115
  %1148 = vmatprep.subr.mxu0 0.0
  %1149 = vmatpush1.msra.mxu0 %v1114
  %1150 = vmatprep.subr.mxu0 0.0
  %1151 = vmatpush2.msra.mxu0 0.0
  %1152 = vmatprep.subr.mxu0 0.0
  %1153 = vmatpush2.msra.mxu0 0.0
  %1154 = vmatprep.subr.mxu0 0.0
  %1155 = vmatpush2.msra.mxu0 0.0
  %1156 = vmatprep.subr.mxu0 0.0
  %1157 = vmatpush2.msra.mxu0 0.0
  %1158 = vmatprep.subr.mxu0 0.0
  %1159 = vmatpush2.msra.mxu0 0.0
  %1160 = vmatprep.subr.mxu0 0.0
  %1161 = vmatpush2.msra.mxu0 0.0
  %1162 = vmatprep.subr.mxu0 0.0
  %1163 = vmatpush2.msra.mxu0 0.0
  %1164 = vmatprep.subr.mxu0 0.0
  %1165 = vmatpush2.msra.mxu0 0.0
  %1166 = vmatprep.subr.mxu0 0.0
  %1167 = vmatpush2.msra.mxu0 0.0
  %1168 = vmatprep.subr.mxu0 0.0
  %1169 = vmatpush2.msra.mxu0 0.0
  %1170 = vmatprep.subr.mxu0 0.0
  %1171 = vmatpush2.msra.mxu0 0.0
  %1172 = vmatprep.subr.mxu0 0.0
  %1173 = vmatpush2.msra.mxu0 0.0
  %1174 = vmatprep.subr.mxu0 0.0
  %1175 = vmatpush2.msra.mxu0 0.0
  %1176 = vmatprep.subr.mxu0 0.0
  %1177 = vmatpush2.msra.mxu0 0.0
  %1178 = vmatprep.subr.mxu0 0.0
  %1179 = vmatpush2.msra.mxu0 0.0
  %1180 = vmatprep.subr.mxu0 0.0
  %1181 = vmatpush2.msra.mxu0 0.0
  %1182 = vmatprep.mubr.f32.mxu0 0.0
  %1183 = vmatmul.mubr.f32.gmra.mxu0 %v905
  %v1184 = vpop.f32.mrf.mxu0
  %v1185 = vadd.f32 0.0, %v1184
  %v1186 = vpop.f32.mrf.mxu0
  %1187 = vmatprep.mubr.f32.mxu0 0.0
  %1188 = vmatmul.mubr.f32.gmra.mxu0 %v908
  %v1189 = vpop.f32.mrf.mxu0
  %v1190 = vadd.f32 0.0, %v1189
  %v1191 = vpop.f32.mrf.mxu0
  %1192 = vmatprep.mubr.f32.mxu0 0.0
  %1193 = vmatmul.mubr.f32.gmra.mxu0 %v911
  %v1194 = vpop.f32.mrf.mxu0
  %v1195 = vadd.f32 0.0, %v1194
  %v1196 = vpop.f32.mrf.mxu0
  %1197 = vmatprep.mubr.f32.mxu0 0.0
  %1198 = vmatmul.mubr.f32.gmra.mxu0 %v914
  %v1199 = vpop.f32.mrf.mxu0
  %v1200 = vadd.f32 0.0, %v1199
  %v1201 = vpop.f32.mrf.mxu0
  %1202 = vmatprep.mubr.f32.mxu0 0.0
  %1203 = vmatmul.mubr.f32.gmra.mxu0 %v917
  %v1204 = vpop.f32.mrf.mxu0
  %v1205 = vadd.f32 0.0, %v1204
  %v1206 = vpop.f32.mrf.mxu0
  %1207 = vmatprep.mubr.f32.mxu0 0.0
  %1208 = vmatmul.mubr.f32.gmra.mxu0 %v920
  %v1209 = vpop.f32.mrf.mxu0
  %v1210 = vadd.f32 0.0, %v1209
  %v1211 = vpop.f32.mrf.mxu0
  %1212 = vmatprep.mubr.f32.mxu0 0.0
  %1213 = vmatmul.mubr.f32.gmra.mxu0 %v923
  %v1214 = vpop.f32.mrf.mxu0
  %v1215 = vadd.f32 0.0, %v1214
  %v1216 = vpop.f32.mrf.mxu0
  %1217 = vmatprep.mubr.f32.mxu0 0.0
  %1218 = vmatmul.mubr.f32.gmra.mxu0 %v926
  %v1219 = vpop.f32.mrf.mxu0
  %v1220 = vadd.f32 0.0, %v1219
  %v1221 = vpop.f32.mrf.mxu0
  %1222 = vmatprep.mubr.f32.mxu0 0.0
  %1223 = vmatmul.mubr.f32.gmra.mxu0 %v929
  %v1224 = vpop.f32.mrf.mxu0
  %v1225 = vadd.f32 0.0, %v1224
  %v1226 = vpop.f32.mrf.mxu0
  %1227 = vmatprep.mubr.f32.mxu0 0.0
  %1228 = vmatmul.mubr.f32.gmra.mxu0 %v932
  %v1229 = vpop.f32.mrf.mxu0
  %v1230 = vadd.f32 0.0, %v1229
  %v1231 = vpop.f32.mrf.mxu0
  %1232 = vmatprep.mubr.f32.mxu0 0.0
  %1233 = vmatmul.mubr.f32.gmra.mxu0 %v935
  %v1234 = vpop.f32.mrf.mxu0
  %v1235 = vadd.f32 0.0, %v1234
  %v1236 = vpop.f32.mrf.mxu0
  %1237 = vmatprep.mubr.f32.mxu0 0.0
  %1238 = vmatmul.mubr.f32.gmra.mxu0 %v938
  %v1239 = vpop.f32.mrf.mxu0
  %v1240 = vadd.f32 0.0, %v1239
  %v1241 = vpop.f32.mrf.mxu0
  %1242 = vmatprep.mubr.f32.mxu0 0.0
  %1243 = vmatmul.mubr.f32.gmra.mxu0 %v941
  %v1244 = vpop.f32.mrf.mxu0
  %v1245 = vadd.f32 0.0, %v1244
  %v1246 = vpop.f32.mrf.mxu0
  %1247 = vmatprep.mubr.f32.mxu0 0.0
  %1248 = vmatmul.mubr.f32.gmra.mxu0 %v944
  %v1249 = vpop.f32.mrf.mxu0
  %v1250 = vadd.f32 0.0, %v1249
  %v1251 = vpop.f32.mrf.mxu0
  %1252 = vmatprep.mubr.f32.mxu0 0.0
  %1253 = vmatmul.mubr.f32.gmra.mxu0 %v947
  %v1254 = vpop.f32.mrf.mxu0
  %v1255 = vadd.f32 0.0, %v1254
  %v1256 = vpop.f32.mrf.mxu0
  %1257 = vmatprep.mubr.f32.mxu0 0.0
  %1258 = vmatmul.mubr.f32.gmra.mxu0 %v950
  %v1259 = vpop.f32.mrf.mxu0
  %v1260 = vadd.f32 0.0, %v1259
  %v1261 = vpop.f32.mrf.mxu0
  %1262 = vdwg.mxu0
  %1263 = vst.msk [vmem:[%s6] sm:$0xff] %vm1097, %v1185
  %1264 = vst.msk [vmem:[%s6 + $0x8] sm:$0xff] %vm1097, %v1190
  %1265 = vst.msk [vmem:[%s6 + $0x10] sm:$0xff] %vm1097, %v1195
  %1266 = vst.msk [vmem:[%s6 + $0x18] sm:$0xff] %vm1097, %v1200
  %1267 = vst.msk [vmem:[%s6 + $0x20] sm:$0xff] %vm1097, %v1205
  %1268 = vst.msk [vmem:[%s6 + $0x28] sm:$0xff] %vm1097, %v1210
  %1269 = vst.msk [vmem:[%s6 + $0x30] sm:$0xff] %vm1097, %v1215
  %1270 = vst.msk [vmem:[%s6 + $0x38] sm:$0xff] %vm1097, %v1220
  %1271 = vst.msk [vmem:[%s6 + $0x40] sm:$0xff] %vm1097, %v1225
  %1272 = vst.msk [vmem:[%s6 + $0x48] sm:$0xff] %vm1097, %v1230
  %1273 = vst.msk [vmem:[%s6 + $0x50] sm:$0xff] %vm1097, %v1235
  %1274 = vst.msk [vmem:[%s6 + $0x58] sm:$0xff] %vm1097, %v1240
  %1275 = vst.msk [vmem:[%s6 + $0x60] sm:$0xff] %vm1097, %v1245
  %1276 = vst.msk [vmem:[%s6 + $0x68] sm:$0xff] %vm1097, %v1250
  %1277 = vst.msk [vmem:[%s6 + $0x70] sm:$0xff] %vm1097, %v1255
  %1278 = vst.msk [vmem:[%s6 + $0x78] sm:$0xff] %vm1097, %v1260
  %1279 = vst.msk [vmem:[%s4] sm:$0xff] %vm56, %v883
  %1280 = vst.msk [vmem:[%s4 + $0x8] sm:$0xff] %vm56, %v884
  %1281 = vst.msk [vmem:[%s4 + $0x10] sm:$0xff] %vm56, %v885
  %1282 = vst.msk [vmem:[%s4 + $0x18] sm:$0xff] %vm56, %v886
  %1283 = vst.msk [vmem:[%s4 + $0x20] sm:$0xff] %vm56, %v887
  %1284 = vst.msk [vmem:[%s4 + $0x28] sm:$0xff] %vm56, %v888
  %1285 = vst.msk [vmem:[%s4 + $0x30] sm:$0xff] %vm56, %v889
  %1286 = vst.msk [vmem:[%s4 + $0x38] sm:$0xff] %vm56, %v890
  %1287 = vst.msk [vmem:[%s4 + $0x40] sm:$0xff] %vm56, %v891
  %1288 = vst.msk [vmem:[%s4 + $0x48] sm:$0xff] %vm56, %v892
  %1289 = vst.msk [vmem:[%s4 + $0x50] sm:$0xff] %vm56, %v893
  %1290 = vst.msk [vmem:[%s4 + $0x58] sm:$0xff] %vm56, %v894
  %1291 = vst.msk [vmem:[%s4 + $0x60] sm:$0xff] %vm56, %v895
  %1292 = vst.msk [vmem:[%s4 + $0x68] sm:$0xff] %vm56, %v896
  %1293 = vst.msk [vmem:[%s4 + $0x70] sm:$0xff] %vm56, %v897
  %1294 = vst.msk [vmem:[%s4 + $0x78] sm:$0xff] %vm56, %v898
  %1295 = vrot.lane.b32.xlu0 %v883, 120
  %v1296 = vpop.permute.xlu0 %1295
  %1297 = vrot.lane.b32.xlu0 %v884, 120
  %v1298 = vpop.permute.xlu0 %1297
  %1299 = vrot.lane.b32.xlu0 %v885, 120
  %v1300 = vpop.permute.xlu0 %1299
  %1301 = vrot.lane.b32.xlu0 %v886, 120
  %v1302 = vpop.permute.xlu0 %1301
  %1303 = vrot.lane.b32.xlu0 %v887, 120
  %v1304 = vpop.permute.xlu0 %1303
  %1305 = vrot.lane.b32.xlu0 %v888, 120
  %v1306 = vpop.permute.xlu0 %1305
  %1307 = vrot.lane.b32.xlu0 %v889, 120
  %v1308 = vpop.permute.xlu0 %1307
  %1309 = vrot.lane.b32.xlu0 %v890, 120
  %v1310 = vpop.permute.xlu0 %1309
  %1311 = vrot.lane.b32.xlu0 %v891, 120
  %v1312 = vpop.permute.xlu0 %1311
  %1313 = vrot.lane.b32.xlu0 %v892, 120
  %v1314 = vpop.permute.xlu0 %1313
  %1315 = vrot.lane.b32.xlu0 %v893, 120
  %v1316 = vpop.permute.xlu0 %1315
  %1317 = vrot.lane.b32.xlu0 %v894, 120
  %v1318 = vpop.permute.xlu0 %1317
  %1319 = vrot.lane.b32.xlu0 %v895, 120
  %v1320 = vpop.permute.xlu0 %1319
  %1321 = vrot.lane.b32.xlu0 %v896, 120
  %v1322 = vpop.permute.xlu0 %1321
  %1323 = vrot.lane.b32.xlu0 %v897, 120
  %v1324 = vpop.permute.xlu0 %1323
  %1325 = vrot.lane.b32.xlu0 %v898, 120
  %v1326 = vpop.permute.xlu0 %1325
  %s1343 = scalar_lea.vmem %s4, 128
  %1344 = vst.msk [vmem:[%s1343] sm:$0xff] %vm56, %v1296
  %1345 = vst.msk [vmem:[%s1343 + $0x8] sm:$0xff] %vm56, %v1298
  %1346 = vst.msk [vmem:[%s1343 + $0x10] sm:$0xff] %vm56, %v1300
  %1347 = vst.msk [vmem:[%s1343 + $0x18] sm:$0xff] %vm56, %v1302
  %1348 = vst.msk [vmem:[%s1343 + $0x20] sm:$0xff] %vm56, %v1304
  %1349 = vst.msk [vmem:[%s1343 + $0x28] sm:$0xff] %vm56, %v1306
  %1350 = vst.msk [vmem:[%s1343 + $0x30] sm:$0xff] %vm56, %v1308
  %1351 = vst.msk [vmem:[%s1343 + $0x38] sm:$0xff] %vm56, %v1310
  %1352 = vst.msk [vmem:[%s1343 + $0x40] sm:$0xff] %vm56, %v1312
  %1353 = vst.msk [vmem:[%s1343 + $0x48] sm:$0xff] %vm56, %v1314
  %1354 = vst.msk [vmem:[%s1343 + $0x50] sm:$0xff] %vm56, %v1316
  %1355 = vst.msk [vmem:[%s1343 + $0x58] sm:$0xff] %vm56, %v1318
  %1356 = vst.msk [vmem:[%s1343 + $0x60] sm:$0xff] %vm56, %v1320
  %1357 = vst.msk [vmem:[%s1343 + $0x68] sm:$0xff] %vm56, %v1322
  %1358 = vst.msk [vmem:[%s1343 + $0x70] sm:$0xff] %vm56, %v1324
  %1359 = vst.msk [vmem:[%s1343 + $0x78] sm:$0xff] %vm56, %v1326
  %1360 = vrot.lane.b32.xlu0 %v883, 112
  %v1361 = vpop.permute.xlu0 %1360
  %1362 = vrot.lane.b32.xlu0 %v884, 112
  %v1363 = vpop.permute.xlu0 %1362
  %1364 = vrot.lane.b32.xlu0 %v885, 112
  %v1365 = vpop.permute.xlu0 %1364
  %1366 = vrot.lane.b32.xlu0 %v886, 112
  %v1367 = vpop.permute.xlu0 %1366
  %1368 = vrot.lane.b32.xlu0 %v887, 112
  %v1369 = vpop.permute.xlu0 %1368
  %1370 = vrot.lane.b32.xlu0 %v888, 112
  %v1371 = vpop.permute.xlu0 %1370
  %1372 = vrot.lane.b32.xlu0 %v889, 112
  %v1373 = vpop.permute.xlu0 %1372
  %1374 = vrot.lane.b32.xlu0 %v890, 112
  %v1375 = vpop.permute.xlu0 %1374
  %1376 = vrot.lane.b32.xlu0 %v891, 112
  %v1377 = vpop.permute.xlu0 %1376
  %1378 = vrot.lane.b32.xlu0 %v892, 112
  %v1379 = vpop.permute.xlu0 %1378
  %1380 = vrot.lane.b32.xlu0 %v893, 112
  %v1381 = vpop.permute.xlu0 %1380
  %1382 = vrot.lane.b32.xlu0 %v894, 112
  %v1383 = vpop.permute.xlu0 %1382
  %1384 = vrot.lane.b32.xlu0 %v895, 112
  %v1385 = vpop.permute.xlu0 %1384
  %1386 = vrot.lane.b32.xlu0 %v896, 112
  %v1387 = vpop.permute.xlu0 %1386
  %1388 = vrot.lane.b32.xlu0 %v897, 112
  %v1389 = vpop.permute.xlu0 %1388
  %1390 = vrot.lane.b32.xlu0 %v898, 112
  %v1391 = vpop.permute.xlu0 %1390
  %s1408 = scalar_lea.vmem %s4, 256
  %1409 = vst.msk [vmem:[%s1408] sm:$0xff] %vm56, %v1361
  %1410 = vst.msk [vmem:[%s1408 + $0x8] sm:$0xff] %vm56, %v1363
  %1411 = vst.msk [vmem:[%s1408 + $0x10] sm:$0xff] %vm56, %v1365
  %1412 = vst.msk [vmem:[%s1408 + $0x18] sm:$0xff] %vm56, %v1367
  %1413 = vst.msk [vmem:[%s1408 + $0x20] sm:$0xff] %vm56, %v1369
  %1414 = vst.msk [vmem:[%s1408 + $0x28] sm:$0xff] %vm56, %v1371
  %1415 = vst.msk [vmem:[%s1408 + $0x30] sm:$0xff] %vm56, %v1373
  %1416 = vst.msk [vmem:[%s1408 + $0x38] sm:$0xff] %vm56, %v1375
  %1417 = vst.msk [vmem:[%s1408 + $0x40] sm:$0xff] %vm56, %v1377
  %1418 = vst.msk [vmem:[%s1408 + $0x48] sm:$0xff] %vm56, %v1379
  %1419 = vst.msk [vmem:[%s1408 + $0x50] sm:$0xff] %vm56, %v1381
  %1420 = vst.msk [vmem:[%s1408 + $0x58] sm:$0xff] %vm56, %v1383
  %1421 = vst.msk [vmem:[%s1408 + $0x60] sm:$0xff] %vm56, %v1385
  %1422 = vst.msk [vmem:[%s1408 + $0x68] sm:$0xff] %vm56, %v1387
  %1423 = vst.msk [vmem:[%s1408 + $0x70] sm:$0xff] %vm56, %v1389
  %1424 = vst.msk [vmem:[%s1408 + $0x78] sm:$0xff] %vm56, %v1391
  %1425 = vrot.lane.b32.xlu0 %v883, 104
  %v1426 = vpop.permute.xlu0 %1425
  %1427 = vrot.lane.b32.xlu0 %v884, 104
  %v1428 = vpop.permute.xlu0 %1427
  %1429 = vrot.lane.b32.xlu0 %v885, 104
  %v1430 = vpop.permute.xlu0 %1429
  %1431 = vrot.lane.b32.xlu0 %v886, 104
  %v1432 = vpop.permute.xlu0 %1431
  %1433 = vrot.lane.b32.xlu0 %v887, 104
  %v1434 = vpop.permute.xlu0 %1433
  %1435 = vrot.lane.b32.xlu0 %v888, 104
  %v1436 = vpop.permute.xlu0 %1435
  %1437 = vrot.lane.b32.xlu0 %v889, 104
  %v1438 = vpop.permute.xlu0 %1437
  %1439 = vrot.lane.b32.xlu0 %v890, 104
  %v1440 = vpop.permute.xlu0 %1439
  %1441 = vrot.lane.b32.xlu0 %v891, 104
  %v1442 = vpop.permute.xlu0 %1441
  %1443 = vrot.lane.b32.xlu0 %v892, 104
  %v1444 = vpop.permute.xlu0 %1443
  %1445 = vrot.lane.b32.xlu0 %v893, 104
  %v1446 = vpop.permute.xlu0 %1445
  %1447 = vrot.lane.b32.xlu0 %v894, 104
  %v1448 = vpop.permute.xlu0 %1447
  %1449 = vrot.lane.b32.xlu0 %v895, 104
  %v1450 = vpop.permute.xlu0 %1449
  %1451 = vrot.lane.b32.xlu0 %v896, 104
  %v1452 = vpop.permute.xlu0 %1451
  %1453 = vrot.lane.b32.xlu0 %v897, 104
  %v1454 = vpop.permute.xlu0 %1453
  %1455 = vrot.lane.b32.xlu0 %v898, 104
  %v1456 = vpop.permute.xlu0 %1455
  %s1473 = scalar_lea.vmem %s4, 384
  %1474 = vst.msk [vmem:[%s1473] sm:$0xff] %vm56, %v1426
  %1475 = vst.msk [vmem:[%s1473 + $0x8] sm:$0xff] %vm56, %v1428
  %1476 = vst.msk [vmem:[%s1473 + $0x10] sm:$0xff] %vm56, %v1430
  %1477 = vst.msk [vmem:[%s1473 + $0x18] sm:$0xff] %vm56, %v1432
  %1478 = vst.msk [vmem:[%s1473 + $0x20] sm:$0xff] %vm56, %v1434
  %1479 = vst.msk [vmem:[%s1473 + $0x28] sm:$0xff] %vm56, %v1436
  %1480 = vst.msk [vmem:[%s1473 + $0x30] sm:$0xff] %vm56, %v1438
  %1481 = vst.msk [vmem:[%s1473 + $0x38] sm:$0xff] %vm56, %v1440
  %1482 = vst.msk [vmem:[%s1473 + $0x40] sm:$0xff] %vm56, %v1442
  %1483 = vst.msk [vmem:[%s1473 + $0x48] sm:$0xff] %vm56, %v1444
  %1484 = vst.msk [vmem:[%s1473 + $0x50] sm:$0xff] %vm56, %v1446
  %1485 = vst.msk [vmem:[%s1473 + $0x58] sm:$0xff] %vm56, %v1448
  %1486 = vst.msk [vmem:[%s1473 + $0x60] sm:$0xff] %vm56, %v1450
  %1487 = vst.msk [vmem:[%s1473 + $0x68] sm:$0xff] %vm56, %v1452
  %1488 = vst.msk [vmem:[%s1473 + $0x70] sm:$0xff] %vm56, %v1454
  %1489 = vst.msk [vmem:[%s1473 + $0x78] sm:$0xff] %vm56, %v1456
  // Predicated region
  $region18: #{graph_transformer_teacher.6} parent=0 // pred_check
    _
  $region19: #{graph_transformer_teacher.6} parent=0 // pred_check_branch
    %1491 = sbr.rel (0) target = $region21
  $region20: #{graph_transformer_teacher.6} parent=0 // pred_region
    _
  $region21: #{graph_transformer_teacher.6} parent=0 // pred_fallthru
    _
  // Predicated region
  $region22: #{graph_transformer_teacher.6} parent=0 // pred_check
    _
  $region23: #{graph_transformer_teacher.6} parent=0 // pred_check_branch
    %1493 = sbr.rel (0) target = $region25
  $region24: #{graph_transformer_teacher.6} parent=0 // pred_region
    _
  $region25: #{graph_transformer_teacher.6} parent=0 // pred_fallthru
    _
  // Predicated region
  $region26: #{graph_transformer_teacher.6} parent=0 // pred_check
    _
  $region27: #{graph_transformer_teacher.6} parent=0 // pred_check_branch
    %1495 = sbr.rel (0) target = $region29
  $region28: #{graph_transformer_teacher.6} parent=0 // pred_region
    _
  $region29: #{graph_transformer_teacher.6} parent=0 // pred_fallthru
    _
  // Predicated region
  $region30: #{graph_transformer_teacher.6} parent=0 // pred_check
    _
  $region31: #{graph_transformer_teacher.6} parent=0 // pred_check_branch
    %1497 = sbr.rel (0) target = $region33
  $region32: #{graph_transformer_teacher.6} parent=0 // pred_region
    _
  $region33: #{graph_transformer_teacher.6} parent=0 // pred_fallthru
    _
  // Predicated region
  $region34: #{graph_transformer_teacher.6} parent=0 // pred_check
    _
  $region35: #{graph_transformer_teacher.6} parent=0 // pred_check_branch
    %1499 = sbr.rel (0) target = $region37
  $region36: #{graph_transformer_teacher.6} parent=0 // pred_region
    _
  $region37: #{graph_transformer_teacher.6} parent=0 // pred_fallthru
    _
  // Predicated region
  $region38: #{graph_transformer_teacher.6} parent=0 // pred_check
    _
  $region39: #{graph_transformer_teacher.6} parent=0 // pred_check_branch
    %1501 = sbr.rel (0) target = $region41
  $region40: #{graph_transformer_teacher.6} parent=0 // pred_region
    _
  $region41: #{graph_transformer_teacher.6} parent=0 // pred_fallthru
    _

</llo_original>
